<compile_context>
chip_gen: v5e
topology: v5e:2x2
jax: 0.10.0
libtpu: 0.0.40
codegen_flags: <defaults>
</compile_context>

<pallas_src>
import functools

import jax
import jax.numpy as jnp
import numpy as np
from jax import lax
from jax.experimental import pallas as pl
from jax.experimental.pallas import tpu as pltpu

EPS = 1e-5          # nn.BatchNorm2d default eps
NEG_SLOPE = 0.01    # F.leaky_relu default negative_slope

# Tap carry modes (host-side schedule -> static kernel code paths).
_A_ONLY, _B_ONLY, _BOTH = 0, 1, 2


def _leaky(x):
    return jnp.where(x > 0, x, NEG_SLOPE * x)


# --------------------------------------------------------------------------------------
# Host-side (one-time) parameter preprocessing: turn a PyTorch (Cout, Cin, 3, 3) conv
# weight into a static shift schedule + per-destination-lane weight tiles for the packed
# (N*L/128, 128) activation layout (L = H*W*C).  Zero padding is folded in as zero
# weights, so the kernel needs no padded buffers and no boundary masks; cross-sample /
# wrapped reads only ever hit zero-weight lanes.
# --------------------------------------------------------------------------------------
def _conv_tap_tables(w, H, W, N):
    w = np.asarray(w, dtype=np.float32)
    Cout, Cin = int(w.shape[0]), int(w.shape[1])
    assert Cout == Cin, "residual add requires in_channels == out_channels"
    C = Cout
    L = H * W * C
    assert L % 128 == 0, "H*W*C must be a multiple of 128 for the packed layout"
    SUB = L // 128

    lane = np.arange(L)
    y_l = lane // (W * C)          # destination y
    x_l = (lane // C) % W          # destination x
    c_l = lane % C                 # destination (output) channel

    # Accumulate per-destination-lane weights for every distinct flat source offset d.
    wtab = {}
    for ky in range(3):
        for kx in range(3):
            for ci in range(C):
                for co in range(C):
                    d = (ky - 1) * W * C + (kx - 1) * C + (ci - co)
                    valid = ((c_l == co)
                             & (y_l + ky - 1 >= 0) & (y_l + ky - 1 < H)
                             & (x_l + kx - 1 >= 0) & (x_l + kx - 1 < W))
                    if d not in wtab:
                        wtab[d] = np.zeros(L, np.float32)
                    wtab[d][valid] += w[co, ci, ky, kx]

    ds = sorted(wtab)
    # Re-tile each tap's weight vector to the packed layout and replicate over samples,
    # so the kernel never emits a broadcast_in_dim per tap.
    wmat = np.stack([np.tile(wtab[d].reshape(SUB, 128), (N, 1)) for d in ds])  # (T, N*SUB, 128)

    lane_mod = lane % 128
    groups = {}
    for idx, d in enumerate(ds):
        dq, dp = divmod(d, 128)                      # dp in [0,128), dq = floor(d/128)
        carry = lane_mod >= (128 - dp) if dp > 0 else np.zeros(L, bool)
        wv = wtab[d]
        if not wv[carry].any():
            mode = _A_ONLY       # carry lanes all zero-weight: no select, no extra roll
        elif not wv[~carry].any():
            mode = _B_ONLY       # non-carry lanes all zero-weight: no select either
        else:
            mode = _BOTH
        groups.setdefault(int(dp), []).append((int(dq), int(idx), int(mode)))
    schedule = tuple((dp, tuple(groups[dp])) for dp in sorted(groups))
    return schedule, wmat


# --------------------------------------------------------------------------------------
# Pallas kernel
# --------------------------------------------------------------------------------------
def _resblock_kernel(x_ref, w1_ref, w2_ref, mred_ref, mexp_ref, gb1_ref, gb2_ref,
                     out_ref, *, schedule, rows, count):
    # Hoisted once (JAX does not CSE broadcasts): lane iota for the static carry selects.
    lane = lax.broadcasted_iota(jnp.int32, (rows, 128), 1)
    mred = mred_ref[...]          # (128, C) one-hot lane -> channel reduce matrix
    mexp = mexp_ref[...]          # (C, 128) channel -> lane expand matrix
    inv_n = 1.0 / count

    def conv3x3(x, w_ref):
        # Sum over static shifts: shared lane roll per dp group (XLU), cached sublane
        # rolls (XLU), optional carry select (VPU), per-lane weight FMA (VPU).
        accs = [None, None, None, None]       # partial accumulators (review item 2)
        k = 0
        for dp, taps in schedule:
            xl = x if dp == 0 else pltpu.roll(x, 128 - dp, axis=1)
            cache = {0: xl}

            def variant(q, cache=cache, xl=xl):
                if q not in cache:
                    cache[q] = pltpu.roll(xl, (-q) % rows, axis=0)
                return cache[q]

            mask = None
            for dq, widx, mode in taps:
                if mode == _A_ONLY:
                    rolled = variant(dq)
                elif mode == _B_ONLY:
                    rolled = variant(dq + 1)
                else:
                    if mask is None:
                        mask = lane >= (128 - dp)
                    rolled = jnp.where(mask, variant(dq + 1), variant(dq))
                term = rolled * w_ref[widx]          # weights pre-tiled to (rows, 128)
                j = k % 4
                accs[j] = term if accs[j] is None else accs[j] + term
                k += 1
        parts = [a for a in accs if a is not None]
        while len(parts) > 1:
            nxt = [parts[i] + parts[i + 1] for i in range(0, len(parts) - 1, 2)]
            if len(parts) % 2:
                nxt.append(parts[-1])
            parts = nxt
        return parts[0]

    # TODO(synk): running_mean/running_var side effects of train-mode BatchNorm2d are not
    # produced; the forward output does not depend on them.
    def bn_leaky(x, gb_ref):
        # Training-mode BN over (N, H, W): two-pass *centered* variance (robust vs
        # E[x^2]-mean^2 cancellation), normalize+affine fused into one per-element FMA.
        gb = gb_ref[...]                                                     # (2, C)
        s1 = jnp.sum(jnp.dot(x, mred, preferred_element_type=jnp.float32),
                     axis=0, keepdims=True)                                  # (1, C)
        mean = s1 * inv_n
        mean_l = jnp.dot(mean, mexp, preferred_element_type=jnp.float32)     # (1, 128)
        xc = x - mean_l
        s2 = jnp.sum(jnp.dot(xc * xc, mred, preferred_element_type=jnp.float32),
                     axis=0, keepdims=True)
        var = s2 * inv_n                                                     # biased var
        scale = gb[0:1, :] * lax.rsqrt(var + EPS)                            # (1, C)
        sb = jnp.concatenate([scale, gb[1:2, :]], axis=0)                    # (2, C)
        sb_l = jnp.dot(sb, mexp, preferred_element_type=jnp.float32)         # (2, 128)
        return _leaky(xc * sb_l[0:1, :] + sb_l[1:2, :])

    h = conv3x3(x_ref[...], w1_ref)
    h = bn_leaky(h, gb1_ref)
    h = conv3x3(h, w2_ref)
    h = bn_leaky(h, gb2_ref)
    # Residual add: re-read the skip from the input ref (short live range).
    out_ref[...] = _leaky(h + x_ref[...]).astype(out_ref.dtype)


# --------------------------------------------------------------------------------------
# Wrappers
# --------------------------------------------------------------------------------------
def residual_block_flat(x_flat, w1, g1, b1, w2, g2, b2, *, N, C, H, W):
    """ResidualBlock forward on the lane-dense packed layout (N*H*W*C/128, 128).
    Keep activations in this layout across consecutive blocks; convert NCHW only at
    network boundaries (the relayouts dominate wall-clock at this size)."""
    R = N * H * W * C // 128
    assert x_flat.shape == (R, 128)
    assert 128 % C == 0, "channel-of-lane map requires 128 % C == 0"

    schedule, w1m = _conv_tap_tables(w1, H, W, N)
    schedule2, w2m = _conv_tap_tables(w2, H, W, N)
    assert schedule == schedule2

    mred = (np.arange(128)[:, None] % C == np.arange(C)[None, :]).astype(np.float32)
    mexp = np.ascontiguousarray(mred.T)
    gb1 = np.stack([np.asarray(g1, np.float32), np.asarray(b1, np.float32)])
    gb2 = np.stack([np.asarray(g2, np.float32), np.asarray(b2, np.float32)])

    kernel = functools.partial(_resblock_kernel, schedule=schedule, rows=R,
                               count=float(N * H * W))

    T = int(w1m.shape[0])
    flops = 2 * (2 * T * R * 128) + 2 * (4 * R * 128 * C + 8 * R * 128)
    bytes_accessed = 4 * (2 * R * 128 + 2 * T * R * 128 + 2 * 128 * C + 4 * C)

    vmem = pl.BlockSpec(memory_space=pltpu.MemorySpace.VMEM)
    # TODO(synk): for large shapes, tile over rows with a two-pass BN (global stats pass +
    # normalize pass), mark the row axis "parallel" so v7x's two TensorCores split the
    # grid, and switch the conv to a bf16-operand / f32-accum MXU formulation (im2col or
    # per-tap CxC) once C >= ~8-16 -- the per-lane weight table grows as O(C^2*H*W) and
    # would blow v7x's 64 MiB VMEM.  Single un-tiled invocation here: training-mode BN
    # needs global (N, H, W) statistics and the whole problem is ~1 MiB of VMEM.
    out_flat = pl.pallas_call(
        kernel,
        out_shape=jax.ShapeDtypeStruct((R, 128), jnp.float32),
        in_specs=[vmem] * 7,
        out_specs=vmem,
        compiler_params=pltpu.CompilerParams(
            # Explicit budget: actual footprint (~1 MiB of weight tables + activations)
            # is far below every generation's physical VMEM (v5e/v6e 128 MiB, v7x 64 MiB).
            vmem_limit_bytes=32 * 1024 * 1024),
        cost_estimate=pl.CostEstimate(flops=int(flops), transcendentals=int(2 * C),
                                      bytes_accessed=int(bytes_accessed)),
    )(x_flat.astype(jnp.float32), jnp.asarray(w1m), jnp.asarray(w2m),
      jnp.asarray(mred), jnp.asarray(mexp), jnp.asarray(gb1), jnp.asarray(gb2))
    return out_flat


def residual_block(x_nchw, w1, g1, b1, w2, g2, b2):
    """PyTorch-style NCHW in / NCHW out wrapper (layout glue only at the boundary)."""
    N, C, H, W = map(int, x_nchw.shape)
    assert (N * H * W * C) % 128 == 0
    R = N * H * W * C // 128
    x_flat = jnp.transpose(x_nchw, (0, 2, 3, 1)).reshape(R, 128).astype(jnp.float32)
    out_flat = residual_block_flat(x_flat, w1, g1, b1, w2, g2, b2, N=N, C=C, H=H, W=W)
    out = out_flat.reshape(N, H, W, C)
    return jnp.transpose(out, (0, 3, 1, 2)).astype(x_nchw.dtype)


# ---------------- pure-JAX reference (independent correctness check) ----------------
def _ref_forward(x_nchw, w1, g1, b1, w2, g2, b2):
    x = jnp.transpose(x_nchw, (0, 2, 3, 1)).astype(jnp.float32)

    def conv(x, w):
        return lax.conv_general_dilated(
            x, jnp.transpose(w, (2, 3, 1, 0)).astype(jnp.float32),
            window_strides=(1, 1), padding=((1, 1), (1, 1)),
            dimension_numbers=("NHWC", "HWIO", "NHWC"))

    def bn(x, g, b):
        m = jnp.mean(x, axis=(0, 1, 2), keepdims=True)
        v = jnp.mean((x - m) ** 2, axis=(0, 1, 2), keepdims=True)
        return (x - m) * lax.rsqrt(v + EPS) * g.reshape(1, 1, 1, -1) + b.reshape(1, 1, 1, -1)

    out = _leaky(bn(conv(x, w1), g1, b1))
    out = _leaky(bn(conv(out, w2), g2, b2))
    out = _leaky(out + x)
    return jnp.transpose(out, (0, 3, 1, 2))


if __name__ == "__main__":
    # Residual add requires in_channels == out_channels.
    N, C, H, W = 2, 4, 16, 16
    key = jax.random.PRNGKey(0)
    kx, kw1, kw2 = jax.random.split(key, 3)

    x = jax.random.normal(kx, (N, C, H, W), jnp.float32)
    # Conv weights in PyTorch layout (Cout, Cin, 3, 3), no bias.
    w1 = 0.1 * jax.random.normal(kw1, (C, C, 3, 3), jnp.float32)
    w2 = 0.1 * jax.random.normal(kw2, (C, C, 3, 3), jnp.float32)
    # BatchNorm affine params at PyTorch defaults: gamma=1, beta=0.
    g1 = jnp.ones((C,), jnp.float32)
    b1 = jnp.zeros((C,), jnp.float32)
    g2 = jnp.ones((C,), jnp.float32)
    b2 = jnp.zeros((C,), jnp.float32)

    out = jax.block_until_ready(residual_block(x, w1, g1, b1, w2, g2, b2))
    ref = jax.block_until_ready(_ref_forward(x, w1, g1, b1, w2, g2, b2))

    assert out.shape == (N, C, H, W)
    err = float(jnp.max(jnp.abs(out - ref)))
    assert jnp.allclose(out, ref, atol=1e-3, rtol=1e-3), f"mismatch vs JAX reference (max |err|={err})"

    print("KERNEL_OK")
</pallas_src>

<mosaic_0001>
module attributes {stable_mosaic.version = 11 : i64} {
  func.func @_resblock_kernel(%arg0: memref<16x128xf32, #tpu.memory_space<vmem>>, %arg1: memref<45x16x128xf32, #tpu.memory_space<vmem>>, %arg2: memref<45x16x128xf32, #tpu.memory_space<vmem>>, %arg3: memref<128x4xf32, #tpu.memory_space<vmem>>, %arg4: memref<4x128xf32, #tpu.memory_space<vmem>>, %arg5: memref<2x4xf32, #tpu.memory_space<vmem>>, %arg6: memref<2x4xf32, #tpu.memory_space<vmem>>, %arg7: memref<16x128xf32, #tpu.memory_space<vmem>>) attributes {dimension_semantics = [], scalar_prefetch = 0 : i64, scratch_operands = 0 : i64, tpu.core_type = #tpu.core_type<tc>} {
    %0 = tpu.iota {dimensions = array<i32: 1>} : vector<16x128xi32>
    %c0 = arith.constant 0 : index
    %c0_0 = arith.constant 0 : index
    %1 = vector.load %arg3[%c0, %c0_0] : memref<128x4xf32, #tpu.memory_space<vmem>>, vector<128x4xf32>
    %c0_1 = arith.constant 0 : index
    %c0_2 = arith.constant 0 : index
    %2 = vector.load %arg4[%c0_1, %c0_2] : memref<4x128xf32, #tpu.memory_space<vmem>>, vector<4x128xf32>
    %c0_3 = arith.constant 0 : index
    %c0_4 = arith.constant 0 : index
    %3 = vector.load %arg0[%c0_3, %c0_4] : memref<16x128xf32, #tpu.memory_space<vmem>>, vector<16x128xf32>
    %c22 = arith.constant 22 : index
    %c0_5 = arith.constant 0 : index
    %c0_6 = arith.constant 0 : index
    %4 = vector.load %arg1[%c22, %c0_5, %c0_6] : memref<45x16x128xf32, #tpu.memory_space<vmem>>, vector<1x16x128xf32>
    %5 = vector.shape_cast %4 : vector<1x16x128xf32> to vector<16x128xf32>
    %6 = arith.mulf %3, %5 : vector<16x128xf32>
    %c127_i32 = arith.constant 127 : i32
    %7 = tpu.dynamic_rotate %3 by %c127_i32 dim 1 : vector<16x128xf32>, i32 -> vector<16x128xf32>
    %c23 = arith.constant 23 : index
    %c0_7 = arith.constant 0 : index
    %c0_8 = arith.constant 0 : index
    %8 = vector.load %arg1[%c23, %c0_7, %c0_8] : memref<45x16x128xf32, #tpu.memory_space<vmem>>, vector<1x16x128xf32>
    %9 = vector.shape_cast %8 : vector<1x16x128xf32> to vector<16x128xf32>
    %10 = arith.mulf %7, %9 : vector<16x128xf32>
    %c126_i32 = arith.constant 126 : i32
    %11 = tpu.dynamic_rotate %3 by %c126_i32 dim 1 : vector<16x128xf32>, i32 -> vector<16x128xf32>
    %c24 = arith.constant 24 : index
    %c0_9 = arith.constant 0 : index
    %c0_10 = arith.constant 0 : index
    %12 = vector.load %arg1[%c24, %c0_9, %c0_10] : memref<45x16x128xf32, #tpu.memory_space<vmem>>, vector<1x16x128xf32>
    %13 = vector.shape_cast %12 : vector<1x16x128xf32> to vector<16x128xf32>
    %14 = arith.mulf %11, %13 : vector<16x128xf32>
    %c125_i32 = arith.constant 125 : i32
    %15 = tpu.dynamic_rotate %3 by %c125_i32 dim 1 : vector<16x128xf32>, i32 -> vector<16x128xf32>
    %c25 = arith.constant 25 : index
    %c0_11 = arith.constant 0 : index
    %c0_12 = arith.constant 0 : index
    %16 = vector.load %arg1[%c25, %c0_11, %c0_12] : memref<45x16x128xf32, #tpu.memory_space<vmem>>, vector<1x16x128xf32>
    %17 = vector.shape_cast %16 : vector<1x16x128xf32> to vector<16x128xf32>
    %18 = arith.mulf %15, %17 : vector<16x128xf32>
    %c124_i32 = arith.constant 124 : i32
    %19 = tpu.dynamic_rotate %3 by %c124_i32 dim 1 : vector<16x128xf32>, i32 -> vector<16x128xf32>
    %c26 = arith.constant 26 : index
    %c0_13 = arith.constant 0 : index
    %c0_14 = arith.constant 0 : index
    %20 = vector.load %arg1[%c26, %c0_13, %c0_14] : memref<45x16x128xf32, #tpu.memory_space<vmem>>, vector<1x16x128xf32>
    %21 = vector.shape_cast %20 : vector<1x16x128xf32> to vector<16x128xf32>
    %22 = arith.mulf %19, %21 : vector<16x128xf32>
    %23 = arith.addf %6, %22 : vector<16x128xf32>
    %c123_i32 = arith.constant 123 : i32
    %24 = tpu.dynamic_rotate %3 by %c123_i32 dim 1 : vector<16x128xf32>, i32 -> vector<16x128xf32>
    %c27 = arith.constant 27 : index
    %c0_15 = arith.constant 0 : index
    %c0_16 = arith.constant 0 : index
    %25 = vector.load %arg1[%c27, %c0_15, %c0_16] : memref<45x16x128xf32, #tpu.memory_space<vmem>>, vector<1x16x128xf32>
    %26 = vector.shape_cast %25 : vector<1x16x128xf32> to vector<16x128xf32>
    %27 = arith.mulf %24, %26 : vector<16x128xf32>
    %28 = arith.addf %10, %27 : vector<16x128xf32>
    %c122_i32 = arith.constant 122 : i32
    %29 = tpu.dynamic_rotate %3 by %c122_i32 dim 1 : vector<16x128xf32>, i32 -> vector<16x128xf32>
    %c28 = arith.constant 28 : index
    %c0_17 = arith.constant 0 : index
    %c0_18 = arith.constant 0 : index
    %30 = vector.load %arg1[%c28, %c0_17, %c0_18] : memref<45x16x128xf32, #tpu.memory_space<vmem>>, vector<1x16x128xf32>
    %31 = vector.shape_cast %30 : vector<1x16x128xf32> to vector<16x128xf32>
    %32 = arith.mulf %29, %31 : vector<16x128xf32>
    %33 = arith.addf %14, %32 : vector<16x128xf32>
    %c121_i32 = arith.constant 121 : i32
    %34 = tpu.dynamic_rotate %3 by %c121_i32 dim 1 : vector<16x128xf32>, i32 -> vector<16x128xf32>
    %c29 = arith.constant 29 : index
    %c0_19 = arith.constant 0 : index
    %c0_20 = arith.constant 0 : index
    %35 = vector.load %arg1[%c29, %c0_19, %c0_20] : memref<45x16x128xf32, #tpu.memory_space<vmem>>, vector<1x16x128xf32>
    %36 = vector.shape_cast %35 : vector<1x16x128xf32> to vector<16x128xf32>
    %37 = arith.mulf %34, %36 : vector<16x128xf32>
    %38 = arith.addf %18, %37 : vector<16x128xf32>
    %c71_i32 = arith.constant 71 : i32
    %39 = tpu.dynamic_rotate %3 by %c71_i32 dim 1 : vector<16x128xf32>, i32 -> vector<16x128xf32>
    %c71_i32_21 = arith.constant 71 : i32
    %40 = vector.broadcast %c71_i32_21 : i32 to vector<16x128xi32>
    %41 = arith.cmpi sge, %0, %40 : vector<16x128xi32>
    %c1_i32 = arith.constant 1 : i32
    %42 = tpu.dynamic_rotate %39 by %c1_i32 dim 0 : vector<16x128xf32>, i32 -> vector<16x128xf32>
    %43 = arith.select %41, %39, %42 : vector<16x128xi1>, vector<16x128xf32>
    %c0_22 = arith.constant 0 : index
    %c0_23 = arith.constant 0 : index
    %c0_24 = arith.constant 0 : index
    %44 = vector.load %arg1[%c0_22, %c0_23, %c0_24] : memref<45x16x128xf32, #tpu.memory_space<vmem>>, vector<1x16x128xf32>
    %45 = vector.shape_cast %44 : vector<1x16x128xf32> to vector<16x128xf32>
    %46 = arith.mulf %43, %45 : vector<16x128xf32>
    %47 = arith.addf %23, %46 : vector<16x128xf32>
    %c15_i32 = arith.constant 15 : i32
    %48 = tpu.dynamic_rotate %39 by %c15_i32 dim 0 : vector<16x128xf32>, i32 -> vector<16x128xf32>
    %49 = arith.select %41, %48, %39 : vector<16x128xi1>, vector<16x128xf32>
    %c30 = arith.constant 30 : index
    %c0_25 = arith.constant 0 : index
    %c0_26 = arith.constant 0 : index
    %50 = vector.load %arg1[%c30, %c0_25, %c0_26] : memref<45x16x128xf32, #tpu.memory_space<vmem>>, vector<1x16x128xf32>
    %51 = vector.shape_cast %50 : vector<1x16x128xf32> to vector<16x128xf32>
    %52 = arith.mulf %49, %51 : vector<16x128xf32>
    %53 = arith.addf %28, %52 : vector<16x128xf32>
    %c70_i32 = arith.constant 70 : i32
    %54 = tpu.dynamic_rotate %3 by %c70_i32 dim 1 : vector<16x128xf32>, i32 -> vector<16x128xf32>
    %c70_i32_27 = arith.constant 70 : i32
    %55 = vector.broadcast %c70_i32_27 : i32 to vector<16x128xi32>
    %56 = arith.cmpi sge, %0, %55 : vector<16x128xi32>
    %c1_i32_28 = arith.constant 1 : i32
    %57 = tpu.dynamic_rotate %54 by %c1_i32_28 dim 0 : vector<16x128xf32>, i32 -> vector<16x128xf32>
    %58 = arith.select %56, %54, %57 : vector<16x128xi1>, vector<16x128xf32>
    %c1 = arith.constant 1 : index
    %c0_29 = arith.constant 0 : index
    %c0_30 = arith.constant 0 : index
    %59 = vector.load %arg1[%c1, %c0_29, %c0_30] : memref<45x16x128xf32, #tpu.memory_space<vmem>>, vector<1x16x128xf32>
    %60 = vector.shape_cast %59 : vector<1x16x128xf32> to vector<16x128xf32>
    %61 = arith.mulf %58, %60 : vector<16x128xf32>
    %62 = arith.addf %33, %61 : vector<16x128xf32>
    %c15_i32_31 = arith.constant 15 : i32
    %63 = tpu.dynamic_rotate %54 by %c15_i32_31 dim 0 : vector<16x128xf32>, i32 -> vector<16x128xf32>
    %64 = arith.select %56, %63, %54 : vector<16x128xi1>, vector<16x128xf32>
    %c31 = arith.constant 31 : index
    %c0_32 = arith.constant 0 : index
    %c0_33 = arith.constant 0 : index
    %65 = vector.load %arg1[%c31, %c0_32, %c0_33] : memref<45x16x128xf32, #tpu.memory_space<vmem>>, vector<1x16x128xf32>
    %66 = vector.shape_cast %65 : vector<1x16x128xf32> to vector<16x128xf32>
    %67 = arith.mulf %64, %66 : vector<16x128xf32>
    %68 = arith.addf %38, %67 : vector<16x128xf32>
    %c69_i32 = arith.constant 69 : i32
    %69 = tpu.dynamic_rotate %3 by %c69_i32 dim 1 : vector<16x128xf32>, i32 -> vector<16x128xf32>
    %c69_i32_34 = arith.constant 69 : i32
    %70 = vector.broadcast %c69_i32_34 : i32 to vector<16x128xi32>
    %71 = arith.cmpi sge, %0, %70 : vector<16x128xi32>
    %c1_i32_35 = arith.constant 1 : i32
    %72 = tpu.dynamic_rotate %69 by %c1_i32_35 dim 0 : vector<16x128xf32>, i32 -> vector<16x128xf32>
    %73 = arith.select %71, %69, %72 : vector<16x128xi1>, vector<16x128xf32>
    %c2 = arith.constant 2 : index
    %c0_36 = arith.constant 0 : index
    %c0_37 = arith.constant 0 : index
    %74 = vector.load %arg1[%c2, %c0_36, %c0_37] : memref<45x16x128xf32, #tpu.memory_space<vmem>>, vector<1x16x128xf32>
    %75 = vector.shape_cast %74 : vector<1x16x128xf32> to vector<16x128xf32>
    %76 = arith.mulf %73, %75 : vector<16x128xf32>
    %77 = arith.addf %47, %76 : vector<16x128xf32>
    %c15_i32_38 = arith.constant 15 : i32
    %78 = tpu.dynamic_rotate %69 by %c15_i32_38 dim 0 : vector<16x128xf32>, i32 -> vector<16x128xf32>
    %79 = arith.select %71, %78, %69 : vector<16x128xi1>, vector<16x128xf32>
    %c32 = arith.constant 32 : index
    %c0_39 = arith.constant 0 : index
    %c0_40 = arith.constant 0 : index
    %80 = vector.load %arg1[%c32, %c0_39, %c0_40] : memref<45x16x128xf32, #tpu.memory_space<vmem>>, vector<1x16x128xf32>
    %81 = vector.shape_cast %80 : vector<1x16x128xf32> to vector<16x128xf32>
    %82 = arith.mulf %79, %81 : vector<16x128xf32>
    %83 = arith.addf %53, %82 : vector<16x128xf32>
    %c68_i32 = arith.constant 68 : i32
    %84 = tpu.dynamic_rotate %3 by %c68_i32 dim 1 : vector<16x128xf32>, i32 -> vector<16x128xf32>
    %c68_i32_41 = arith.constant 68 : i32
    %85 = vector.broadcast %c68_i32_41 : i32 to vector<16x128xi32>
    %86 = arith.cmpi sge, %0, %85 : vector<16x128xi32>
    %c1_i32_42 = arith.constant 1 : i32
    %87 = tpu.dynamic_rotate %84 by %c1_i32_42 dim 0 : vector<16x128xf32>, i32 -> vector<16x128xf32>
    %88 = arith.select %86, %84, %87 : vector<16x128xi1>, vector<16x128xf32>
    %c3 = arith.constant 3 : index
    %c0_43 = arith.constant 0 : index
    %c0_44 = arith.constant 0 : index
    %89 = vector.load %arg1[%c3, %c0_43, %c0_44] : memref<45x16x128xf32, #tpu.memory_space<vmem>>, vector<1x16x128xf32>
    %90 = vector.shape_cast %89 : vector<1x16x128xf32> to vector<16x128xf32>
    %91 = arith.mulf %88, %90 : vector<16x128xf32>
    %92 = arith.addf %62, %91 : vector<16x128xf32>
    %c15_i32_45 = arith.constant 15 : i32
    %93 = tpu.dynamic_rotate %84 by %c15_i32_45 dim 0 : vector<16x128xf32>, i32 -> vector<16x128xf32>
    %94 = arith.select %86, %93, %84 : vector<16x128xi1>, vector<16x128xf32>
    %c33 = arith.constant 33 : index
    %c0_46 = arith.constant 0 : index
    %c0_47 = arith.constant 0 : index
    %95 = vector.load %arg1[%c33, %c0_46, %c0_47] : memref<45x16x128xf32, #tpu.memory_space<vmem>>, vector<1x16x128xf32>
    %96 = vector.shape_cast %95 : vector<1x16x128xf32> to vector<16x128xf32>
    %97 = arith.mulf %94, %96 : vector<16x128xf32>
    %98 = arith.addf %68, %97 : vector<16x128xf32>
    %c67_i32 = arith.constant 67 : i32
    %99 = tpu.dynamic_rotate %3 by %c67_i32 dim 1 : vector<16x128xf32>, i32 -> vector<16x128xf32>
    %c67_i32_48 = arith.constant 67 : i32
    %100 = vector.broadcast %c67_i32_48 : i32 to vector<16x128xi32>
    %101 = arith.cmpi sge, %0, %100 : vector<16x128xi32>
    %c1_i32_49 = arith.constant 1 : i32
    %102 = tpu.dynamic_rotate %99 by %c1_i32_49 dim 0 : vector<16x128xf32>, i32 -> vector<16x128xf32>
    %103 = arith.select %101, %99, %102 : vector<16x128xi1>, vector<16x128xf32>
    %c4 = arith.constant 4 : index
    %c0_50 = arith.constant 0 : index
    %c0_51 = arith.constant 0 : index
    %104 = vector.load %arg1[%c4, %c0_50, %c0_51] : memref<45x16x128xf32, #tpu.memory_space<vmem>>, vector<1x16x128xf32>
    %105 = vector.shape_cast %104 : vector<1x16x128xf32> to vector<16x128xf32>
    %106 = arith.mulf %103, %105 : vector<16x128xf32>
    %107 = arith.addf %77, %106 : vector<16x128xf32>
    %c15_i32_52 = arith.constant 15 : i32
    %108 = tpu.dynamic_rotate %99 by %c15_i32_52 dim 0 : vector<16x128xf32>, i32 -> vector<16x128xf32>
    %109 = arith.select %101, %108, %99 : vector<16x128xi1>, vector<16x128xf32>
    %c34 = arith.constant 34 : index
    %c0_53 = arith.constant 0 : index
    %c0_54 = arith.constant 0 : index
    %110 = vector.load %arg1[%c34, %c0_53, %c0_54] : memref<45x16x128xf32, #tpu.memory_space<vmem>>, vector<1x16x128xf32>
    %111 = vector.shape_cast %110 : vector<1x16x128xf32> to vector<16x128xf32>
    %112 = arith.mulf %109, %111 : vector<16x128xf32>
    %113 = arith.addf %83, %112 : vector<16x128xf32>
    %c66_i32 = arith.constant 66 : i32
    %114 = tpu.dynamic_rotate %3 by %c66_i32 dim 1 : vector<16x128xf32>, i32 -> vector<16x128xf32>
    %c66_i32_55 = arith.constant 66 : i32
    %115 = vector.broadcast %c66_i32_55 : i32 to vector<16x128xi32>
    %116 = arith.cmpi sge, %0, %115 : vector<16x128xi32>
    %c1_i32_56 = arith.constant 1 : i32
    %117 = tpu.dynamic_rotate %114 by %c1_i32_56 dim 0 : vector<16x128xf32>, i32 -> vector<16x128xf32>
    %118 = arith.select %116, %114, %117 : vector<16x128xi1>, vector<16x128xf32>
    %c5 = arith.constant 5 : index
    %c0_57 = arith.constant 0 : index
    %c0_58 = arith.constant 0 : index
    %119 = vector.load %arg1[%c5, %c0_57, %c0_58] : memref<45x16x128xf32, #tpu.memory_space<vmem>>, vector<1x16x128xf32>
    %120 = vector.shape_cast %119 : vector<1x16x128xf32> to vector<16x128xf32>
    %121 = arith.mulf %118, %120 : vector<16x128xf32>
    %122 = arith.addf %92, %121 : vector<16x128xf32>
    %c15_i32_59 = arith.constant 15 : i32
    %123 = tpu.dynamic_rotate %114 by %c15_i32_59 dim 0 : vector<16x128xf32>, i32 -> vector<16x128xf32>
    %124 = arith.select %116, %123, %114 : vector<16x128xi1>, vector<16x128xf32>
    %c35 = arith.constant 35 : index
    %c0_60 = arith.constant 0 : index
    %c0_61 = arith.constant 0 : index
    %125 = vector.load %arg1[%c35, %c0_60, %c0_61] : memref<45x16x128xf32, #tpu.memory_space<vmem>>, vector<1x16x128xf32>
    %126 = vector.shape_cast %125 : vector<1x16x128xf32> to vector<16x128xf32>
    %127 = arith.mulf %124, %126 : vector<16x128xf32>
    %128 = arith.addf %98, %127 : vector<16x128xf32>
    %c65_i32 = arith.constant 65 : i32
    %129 = tpu.dynamic_rotate %3 by %c65_i32 dim 1 : vector<16x128xf32>, i32 -> vector<16x128xf32>
    %c65_i32_62 = arith.constant 65 : i32
    %130 = vector.broadcast %c65_i32_62 : i32 to vector<16x128xi32>
    %131 = arith.cmpi sge, %0, %130 : vector<16x128xi32>
    %c1_i32_63 = arith.constant 1 : i32
    %132 = tpu.dynamic_rotate %129 by %c1_i32_63 dim 0 : vector<16x128xf32>, i32 -> vector<16x128xf32>
    %133 = arith.select %131, %129, %132 : vector<16x128xi1>, vector<16x128xf32>
    %c6 = arith.constant 6 : index
    %c0_64 = arith.constant 0 : index
    %c0_65 = arith.constant 0 : index
    %134 = vector.load %arg1[%c6, %c0_64, %c0_65] : memref<45x16x128xf32, #tpu.memory_space<vmem>>, vector<1x16x128xf32>
    %135 = vector.shape_cast %134 : vector<1x16x128xf32> to vector<16x128xf32>
    %136 = arith.mulf %133, %135 : vector<16x128xf32>
    %137 = arith.addf %107, %136 : vector<16x128xf32>
    %c15_i32_66 = arith.constant 15 : i32
    %138 = tpu.dynamic_rotate %129 by %c15_i32_66 dim 0 : vector<16x128xf32>, i32 -> vector<16x128xf32>
    %139 = arith.select %131, %138, %129 : vector<16x128xi1>, vector<16x128xf32>
    %c36 = arith.constant 36 : index
    %c0_67 = arith.constant 0 : index
    %c0_68 = arith.constant 0 : index
    %140 = vector.load %arg1[%c36, %c0_67, %c0_68] : memref<45x16x128xf32, #tpu.memory_space<vmem>>, vector<1x16x128xf32>
    %141 = vector.shape_cast %140 : vector<1x16x128xf32> to vector<16x128xf32>
    %142 = arith.mulf %139, %141 : vector<16x128xf32>
    %143 = arith.addf %113, %142 : vector<16x128xf32>
    %c64_i32 = arith.constant 64 : i32
    %144 = tpu.dynamic_rotate %3 by %c64_i32 dim 1 : vector<16x128xf32>, i32 -> vector<16x128xf32>
    %c64_i32_69 = arith.constant 64 : i32
    %145 = vector.broadcast %c64_i32_69 : i32 to vector<16x128xi32>
    %146 = arith.cmpi sge, %0, %145 : vector<16x128xi32>
    %c1_i32_70 = arith.constant 1 : i32
    %147 = tpu.dynamic_rotate %144 by %c1_i32_70 dim 0 : vector<16x128xf32>, i32 -> vector<16x128xf32>
    %148 = arith.select %146, %144, %147 : vector<16x128xi1>, vector<16x128xf32>
    %c7 = arith.constant 7 : index
    %c0_71 = arith.constant 0 : index
    %c0_72 = arith.constant 0 : index
    %149 = vector.load %arg1[%c7, %c0_71, %c0_72] : memref<45x16x128xf32, #tpu.memory_space<vmem>>, vector<1x16x128xf32>
    %150 = vector.shape_cast %149 : vector<1x16x128xf32> to vector<16x128xf32>
    %151 = arith.mulf %148, %150 : vector<16x128xf32>
    %152 = arith.addf %122, %151 : vector<16x128xf32>
    %c15_i32_73 = arith.constant 15 : i32
    %153 = tpu.dynamic_rotate %144 by %c15_i32_73 dim 0 : vector<16x128xf32>, i32 -> vector<16x128xf32>
    %154 = arith.select %146, %153, %144 : vector<16x128xi1>, vector<16x128xf32>
    %c37 = arith.constant 37 : index
    %c0_74 = arith.constant 0 : index
    %c0_75 = arith.constant 0 : index
    %155 = vector.load %arg1[%c37, %c0_74, %c0_75] : memref<45x16x128xf32, #tpu.memory_space<vmem>>, vector<1x16x128xf32>
    %156 = vector.shape_cast %155 : vector<1x16x128xf32> to vector<16x128xf32>
    %157 = arith.mulf %154, %156 : vector<16x128xf32>
    %158 = arith.addf %128, %157 : vector<16x128xf32>
    %c63_i32 = arith.constant 63 : i32
    %159 = tpu.dynamic_rotate %3 by %c63_i32 dim 1 : vector<16x128xf32>, i32 -> vector<16x128xf32>
    %c63_i32_76 = arith.constant 63 : i32
    %160 = vector.broadcast %c63_i32_76 : i32 to vector<16x128xi32>
    %161 = arith.cmpi sge, %0, %160 : vector<16x128xi32>
    %c1_i32_77 = arith.constant 1 : i32
    %162 = tpu.dynamic_rotate %159 by %c1_i32_77 dim 0 : vector<16x128xf32>, i32 -> vector<16x128xf32>
    %163 = arith.select %161, %159, %162 : vector<16x128xi1>, vector<16x128xf32>
    %c8 = arith.constant 8 : index
    %c0_78 = arith.constant 0 : index
    %c0_79 = arith.constant 0 : index
    %164 = vector.load %arg1[%c8, %c0_78, %c0_79] : memref<45x16x128xf32, #tpu.memory_space<vmem>>, vector<1x16x128xf32>
    %165 = vector.shape_cast %164 : vector<1x16x128xf32> to vector<16x128xf32>
    %166 = arith.mulf %163, %165 : vector<16x128xf32>
    %167 = arith.addf %137, %166 : vector<16x128xf32>
    %c15_i32_80 = arith.constant 15 : i32
    %168 = tpu.dynamic_rotate %159 by %c15_i32_80 dim 0 : vector<16x128xf32>, i32 -> vector<16x128xf32>
    %169 = arith.select %161, %168, %159 : vector<16x128xi1>, vector<16x128xf32>
    %c38 = arith.constant 38 : index
    %c0_81 = arith.constant 0 : index
    %c0_82 = arith.constant 0 : index
    %170 = vector.load %arg1[%c38, %c0_81, %c0_82] : memref<45x16x128xf32, #tpu.memory_space<vmem>>, vector<1x16x128xf32>
    %171 = vector.shape_cast %170 : vector<1x16x128xf32> to vector<16x128xf32>
    %172 = arith.mulf %169, %171 : vector<16x128xf32>
    %173 = arith.addf %143, %172 : vector<16x128xf32>
    %c62_i32 = arith.constant 62 : i32
    %174 = tpu.dynamic_rotate %3 by %c62_i32 dim 1 : vector<16x128xf32>, i32 -> vector<16x128xf32>
    %c62_i32_83 = arith.constant 62 : i32
    %175 = vector.broadcast %c62_i32_83 : i32 to vector<16x128xi32>
    %176 = arith.cmpi sge, %0, %175 : vector<16x128xi32>
    %c1_i32_84 = arith.constant 1 : i32
    %177 = tpu.dynamic_rotate %174 by %c1_i32_84 dim 0 : vector<16x128xf32>, i32 -> vector<16x128xf32>
    %178 = arith.select %176, %174, %177 : vector<16x128xi1>, vector<16x128xf32>
    %c9 = arith.constant 9 : index
    %c0_85 = arith.constant 0 : index
    %c0_86 = arith.constant 0 : index
    %179 = vector.load %arg1[%c9, %c0_85, %c0_86] : memref<45x16x128xf32, #tpu.memory_space<vmem>>, vector<1x16x128xf32>
    %180 = vector.shape_cast %179 : vector<1x16x128xf32> to vector<16x128xf32>
    %181 = arith.mulf %178, %180 : vector<16x128xf32>
    %182 = arith.addf %152, %181 : vector<16x128xf32>
    %c15_i32_87 = arith.constant 15 : i32
    %183 = tpu.dynamic_rotate %174 by %c15_i32_87 dim 0 : vector<16x128xf32>, i32 -> vector<16x128xf32>
    %184 = arith.select %176, %183, %174 : vector<16x128xi1>, vector<16x128xf32>
    %c39 = arith.constant 39 : index
    %c0_88 = arith.constant 0 : index
    %c0_89 = arith.constant 0 : index
    %185 = vector.load %arg1[%c39, %c0_88, %c0_89] : memref<45x16x128xf32, #tpu.memory_space<vmem>>, vector<1x16x128xf32>
    %186 = vector.shape_cast %185 : vector<1x16x128xf32> to vector<16x128xf32>
    %187 = arith.mulf %184, %186 : vector<16x128xf32>
    %188 = arith.addf %158, %187 : vector<16x128xf32>
    %c61_i32 = arith.constant 61 : i32
    %189 = tpu.dynamic_rotate %3 by %c61_i32 dim 1 : vector<16x128xf32>, i32 -> vector<16x128xf32>
    %c61_i32_90 = arith.constant 61 : i32
    %190 = vector.broadcast %c61_i32_90 : i32 to vector<16x128xi32>
    %191 = arith.cmpi sge, %0, %190 : vector<16x128xi32>
    %c1_i32_91 = arith.constant 1 : i32
    %192 = tpu.dynamic_rotate %189 by %c1_i32_91 dim 0 : vector<16x128xf32>, i32 -> vector<16x128xf32>
    %193 = arith.select %191, %189, %192 : vector<16x128xi1>, vector<16x128xf32>
    %c10 = arith.constant 10 : index
    %c0_92 = arith.constant 0 : index
    %c0_93 = arith.constant 0 : index
    %194 = vector.load %arg1[%c10, %c0_92, %c0_93] : memref<45x16x128xf32, #tpu.memory_space<vmem>>, vector<1x16x128xf32>
    %195 = vector.shape_cast %194 : vector<1x16x128xf32> to vector<16x128xf32>
    %196 = arith.mulf %193, %195 : vector<16x128xf32>
    %197 = arith.addf %167, %196 : vector<16x128xf32>
    %c15_i32_94 = arith.constant 15 : i32
    %198 = tpu.dynamic_rotate %189 by %c15_i32_94 dim 0 : vector<16x128xf32>, i32 -> vector<16x128xf32>
    %199 = arith.select %191, %198, %189 : vector<16x128xi1>, vector<16x128xf32>
    %c40 = arith.constant 40 : index
    %c0_95 = arith.constant 0 : index
    %c0_96 = arith.constant 0 : index
    %200 = vector.load %arg1[%c40, %c0_95, %c0_96] : memref<45x16x128xf32, #tpu.memory_space<vmem>>, vector<1x16x128xf32>
    %201 = vector.shape_cast %200 : vector<1x16x128xf32> to vector<16x128xf32>
    %202 = arith.mulf %199, %201 : vector<16x128xf32>
    %203 = arith.addf %173, %202 : vector<16x128xf32>
    %c60_i32 = arith.constant 60 : i32
    %204 = tpu.dynamic_rotate %3 by %c60_i32 dim 1 : vector<16x128xf32>, i32 -> vector<16x128xf32>
    %c60_i32_97 = arith.constant 60 : i32
    %205 = vector.broadcast %c60_i32_97 : i32 to vector<16x128xi32>
    %206 = arith.cmpi sge, %0, %205 : vector<16x128xi32>
    %c1_i32_98 = arith.constant 1 : i32
    %207 = tpu.dynamic_rotate %204 by %c1_i32_98 dim 0 : vector<16x128xf32>, i32 -> vector<16x128xf32>
    %208 = arith.select %206, %204, %207 : vector<16x128xi1>, vector<16x128xf32>
    %c11 = arith.constant 11 : index
    %c0_99 = arith.constant 0 : index
    %c0_100 = arith.constant 0 : index
    %209 = vector.load %arg1[%c11, %c0_99, %c0_100] : memref<45x16x128xf32, #tpu.memory_space<vmem>>, vector<1x16x128xf32>
    %210 = vector.shape_cast %209 : vector<1x16x128xf32> to vector<16x128xf32>
    %211 = arith.mulf %208, %210 : vector<16x128xf32>
    %212 = arith.addf %182, %211 : vector<16x128xf32>
    %c15_i32_101 = arith.constant 15 : i32
    %213 = tpu.dynamic_rotate %204 by %c15_i32_101 dim 0 : vector<16x128xf32>, i32 -> vector<16x128xf32>
    %214 = arith.select %206, %213, %204 : vector<16x128xi1>, vector<16x128xf32>
    %c41 = arith.constant 41 : index
    %c0_102 = arith.constant 0 : index
    %c0_103 = arith.constant 0 : index
    %215 = vector.load %arg1[%c41, %c0_102, %c0_103] : memref<45x16x128xf32, #tpu.memory_space<vmem>>, vector<1x16x128xf32>
    %216 = vector.shape_cast %215 : vector<1x16x128xf32> to vector<16x128xf32>
    %217 = arith.mulf %214, %216 : vector<16x128xf32>
    %218 = arith.addf %188, %217 : vector<16x128xf32>
    %c59_i32 = arith.constant 59 : i32
    %219 = tpu.dynamic_rotate %3 by %c59_i32 dim 1 : vector<16x128xf32>, i32 -> vector<16x128xf32>
    %c59_i32_104 = arith.constant 59 : i32
    %220 = vector.broadcast %c59_i32_104 : i32 to vector<16x128xi32>
    %221 = arith.cmpi sge, %0, %220 : vector<16x128xi32>
    %c1_i32_105 = arith.constant 1 : i32
    %222 = tpu.dynamic_rotate %219 by %c1_i32_105 dim 0 : vector<16x128xf32>, i32 -> vector<16x128xf32>
    %223 = arith.select %221, %219, %222 : vector<16x128xi1>, vector<16x128xf32>
    %c12 = arith.constant 12 : index
    %c0_106 = arith.constant 0 : index
    %c0_107 = arith.constant 0 : index
    %224 = vector.load %arg1[%c12, %c0_106, %c0_107] : memref<45x16x128xf32, #tpu.memory_space<vmem>>, vector<1x16x128xf32>
    %225 = vector.shape_cast %224 : vector<1x16x128xf32> to vector<16x128xf32>
    %226 = arith.mulf %223, %225 : vector<16x128xf32>
    %227 = arith.addf %197, %226 : vector<16x128xf32>
    %c15_i32_108 = arith.constant 15 : i32
    %228 = tpu.dynamic_rotate %219 by %c15_i32_108 dim 0 : vector<16x128xf32>, i32 -> vector<16x128xf32>
    %229 = arith.select %221, %228, %219 : vector<16x128xi1>, vector<16x128xf32>
    %c42 = arith.constant 42 : index
    %c0_109 = arith.constant 0 : index
    %c0_110 = arith.constant 0 : index
    %230 = vector.load %arg1[%c42, %c0_109, %c0_110] : memref<45x16x128xf32, #tpu.memory_space<vmem>>, vector<1x16x128xf32>
    %231 = vector.shape_cast %230 : vector<1x16x128xf32> to vector<16x128xf32>
    %232 = arith.mulf %229, %231 : vector<16x128xf32>
    %233 = arith.addf %203, %232 : vector<16x128xf32>
    %c58_i32 = arith.constant 58 : i32
    %234 = tpu.dynamic_rotate %3 by %c58_i32 dim 1 : vector<16x128xf32>, i32 -> vector<16x128xf32>
    %c58_i32_111 = arith.constant 58 : i32
    %235 = vector.broadcast %c58_i32_111 : i32 to vector<16x128xi32>
    %236 = arith.cmpi sge, %0, %235 : vector<16x128xi32>
    %c1_i32_112 = arith.constant 1 : i32
    %237 = tpu.dynamic_rotate %234 by %c1_i32_112 dim 0 : vector<16x128xf32>, i32 -> vector<16x128xf32>
    %238 = arith.select %236, %234, %237 : vector<16x128xi1>, vector<16x128xf32>
    %c13 = arith.constant 13 : index
    %c0_113 = arith.constant 0 : index
    %c0_114 = arith.constant 0 : index
    %239 = vector.load %arg1[%c13, %c0_113, %c0_114] : memref<45x16x128xf32, #tpu.memory_space<vmem>>, vector<1x16x128xf32>
    %240 = vector.shape_cast %239 : vector<1x16x128xf32> to vector<16x128xf32>
    %241 = arith.mulf %238, %240 : vector<16x128xf32>
    %242 = arith.addf %212, %241 : vector<16x128xf32>
    %c15_i32_115 = arith.constant 15 : i32
    %243 = tpu.dynamic_rotate %234 by %c15_i32_115 dim 0 : vector<16x128xf32>, i32 -> vector<16x128xf32>
    %244 = arith.select %236, %243, %234 : vector<16x128xi1>, vector<16x128xf32>
    %c43 = arith.constant 43 : index
    %c0_116 = arith.constant 0 : index
    %c0_117 = arith.constant 0 : index
    %245 = vector.load %arg1[%c43, %c0_116, %c0_117] : memref<45x16x128xf32, #tpu.memory_space<vmem>>, vector<1x16x128xf32>
    %246 = vector.shape_cast %245 : vector<1x16x128xf32> to vector<16x128xf32>
    %247 = arith.mulf %244, %246 : vector<16x128xf32>
    %248 = arith.addf %218, %247 : vector<16x128xf32>
    %c57_i32 = arith.constant 57 : i32
    %249 = tpu.dynamic_rotate %3 by %c57_i32 dim 1 : vector<16x128xf32>, i32 -> vector<16x128xf32>
    %c57_i32_118 = arith.constant 57 : i32
    %250 = vector.broadcast %c57_i32_118 : i32 to vector<16x128xi32>
    %251 = arith.cmpi sge, %0, %250 : vector<16x128xi32>
    %c1_i32_119 = arith.constant 1 : i32
    %252 = tpu.dynamic_rotate %249 by %c1_i32_119 dim 0 : vector<16x128xf32>, i32 -> vector<16x128xf32>
    %253 = arith.select %251, %249, %252 : vector<16x128xi1>, vector<16x128xf32>
    %c14 = arith.constant 14 : index
    %c0_120 = arith.constant 0 : index
    %c0_121 = arith.constant 0 : index
    %254 = vector.load %arg1[%c14, %c0_120, %c0_121] : memref<45x16x128xf32, #tpu.memory_space<vmem>>, vector<1x16x128xf32>
    %255 = vector.shape_cast %254 : vector<1x16x128xf32> to vector<16x128xf32>
    %256 = arith.mulf %253, %255 : vector<16x128xf32>
    %257 = arith.addf %227, %256 : vector<16x128xf32>
    %c15_i32_122 = arith.constant 15 : i32
    %258 = tpu.dynamic_rotate %249 by %c15_i32_122 dim 0 : vector<16x128xf32>, i32 -> vector<16x128xf32>
    %259 = arith.select %251, %258, %249 : vector<16x128xi1>, vector<16x128xf32>
    %c44 = arith.constant 44 : index
    %c0_123 = arith.constant 0 : index
    %c0_124 = arith.constant 0 : index
    %260 = vector.load %arg1[%c44, %c0_123, %c0_124] : memref<45x16x128xf32, #tpu.memory_space<vmem>>, vector<1x16x128xf32>
    %261 = vector.shape_cast %260 : vector<1x16x128xf32> to vector<16x128xf32>
    %262 = arith.mulf %259, %261 : vector<16x128xf32>
    %263 = arith.addf %233, %262 : vector<16x128xf32>
    %c7_i32 = arith.constant 7 : i32
    %264 = tpu.dynamic_rotate %3 by %c7_i32 dim 1 : vector<16x128xf32>, i32 -> vector<16x128xf32>
    %c15 = arith.constant 15 : index
    %c0_125 = arith.constant 0 : index
    %c0_126 = arith.constant 0 : index
    %265 = vector.load %arg1[%c15, %c0_125, %c0_126] : memref<45x16x128xf32, #tpu.memory_space<vmem>>, vector<1x16x128xf32>
    %266 = vector.shape_cast %265 : vector<1x16x128xf32> to vector<16x128xf32>
    %267 = arith.mulf %264, %266 : vector<16x128xf32>
    %268 = arith.addf %242, %267 : vector<16x128xf32>
    %c6_i32 = arith.constant 6 : i32
    %269 = tpu.dynamic_rotate %3 by %c6_i32 dim 1 : vector<16x128xf32>, i32 -> vector<16x128xf32>
    %c16 = arith.constant 16 : index
    %c0_127 = arith.constant 0 : index
    %c0_128 = arith.constant 0 : index
    %270 = vector.load %arg1[%c16, %c0_127, %c0_128] : memref<45x16x128xf32, #tpu.memory_space<vmem>>, vector<1x16x128xf32>
    %271 = vector.shape_cast %270 : vector<1x16x128xf32> to vector<16x128xf32>
    %272 = arith.mulf %269, %271 : vector<16x128xf32>
    %273 = arith.addf %248, %272 : vector<16x128xf32>
    %c5_i32 = arith.constant 5 : i32
    %274 = tpu.dynamic_rotate %3 by %c5_i32 dim 1 : vector<16x128xf32>, i32 -> vector<16x128xf32>
    %c17 = arith.constant 17 : index
    %c0_129 = arith.constant 0 : index
    %c0_130 = arith.constant 0 : index
    %275 = vector.load %arg1[%c17, %c0_129, %c0_130] : memref<45x16x128xf32, #tpu.memory_space<vmem>>, vector<1x16x128xf32>
    %276 = vector.shape_cast %275 : vector<1x16x128xf32> to vector<16x128xf32>
    %277 = arith.mulf %274, %276 : vector<16x128xf32>
    %278 = arith.addf %257, %277 : vector<16x128xf32>
    %c4_i32 = arith.constant 4 : i32
    %279 = tpu.dynamic_rotate %3 by %c4_i32 dim 1 : vector<16x128xf32>, i32 -> vector<16x128xf32>
    %c18 = arith.constant 18 : index
    %c0_131 = arith.constant 0 : index
    %c0_132 = arith.constant 0 : index
    %280 = vector.load %arg1[%c18, %c0_131, %c0_132] : memref<45x16x128xf32, #tpu.memory_space<vmem>>, vector<1x16x128xf32>
    %281 = vector.shape_cast %280 : vector<1x16x128xf32> to vector<16x128xf32>
    %282 = arith.mulf %279, %281 : vector<16x128xf32>
    %283 = arith.addf %263, %282 : vector<16x128xf32>
    %c3_i32 = arith.constant 3 : i32
    %284 = tpu.dynamic_rotate %3 by %c3_i32 dim 1 : vector<16x128xf32>, i32 -> vector<16x128xf32>
    %c19 = arith.constant 19 : index
    %c0_133 = arith.constant 0 : index
    %c0_134 = arith.constant 0 : index
    %285 = vector.load %arg1[%c19, %c0_133, %c0_134] : memref<45x16x128xf32, #tpu.memory_space<vmem>>, vector<1x16x128xf32>
    %286 = vector.shape_cast %285 : vector<1x16x128xf32> to vector<16x128xf32>
    %287 = arith.mulf %284, %286 : vector<16x128xf32>
    %288 = arith.addf %268, %287 : vector<16x128xf32>
    %c2_i32 = arith.constant 2 : i32
    %289 = tpu.dynamic_rotate %3 by %c2_i32 dim 1 : vector<16x128xf32>, i32 -> vector<16x128xf32>
    %c20 = arith.constant 20 : index
    %c0_135 = arith.constant 0 : index
    %c0_136 = arith.constant 0 : index
    %290 = vector.load %arg1[%c20, %c0_135, %c0_136] : memref<45x16x128xf32, #tpu.memory_space<vmem>>, vector<1x16x128xf32>
    %291 = vector.shape_cast %290 : vector<1x16x128xf32> to vector<16x128xf32>
    %292 = arith.mulf %289, %291 : vector<16x128xf32>
    %293 = arith.addf %273, %292 : vector<16x128xf32>
    %c1_i32_137 = arith.constant 1 : i32
    %294 = tpu.dynamic_rotate %3 by %c1_i32_137 dim 1 : vector<16x128xf32>, i32 -> vector<16x128xf32>
    %c21 = arith.constant 21 : index
    %c0_138 = arith.constant 0 : index
    %c0_139 = arith.constant 0 : index
    %295 = vector.load %arg1[%c21, %c0_138, %c0_139] : memref<45x16x128xf32, #tpu.memory_space<vmem>>, vector<1x16x128xf32>
    %296 = vector.shape_cast %295 : vector<1x16x128xf32> to vector<16x128xf32>
    %297 = arith.mulf %294, %296 : vector<16x128xf32>
    %298 = arith.addf %278, %297 : vector<16x128xf32>
    %299 = arith.addf %298, %283 : vector<16x128xf32>
    %300 = arith.addf %288, %293 : vector<16x128xf32>
    %301 = arith.addf %299, %300 : vector<16x128xf32>
    %c0_140 = arith.constant 0 : index
    %c0_141 = arith.constant 0 : index
    %302 = vector.load %arg5[%c0_140, %c0_141] : memref<2x4xf32, #tpu.memory_space<vmem>>, vector<2x4xf32>
    %cst = arith.constant dense<0.000000e+00> : vector<16x4xf32>
    %303 = tpu.matmul %301, %1, %cst {dimension_numbers = #tpu.dot_dimension_numbers<[1], [0], [0], [1], [0, 0, 1, 1], [], []>} : vector<16x128xf32>, vector<128x4xf32>, vector<16x4xf32> -> vector<16x4xf32>
    %cst_142 = arith.constant dense<0.000000e+00> : vector<4xf32>
    %304 = vector.multi_reduction <add>, %303, %cst_142 [0] : vector<16x4xf32> to vector<4xf32>
    %305 = vector.shape_cast %304 : vector<4xf32> to vector<1x4xf32>
    %cst_143 = arith.constant 0.001953125 : f32
    %306 = vector.broadcast %cst_143 : f32 to vector<1x4xf32>
    %307 = arith.mulf %305, %306 : vector<1x4xf32>
    %cst_144 = arith.constant dense<0.000000e+00> : vector<1x128xf32>
    %308 = tpu.matmul %307, %2, %cst_144 {dimension_numbers = #tpu.dot_dimension_numbers<[1], [0], [0], [1], [0, 0, 1, 1], [], []>} : vector<1x4xf32>, vector<4x128xf32>, vector<1x128xf32> -> vector<1x128xf32>
    %309 = vector.broadcast %308 : vector<1x128xf32> to vector<16x128xf32>
    %310 = arith.subf %301, %309 : vector<16x128xf32>
    %311 = arith.mulf %310, %310 : vector<16x128xf32>
    %cst_145 = arith.constant dense<0.000000e+00> : vector<16x4xf32>
    %312 = tpu.matmul %311, %1, %cst_145 {dimension_numbers = #tpu.dot_dimension_numbers<[1], [0], [0], [1], [0, 0, 1, 1], [], []>} : vector<16x128xf32>, vector<128x4xf32>, vector<16x4xf32> -> vector<16x4xf32>
    %cst_146 = arith.constant dense<0.000000e+00> : vector<4xf32>
    %313 = vector.multi_reduction <add>, %312, %cst_146 [0] : vector<16x4xf32> to vector<4xf32>
    %314 = vector.shape_cast %313 : vector<4xf32> to vector<1x4xf32>
    %cst_147 = arith.constant 0.001953125 : f32
    %315 = vector.broadcast %cst_147 : f32 to vector<1x4xf32>
    %316 = arith.mulf %314, %315 : vector<1x4xf32>
    %317 = vector.extract_strided_slice %302 {offsets = [0, 0], sizes = [1, 4], strides = [1, 1]} : vector<2x4xf32> to vector<1x4xf32>
    %cst_148 = arith.constant 9.99999974E-6 : f32
    %318 = vector.broadcast %cst_148 : f32 to vector<1x4xf32>
    %319 = arith.addf %316, %318 : vector<1x4xf32>
    %320 = math.rsqrt %319 : vector<1x4xf32>
    %321 = arith.mulf %317, %320 : vector<1x4xf32>
    %322 = vector.extract_strided_slice %302 {offsets = [1, 0], sizes = [1, 4], strides = [1, 1]} : vector<2x4xf32> to vector<1x4xf32>
    %323 = tpu.concatenate %321, %322 in 0 : vector<1x4xf32>, vector<1x4xf32> -> vector<2x4xf32>
    %cst_149 = arith.constant dense<0.000000e+00> : vector<2x128xf32>
    %324 = tpu.matmul %323, %2, %cst_149 {dimension_numbers = #tpu.dot_dimension_numbers<[1], [0], [0], [1], [0, 0, 1, 1], [], []>} : vector<2x4xf32>, vector<4x128xf32>, vector<2x128xf32> -> vector<2x128xf32>
    %325 = vector.extract_strided_slice %324 {offsets = [0, 0], sizes = [1, 128], strides = [1, 1]} : vector<2x128xf32> to vector<1x128xf32>
    %326 = vector.broadcast %325 : vector<1x128xf32> to vector<16x128xf32>
    %327 = arith.mulf %310, %326 : vector<16x128xf32>
    %328 = vector.extract_strided_slice %324 {offsets = [1, 0], sizes = [1, 128], strides = [1, 1]} : vector<2x128xf32> to vector<1x128xf32>
    %329 = vector.broadcast %328 : vector<1x128xf32> to vector<16x128xf32>
    %330 = arith.addf %327, %329 : vector<16x128xf32>
    %cst_150 = arith.constant 0.000000e+00 : f32
    %331 = vector.broadcast %cst_150 : f32 to vector<16x128xf32>
    %332 = arith.cmpf ogt, %330, %331 : vector<16x128xf32>
    %cst_151 = arith.constant 0.00999999977 : f32
    %333 = vector.broadcast %cst_151 : f32 to vector<16x128xf32>
    %334 = arith.mulf %333, %330 : vector<16x128xf32>
    %335 = arith.select %332, %330, %334 : vector<16x128xi1>, vector<16x128xf32>
    %c22_152 = arith.constant 22 : index
    %c0_153 = arith.constant 0 : index
    %c0_154 = arith.constant 0 : index
    %336 = vector.load %arg2[%c22_152, %c0_153, %c0_154] : memref<45x16x128xf32, #tpu.memory_space<vmem>>, vector<1x16x128xf32>
    %337 = vector.shape_cast %336 : vector<1x16x128xf32> to vector<16x128xf32>
    %338 = arith.mulf %335, %337 : vector<16x128xf32>
    %c127_i32_155 = arith.constant 127 : i32
    %339 = tpu.dynamic_rotate %335 by %c127_i32_155 dim 1 : vector<16x128xf32>, i32 -> vector<16x128xf32>
    %c23_156 = arith.constant 23 : index
    %c0_157 = arith.constant 0 : index
    %c0_158 = arith.constant 0 : index
    %340 = vector.load %arg2[%c23_156, %c0_157, %c0_158] : memref<45x16x128xf32, #tpu.memory_space<vmem>>, vector<1x16x128xf32>
    %341 = vector.shape_cast %340 : vector<1x16x128xf32> to vector<16x128xf32>
    %342 = arith.mulf %339, %341 : vector<16x128xf32>
    %c126_i32_159 = arith.constant 126 : i32
    %343 = tpu.dynamic_rotate %335 by %c126_i32_159 dim 1 : vector<16x128xf32>, i32 -> vector<16x128xf32>
    %c24_160 = arith.constant 24 : index
    %c0_161 = arith.constant 0 : index
    %c0_162 = arith.constant 0 : index
    %344 = vector.load %arg2[%c24_160, %c0_161, %c0_162] : memref<45x16x128xf32, #tpu.memory_space<vmem>>, vector<1x16x128xf32>
    %345 = vector.shape_cast %344 : vector<1x16x128xf32> to vector<16x128xf32>
    %346 = arith.mulf %343, %345 : vector<16x128xf32>
    %c125_i32_163 = arith.constant 125 : i32
    %347 = tpu.dynamic_rotate %335 by %c125_i32_163 dim 1 : vector<16x128xf32>, i32 -> vector<16x128xf32>
    %c25_164 = arith.constant 25 : index
    %c0_165 = arith.constant 0 : index
    %c0_166 = arith.constant 0 : index
    %348 = vector.load %arg2[%c25_164, %c0_165, %c0_166] : memref<45x16x128xf32, #tpu.memory_space<vmem>>, vector<1x16x128xf32>
    %349 = vector.shape_cast %348 : vector<1x16x128xf32> to vector<16x128xf32>
    %350 = arith.mulf %347, %349 : vector<16x128xf32>
    %c124_i32_167 = arith.constant 124 : i32
    %351 = tpu.dynamic_rotate %335 by %c124_i32_167 dim 1 : vector<16x128xf32>, i32 -> vector<16x128xf32>
    %c26_168 = arith.constant 26 : index
    %c0_169 = arith.constant 0 : index
    %c0_170 = arith.constant 0 : index
    %352 = vector.load %arg2[%c26_168, %c0_169, %c0_170] : memref<45x16x128xf32, #tpu.memory_space<vmem>>, vector<1x16x128xf32>
    %353 = vector.shape_cast %352 : vector<1x16x128xf32> to vector<16x128xf32>
    %354 = arith.mulf %351, %353 : vector<16x128xf32>
    %355 = arith.addf %338, %354 : vector<16x128xf32>
    %c123_i32_171 = arith.constant 123 : i32
    %356 = tpu.dynamic_rotate %335 by %c123_i32_171 dim 1 : vector<16x128xf32>, i32 -> vector<16x128xf32>
    %c27_172 = arith.constant 27 : index
    %c0_173 = arith.constant 0 : index
    %c0_174 = arith.constant 0 : index
    %357 = vector.load %arg2[%c27_172, %c0_173, %c0_174] : memref<45x16x128xf32, #tpu.memory_space<vmem>>, vector<1x16x128xf32>
    %358 = vector.shape_cast %357 : vector<1x16x128xf32> to vector<16x128xf32>
    %359 = arith.mulf %356, %358 : vector<16x128xf32>
    %360 = arith.addf %342, %359 : vector<16x128xf32>
    %c122_i32_175 = arith.constant 122 : i32
    %361 = tpu.dynamic_rotate %335 by %c122_i32_175 dim 1 : vector<16x128xf32>, i32 -> vector<16x128xf32>
    %c28_176 = arith.constant 28 : index
    %c0_177 = arith.constant 0 : index
    %c0_178 = arith.constant 0 : index
    %362 = vector.load %arg2[%c28_176, %c0_177, %c0_178] : memref<45x16x128xf32, #tpu.memory_space<vmem>>, vector<1x16x128xf32>
    %363 = vector.shape_cast %362 : vector<1x16x128xf32> to vector<16x128xf32>
    %364 = arith.mulf %361, %363 : vector<16x128xf32>
    %365 = arith.addf %346, %364 : vector<16x128xf32>
    %c121_i32_179 = arith.constant 121 : i32
    %366 = tpu.dynamic_rotate %335 by %c121_i32_179 dim 1 : vector<16x128xf32>, i32 -> vector<16x128xf32>
    %c29_180 = arith.constant 29 : index
    %c0_181 = arith.constant 0 : index
    %c0_182 = arith.constant 0 : index
    %367 = vector.load %arg2[%c29_180, %c0_181, %c0_182] : memref<45x16x128xf32, #tpu.memory_space<vmem>>, vector<1x16x128xf32>
    %368 = vector.shape_cast %367 : vector<1x16x128xf32> to vector<16x128xf32>
    %369 = arith.mulf %366, %368 : vector<16x128xf32>
    %370 = arith.addf %350, %369 : vector<16x128xf32>
    %c71_i32_183 = arith.constant 71 : i32
    %371 = tpu.dynamic_rotate %335 by %c71_i32_183 dim 1 : vector<16x128xf32>, i32 -> vector<16x128xf32>
    %c71_i32_184 = arith.constant 71 : i32
    %372 = vector.broadcast %c71_i32_184 : i32 to vector<16x128xi32>
    %373 = arith.cmpi sge, %0, %372 : vector<16x128xi32>
    %c1_i32_185 = arith.constant 1 : i32
    %374 = tpu.dynamic_rotate %371 by %c1_i32_185 dim 0 : vector<16x128xf32>, i32 -> vector<16x128xf32>
    %375 = arith.select %373, %371, %374 : vector<16x128xi1>, vector<16x128xf32>
    %c0_186 = arith.constant 0 : index
    %c0_187 = arith.constant 0 : index
    %c0_188 = arith.constant 0 : index
    %376 = vector.load %arg2[%c0_186, %c0_187, %c0_188] : memref<45x16x128xf32, #tpu.memory_space<vmem>>, vector<1x16x128xf32>
    %377 = vector.shape_cast %376 : vector<1x16x128xf32> to vector<16x128xf32>
    %378 = arith.mulf %375, %377 : vector<16x128xf32>
    %379 = arith.addf %355, %378 : vector<16x128xf32>
    %c15_i32_189 = arith.constant 15 : i32
    %380 = tpu.dynamic_rotate %371 by %c15_i32_189 dim 0 : vector<16x128xf32>, i32 -> vector<16x128xf32>
    %381 = arith.select %373, %380, %371 : vector<16x128xi1>, vector<16x128xf32>
    %c30_190 = arith.constant 30 : index
    %c0_191 = arith.constant 0 : index
    %c0_192 = arith.constant 0 : index
    %382 = vector.load %arg2[%c30_190, %c0_191, %c0_192] : memref<45x16x128xf32, #tpu.memory_space<vmem>>, vector<1x16x128xf32>
    %383 = vector.shape_cast %382 : vector<1x16x128xf32> to vector<16x128xf32>
    %384 = arith.mulf %381, %383 : vector<16x128xf32>
    %385 = arith.addf %360, %384 : vector<16x128xf32>
    %c70_i32_193 = arith.constant 70 : i32
    %386 = tpu.dynamic_rotate %335 by %c70_i32_193 dim 1 : vector<16x128xf32>, i32 -> vector<16x128xf32>
    %c70_i32_194 = arith.constant 70 : i32
    %387 = vector.broadcast %c70_i32_194 : i32 to vector<16x128xi32>
    %388 = arith.cmpi sge, %0, %387 : vector<16x128xi32>
    %c1_i32_195 = arith.constant 1 : i32
    %389 = tpu.dynamic_rotate %386 by %c1_i32_195 dim 0 : vector<16x128xf32>, i32 -> vector<16x128xf32>
    %390 = arith.select %388, %386, %389 : vector<16x128xi1>, vector<16x128xf32>
    %c1_196 = arith.constant 1 : index
    %c0_197 = arith.constant 0 : index
    %c0_198 = arith.constant 0 : index
    %391 = vector.load %arg2[%c1_196, %c0_197, %c0_198] : memref<45x16x128xf32, #tpu.memory_space<vmem>>, vector<1x16x128xf32>
    %392 = vector.shape_cast %391 : vector<1x16x128xf32> to vector<16x128xf32>
    %393 = arith.mulf %390, %392 : vector<16x128xf32>
    %394 = arith.addf %365, %393 : vector<16x128xf32>
    %c15_i32_199 = arith.constant 15 : i32
    %395 = tpu.dynamic_rotate %386 by %c15_i32_199 dim 0 : vector<16x128xf32>, i32 -> vector<16x128xf32>
    %396 = arith.select %388, %395, %386 : vector<16x128xi1>, vector<16x128xf32>
    %c31_200 = arith.constant 31 : index
    %c0_201 = arith.constant 0 : index
    %c0_202 = arith.constant 0 : index
    %397 = vector.load %arg2[%c31_200, %c0_201, %c0_202] : memref<45x16x128xf32, #tpu.memory_space<vmem>>, vector<1x16x128xf32>
    %398 = vector.shape_cast %397 : vector<1x16x128xf32> to vector<16x128xf32>
    %399 = arith.mulf %396, %398 : vector<16x128xf32>
    %400 = arith.addf %370, %399 : vector<16x128xf32>
    %c69_i32_203 = arith.constant 69 : i32
    %401 = tpu.dynamic_rotate %335 by %c69_i32_203 dim 1 : vector<16x128xf32>, i32 -> vector<16x128xf32>
    %c69_i32_204 = arith.constant 69 : i32
    %402 = vector.broadcast %c69_i32_204 : i32 to vector<16x128xi32>
    %403 = arith.cmpi sge, %0, %402 : vector<16x128xi32>
    %c1_i32_205 = arith.constant 1 : i32
    %404 = tpu.dynamic_rotate %401 by %c1_i32_205 dim 0 : vector<16x128xf32>, i32 -> vector<16x128xf32>
    %405 = arith.select %403, %401, %404 : vector<16x128xi1>, vector<16x128xf32>
    %c2_206 = arith.constant 2 : index
    %c0_207 = arith.constant 0 : index
    %c0_208 = arith.constant 0 : index
    %406 = vector.load %arg2[%c2_206, %c0_207, %c0_208] : memref<45x16x128xf32, #tpu.memory_space<vmem>>, vector<1x16x128xf32>
    %407 = vector.shape_cast %406 : vector<1x16x128xf32> to vector<16x128xf32>
    %408 = arith.mulf %405, %407 : vector<16x128xf32>
    %409 = arith.addf %379, %408 : vector<16x128xf32>
    %c15_i32_209 = arith.constant 15 : i32
    %410 = tpu.dynamic_rotate %401 by %c15_i32_209 dim 0 : vector<16x128xf32>, i32 -> vector<16x128xf32>
    %411 = arith.select %403, %410, %401 : vector<16x128xi1>, vector<16x128xf32>
    %c32_210 = arith.constant 32 : index
    %c0_211 = arith.constant 0 : index
    %c0_212 = arith.constant 0 : index
    %412 = vector.load %arg2[%c32_210, %c0_211, %c0_212] : memref<45x16x128xf32, #tpu.memory_space<vmem>>, vector<1x16x128xf32>
    %413 = vector.shape_cast %412 : vector<1x16x128xf32> to vector<16x128xf32>
    %414 = arith.mulf %411, %413 : vector<16x128xf32>
    %415 = arith.addf %385, %414 : vector<16x128xf32>
    %c68_i32_213 = arith.constant 68 : i32
    %416 = tpu.dynamic_rotate %335 by %c68_i32_213 dim 1 : vector<16x128xf32>, i32 -> vector<16x128xf32>
    %c68_i32_214 = arith.constant 68 : i32
    %417 = vector.broadcast %c68_i32_214 : i32 to vector<16x128xi32>
    %418 = arith.cmpi sge, %0, %417 : vector<16x128xi32>
    %c1_i32_215 = arith.constant 1 : i32
    %419 = tpu.dynamic_rotate %416 by %c1_i32_215 dim 0 : vector<16x128xf32>, i32 -> vector<16x128xf32>
    %420 = arith.select %418, %416, %419 : vector<16x128xi1>, vector<16x128xf32>
    %c3_216 = arith.constant 3 : index
    %c0_217 = arith.constant 0 : index
    %c0_218 = arith.constant 0 : index
    %421 = vector.load %arg2[%c3_216, %c0_217, %c0_218] : memref<45x16x128xf32, #tpu.memory_space<vmem>>, vector<1x16x128xf32>
    %422 = vector.shape_cast %421 : vector<1x16x128xf32> to vector<16x128xf32>
    %423 = arith.mulf %420, %422 : vector<16x128xf32>
    %424 = arith.addf %394, %423 : vector<16x128xf32>
    %c15_i32_219 = arith.constant 15 : i32
    %425 = tpu.dynamic_rotate %416 by %c15_i32_219 dim 0 : vector<16x128xf32>, i32 -> vector<16x128xf32>
    %426 = arith.select %418, %425, %416 : vector<16x128xi1>, vector<16x128xf32>
    %c33_220 = arith.constant 33 : index
    %c0_221 = arith.constant 0 : index
    %c0_222 = arith.constant 0 : index
    %427 = vector.load %arg2[%c33_220, %c0_221, %c0_222] : memref<45x16x128xf32, #tpu.memory_space<vmem>>, vector<1x16x128xf32>
    %428 = vector.shape_cast %427 : vector<1x16x128xf32> to vector<16x128xf32>
    %429 = arith.mulf %426, %428 : vector<16x128xf32>
    %430 = arith.addf %400, %429 : vector<16x128xf32>
    %c67_i32_223 = arith.constant 67 : i32
    %431 = tpu.dynamic_rotate %335 by %c67_i32_223 dim 1 : vector<16x128xf32>, i32 -> vector<16x128xf32>
    %c67_i32_224 = arith.constant 67 : i32
    %432 = vector.broadcast %c67_i32_224 : i32 to vector<16x128xi32>
    %433 = arith.cmpi sge, %0, %432 : vector<16x128xi32>
    %c1_i32_225 = arith.constant 1 : i32
    %434 = tpu.dynamic_rotate %431 by %c1_i32_225 dim 0 : vector<16x128xf32>, i32 -> vector<16x128xf32>
    %435 = arith.select %433, %431, %434 : vector<16x128xi1>, vector<16x128xf32>
    %c4_226 = arith.constant 4 : index
    %c0_227 = arith.constant 0 : index
    %c0_228 = arith.constant 0 : index
    %436 = vector.load %arg2[%c4_226, %c0_227, %c0_228] : memref<45x16x128xf32, #tpu.memory_space<vmem>>, vector<1x16x128xf32>
    %437 = vector.shape_cast %436 : vector<1x16x128xf32> to vector<16x128xf32>
    %438 = arith.mulf %435, %437 : vector<16x128xf32>
    %439 = arith.addf %409, %438 : vector<16x128xf32>
    %c15_i32_229 = arith.constant 15 : i32
    %440 = tpu.dynamic_rotate %431 by %c15_i32_229 dim 0 : vector<16x128xf32>, i32 -> vector<16x128xf32>
    %441 = arith.select %433, %440, %431 : vector<16x128xi1>, vector<16x128xf32>
    %c34_230 = arith.constant 34 : index
    %c0_231 = arith.constant 0 : index
    %c0_232 = arith.constant 0 : index
    %442 = vector.load %arg2[%c34_230, %c0_231, %c0_232] : memref<45x16x128xf32, #tpu.memory_space<vmem>>, vector<1x16x128xf32>
    %443 = vector.shape_cast %442 : vector<1x16x128xf32> to vector<16x128xf32>
    %444 = arith.mulf %441, %443 : vector<16x128xf32>
    %445 = arith.addf %415, %444 : vector<16x128xf32>
    %c66_i32_233 = arith.constant 66 : i32
    %446 = tpu.dynamic_rotate %335 by %c66_i32_233 dim 1 : vector<16x128xf32>, i32 -> vector<16x128xf32>
    %c66_i32_234 = arith.constant 66 : i32
    %447 = vector.broadcast %c66_i32_234 : i32 to vector<16x128xi32>
    %448 = arith.cmpi sge, %0, %447 : vector<16x128xi32>
    %c1_i32_235 = arith.constant 1 : i32
    %449 = tpu.dynamic_rotate %446 by %c1_i32_235 dim 0 : vector<16x128xf32>, i32 -> vector<16x128xf32>
    %450 = arith.select %448, %446, %449 : vector<16x128xi1>, vector<16x128xf32>
    %c5_236 = arith.constant 5 : index
    %c0_237 = arith.constant 0 : index
    %c0_238 = arith.constant 0 : index
    %451 = vector.load %arg2[%c5_236, %c0_237, %c0_238] : memref<45x16x128xf32, #tpu.memory_space<vmem>>, vector<1x16x128xf32>
    %452 = vector.shape_cast %451 : vector<1x16x128xf32> to vector<16x128xf32>
    %453 = arith.mulf %450, %452 : vector<16x128xf32>
    %454 = arith.addf %424, %453 : vector<16x128xf32>
    %c15_i32_239 = arith.constant 15 : i32
    %455 = tpu.dynamic_rotate %446 by %c15_i32_239 dim 0 : vector<16x128xf32>, i32 -> vector<16x128xf32>
    %456 = arith.select %448, %455, %446 : vector<16x128xi1>, vector<16x128xf32>
    %c35_240 = arith.constant 35 : index
    %c0_241 = arith.constant 0 : index
    %c0_242 = arith.constant 0 : index
    %457 = vector.load %arg2[%c35_240, %c0_241, %c0_242] : memref<45x16x128xf32, #tpu.memory_space<vmem>>, vector<1x16x128xf32>
    %458 = vector.shape_cast %457 : vector<1x16x128xf32> to vector<16x128xf32>
    %459 = arith.mulf %456, %458 : vector<16x128xf32>
    %460 = arith.addf %430, %459 : vector<16x128xf32>
    %c65_i32_243 = arith.constant 65 : i32
    %461 = tpu.dynamic_rotate %335 by %c65_i32_243 dim 1 : vector<16x128xf32>, i32 -> vector<16x128xf32>
    %c65_i32_244 = arith.constant 65 : i32
    %462 = vector.broadcast %c65_i32_244 : i32 to vector<16x128xi32>
    %463 = arith.cmpi sge, %0, %462 : vector<16x128xi32>
    %c1_i32_245 = arith.constant 1 : i32
    %464 = tpu.dynamic_rotate %461 by %c1_i32_245 dim 0 : vector<16x128xf32>, i32 -> vector<16x128xf32>
    %465 = arith.select %463, %461, %464 : vector<16x128xi1>, vector<16x128xf32>
    %c6_246 = arith.constant 6 : index
    %c0_247 = arith.constant 0 : index
    %c0_248 = arith.constant 0 : index
    %466 = vector.load %arg2[%c6_246, %c0_247, %c0_248] : memref<45x16x128xf32, #tpu.memory_space<vmem>>, vector<1x16x128xf32>
    %467 = vector.shape_cast %466 : vector<1x16x128xf32> to vector<16x128xf32>
    %468 = arith.mulf %465, %467 : vector<16x128xf32>
    %469 = arith.addf %439, %468 : vector<16x128xf32>
    %c15_i32_249 = arith.constant 15 : i32
    %470 = tpu.dynamic_rotate %461 by %c15_i32_249 dim 0 : vector<16x128xf32>, i32 -> vector<16x128xf32>
    %471 = arith.select %463, %470, %461 : vector<16x128xi1>, vector<16x128xf32>
    %c36_250 = arith.constant 36 : index
    %c0_251 = arith.constant 0 : index
    %c0_252 = arith.constant 0 : index
    %472 = vector.load %arg2[%c36_250, %c0_251, %c0_252] : memref<45x16x128xf32, #tpu.memory_space<vmem>>, vector<1x16x128xf32>
    %473 = vector.shape_cast %472 : vector<1x16x128xf32> to vector<16x128xf32>
    %474 = arith.mulf %471, %473 : vector<16x128xf32>
    %475 = arith.addf %445, %474 : vector<16x128xf32>
    %c64_i32_253 = arith.constant 64 : i32
    %476 = tpu.dynamic_rotate %335 by %c64_i32_253 dim 1 : vector<16x128xf32>, i32 -> vector<16x128xf32>
    %c64_i32_254 = arith.constant 64 : i32
    %477 = vector.broadcast %c64_i32_254 : i32 to vector<16x128xi32>
    %478 = arith.cmpi sge, %0, %477 : vector<16x128xi32>
    %c1_i32_255 = arith.constant 1 : i32
    %479 = tpu.dynamic_rotate %476 by %c1_i32_255 dim 0 : vector<16x128xf32>, i32 -> vector<16x128xf32>
    %480 = arith.select %478, %476, %479 : vector<16x128xi1>, vector<16x128xf32>
    %c7_256 = arith.constant 7 : index
    %c0_257 = arith.constant 0 : index
    %c0_258 = arith.constant 0 : index
    %481 = vector.load %arg2[%c7_256, %c0_257, %c0_258] : memref<45x16x128xf32, #tpu.memory_space<vmem>>, vector<1x16x128xf32>
    %482 = vector.shape_cast %481 : vector<1x16x128xf32> to vector<16x128xf32>
    %483 = arith.mulf %480, %482 : vector<16x128xf32>
    %484 = arith.addf %454, %483 : vector<16x128xf32>
    %c15_i32_259 = arith.constant 15 : i32
    %485 = tpu.dynamic_rotate %476 by %c15_i32_259 dim 0 : vector<16x128xf32>, i32 -> vector<16x128xf32>
    %486 = arith.select %478, %485, %476 : vector<16x128xi1>, vector<16x128xf32>
    %c37_260 = arith.constant 37 : index
    %c0_261 = arith.constant 0 : index
    %c0_262 = arith.constant 0 : index
    %487 = vector.load %arg2[%c37_260, %c0_261, %c0_262] : memref<45x16x128xf32, #tpu.memory_space<vmem>>, vector<1x16x128xf32>
    %488 = vector.shape_cast %487 : vector<1x16x128xf32> to vector<16x128xf32>
    %489 = arith.mulf %486, %488 : vector<16x128xf32>
    %490 = arith.addf %460, %489 : vector<16x128xf32>
    %c63_i32_263 = arith.constant 63 : i32
    %491 = tpu.dynamic_rotate %335 by %c63_i32_263 dim 1 : vector<16x128xf32>, i32 -> vector<16x128xf32>
    %c63_i32_264 = arith.constant 63 : i32
    %492 = vector.broadcast %c63_i32_264 : i32 to vector<16x128xi32>
    %493 = arith.cmpi sge, %0, %492 : vector<16x128xi32>
    %c1_i32_265 = arith.constant 1 : i32
    %494 = tpu.dynamic_rotate %491 by %c1_i32_265 dim 0 : vector<16x128xf32>, i32 -> vector<16x128xf32>
    %495 = arith.select %493, %491, %494 : vector<16x128xi1>, vector<16x128xf32>
    %c8_266 = arith.constant 8 : index
    %c0_267 = arith.constant 0 : index
    %c0_268 = arith.constant 0 : index
    %496 = vector.load %arg2[%c8_266, %c0_267, %c0_268] : memref<45x16x128xf32, #tpu.memory_space<vmem>>, vector<1x16x128xf32>
    %497 = vector.shape_cast %496 : vector<1x16x128xf32> to vector<16x128xf32>
    %498 = arith.mulf %495, %497 : vector<16x128xf32>
    %499 = arith.addf %469, %498 : vector<16x128xf32>
    %c15_i32_269 = arith.constant 15 : i32
    %500 = tpu.dynamic_rotate %491 by %c15_i32_269 dim 0 : vector<16x128xf32>, i32 -> vector<16x128xf32>
    %501 = arith.select %493, %500, %491 : vector<16x128xi1>, vector<16x128xf32>
    %c38_270 = arith.constant 38 : index
    %c0_271 = arith.constant 0 : index
    %c0_272 = arith.constant 0 : index
    %502 = vector.load %arg2[%c38_270, %c0_271, %c0_272] : memref<45x16x128xf32, #tpu.memory_space<vmem>>, vector<1x16x128xf32>
    %503 = vector.shape_cast %502 : vector<1x16x128xf32> to vector<16x128xf32>
    %504 = arith.mulf %501, %503 : vector<16x128xf32>
    %505 = arith.addf %475, %504 : vector<16x128xf32>
    %c62_i32_273 = arith.constant 62 : i32
    %506 = tpu.dynamic_rotate %335 by %c62_i32_273 dim 1 : vector<16x128xf32>, i32 -> vector<16x128xf32>
    %c62_i32_274 = arith.constant 62 : i32
    %507 = vector.broadcast %c62_i32_274 : i32 to vector<16x128xi32>
    %508 = arith.cmpi sge, %0, %507 : vector<16x128xi32>
    %c1_i32_275 = arith.constant 1 : i32
    %509 = tpu.dynamic_rotate %506 by %c1_i32_275 dim 0 : vector<16x128xf32>, i32 -> vector<16x128xf32>
    %510 = arith.select %508, %506, %509 : vector<16x128xi1>, vector<16x128xf32>
    %c9_276 = arith.constant 9 : index
    %c0_277 = arith.constant 0 : index
    %c0_278 = arith.constant 0 : index
    %511 = vector.load %arg2[%c9_276, %c0_277, %c0_278] : memref<45x16x128xf32, #tpu.memory_space<vmem>>, vector<1x16x128xf32>
    %512 = vector.shape_cast %511 : vector<1x16x128xf32> to vector<16x128xf32>
    %513 = arith.mulf %510, %512 : vector<16x128xf32>
    %514 = arith.addf %484, %513 : vector<16x128xf32>
    %c15_i32_279 = arith.constant 15 : i32
    %515 = tpu.dynamic_rotate %506 by %c15_i32_279 dim 0 : vector<16x128xf32>, i32 -> vector<16x128xf32>
    %516 = arith.select %508, %515, %506 : vector<16x128xi1>, vector<16x128xf32>
    %c39_280 = arith.constant 39 : index
    %c0_281 = arith.constant 0 : index
    %c0_282 = arith.constant 0 : index
    %517 = vector.load %arg2[%c39_280, %c0_281, %c0_282] : memref<45x16x128xf32, #tpu.memory_space<vmem>>, vector<1x16x128xf32>
    %518 = vector.shape_cast %517 : vector<1x16x128xf32> to vector<16x128xf32>
    %519 = arith.mulf %516, %518 : vector<16x128xf32>
    %520 = arith.addf %490, %519 : vector<16x128xf32>
    %c61_i32_283 = arith.constant 61 : i32
    %521 = tpu.dynamic_rotate %335 by %c61_i32_283 dim 1 : vector<16x128xf32>, i32 -> vector<16x128xf32>
    %c61_i32_284 = arith.constant 61 : i32
    %522 = vector.broadcast %c61_i32_284 : i32 to vector<16x128xi32>
    %523 = arith.cmpi sge, %0, %522 : vector<16x128xi32>
    %c1_i32_285 = arith.constant 1 : i32
    %524 = tpu.dynamic_rotate %521 by %c1_i32_285 dim 0 : vector<16x128xf32>, i32 -> vector<16x128xf32>
    %525 = arith.select %523, %521, %524 : vector<16x128xi1>, vector<16x128xf32>
    %c10_286 = arith.constant 10 : index
    %c0_287 = arith.constant 0 : index
    %c0_288 = arith.constant 0 : index
    %526 = vector.load %arg2[%c10_286, %c0_287, %c0_288] : memref<45x16x128xf32, #tpu.memory_space<vmem>>, vector<1x16x128xf32>
    %527 = vector.shape_cast %526 : vector<1x16x128xf32> to vector<16x128xf32>
    %528 = arith.mulf %525, %527 : vector<16x128xf32>
    %529 = arith.addf %499, %528 : vector<16x128xf32>
    %c15_i32_289 = arith.constant 15 : i32
    %530 = tpu.dynamic_rotate %521 by %c15_i32_289 dim 0 : vector<16x128xf32>, i32 -> vector<16x128xf32>
    %531 = arith.select %523, %530, %521 : vector<16x128xi1>, vector<16x128xf32>
    %c40_290 = arith.constant 40 : index
    %c0_291 = arith.constant 0 : index
    %c0_292 = arith.constant 0 : index
    %532 = vector.load %arg2[%c40_290, %c0_291, %c0_292] : memref<45x16x128xf32, #tpu.memory_space<vmem>>, vector<1x16x128xf32>
    %533 = vector.shape_cast %532 : vector<1x16x128xf32> to vector<16x128xf32>
    %534 = arith.mulf %531, %533 : vector<16x128xf32>
    %535 = arith.addf %505, %534 : vector<16x128xf32>
    %c60_i32_293 = arith.constant 60 : i32
    %536 = tpu.dynamic_rotate %335 by %c60_i32_293 dim 1 : vector<16x128xf32>, i32 -> vector<16x128xf32>
    %c60_i32_294 = arith.constant 60 : i32
    %537 = vector.broadcast %c60_i32_294 : i32 to vector<16x128xi32>
    %538 = arith.cmpi sge, %0, %537 : vector<16x128xi32>
    %c1_i32_295 = arith.constant 1 : i32
    %539 = tpu.dynamic_rotate %536 by %c1_i32_295 dim 0 : vector<16x128xf32>, i32 -> vector<16x128xf32>
    %540 = arith.select %538, %536, %539 : vector<16x128xi1>, vector<16x128xf32>
    %c11_296 = arith.constant 11 : index
    %c0_297 = arith.constant 0 : index
    %c0_298 = arith.constant 0 : index
    %541 = vector.load %arg2[%c11_296, %c0_297, %c0_298] : memref<45x16x128xf32, #tpu.memory_space<vmem>>, vector<1x16x128xf32>
    %542 = vector.shape_cast %541 : vector<1x16x128xf32> to vector<16x128xf32>
    %543 = arith.mulf %540, %542 : vector<16x128xf32>
    %544 = arith.addf %514, %543 : vector<16x128xf32>
    %c15_i32_299 = arith.constant 15 : i32
    %545 = tpu.dynamic_rotate %536 by %c15_i32_299 dim 0 : vector<16x128xf32>, i32 -> vector<16x128xf32>
    %546 = arith.select %538, %545, %536 : vector<16x128xi1>, vector<16x128xf32>
    %c41_300 = arith.constant 41 : index
    %c0_301 = arith.constant 0 : index
    %c0_302 = arith.constant 0 : index
    %547 = vector.load %arg2[%c41_300, %c0_301, %c0_302] : memref<45x16x128xf32, #tpu.memory_space<vmem>>, vector<1x16x128xf32>
    %548 = vector.shape_cast %547 : vector<1x16x128xf32> to vector<16x128xf32>
    %549 = arith.mulf %546, %548 : vector<16x128xf32>
    %550 = arith.addf %520, %549 : vector<16x128xf32>
    %c59_i32_303 = arith.constant 59 : i32
    %551 = tpu.dynamic_rotate %335 by %c59_i32_303 dim 1 : vector<16x128xf32>, i32 -> vector<16x128xf32>
    %c59_i32_304 = arith.constant 59 : i32
    %552 = vector.broadcast %c59_i32_304 : i32 to vector<16x128xi32>
    %553 = arith.cmpi sge, %0, %552 : vector<16x128xi32>
    %c1_i32_305 = arith.constant 1 : i32
    %554 = tpu.dynamic_rotate %551 by %c1_i32_305 dim 0 : vector<16x128xf32>, i32 -> vector<16x128xf32>
    %555 = arith.select %553, %551, %554 : vector<16x128xi1>, vector<16x128xf32>
    %c12_306 = arith.constant 12 : index
    %c0_307 = arith.constant 0 : index
    %c0_308 = arith.constant 0 : index
    %556 = vector.load %arg2[%c12_306, %c0_307, %c0_308] : memref<45x16x128xf32, #tpu.memory_space<vmem>>, vector<1x16x128xf32>
    %557 = vector.shape_cast %556 : vector<1x16x128xf32> to vector<16x128xf32>
    %558 = arith.mulf %555, %557 : vector<16x128xf32>
    %559 = arith.addf %529, %558 : vector<16x128xf32>
    %c15_i32_309 = arith.constant 15 : i32
    %560 = tpu.dynamic_rotate %551 by %c15_i32_309 dim 0 : vector<16x128xf32>, i32 -> vector<16x128xf32>
    %561 = arith.select %553, %560, %551 : vector<16x128xi1>, vector<16x128xf32>
    %c42_310 = arith.constant 42 : index
    %c0_311 = arith.constant 0 : index
    %c0_312 = arith.constant 0 : index
    %562 = vector.load %arg2[%c42_310, %c0_311, %c0_312] : memref<45x16x128xf32, #tpu.memory_space<vmem>>, vector<1x16x128xf32>
    %563 = vector.shape_cast %562 : vector<1x16x128xf32> to vector<16x128xf32>
    %564 = arith.mulf %561, %563 : vector<16x128xf32>
    %565 = arith.addf %535, %564 : vector<16x128xf32>
    %c58_i32_313 = arith.constant 58 : i32
    %566 = tpu.dynamic_rotate %335 by %c58_i32_313 dim 1 : vector<16x128xf32>, i32 -> vector<16x128xf32>
    %c58_i32_314 = arith.constant 58 : i32
    %567 = vector.broadcast %c58_i32_314 : i32 to vector<16x128xi32>
    %568 = arith.cmpi sge, %0, %567 : vector<16x128xi32>
    %c1_i32_315 = arith.constant 1 : i32
    %569 = tpu.dynamic_rotate %566 by %c1_i32_315 dim 0 : vector<16x128xf32>, i32 -> vector<16x128xf32>
    %570 = arith.select %568, %566, %569 : vector<16x128xi1>, vector<16x128xf32>
    %c13_316 = arith.constant 13 : index
    %c0_317 = arith.constant 0 : index
    %c0_318 = arith.constant 0 : index
    %571 = vector.load %arg2[%c13_316, %c0_317, %c0_318] : memref<45x16x128xf32, #tpu.memory_space<vmem>>, vector<1x16x128xf32>
    %572 = vector.shape_cast %571 : vector<1x16x128xf32> to vector<16x128xf32>
    %573 = arith.mulf %570, %572 : vector<16x128xf32>
    %574 = arith.addf %544, %573 : vector<16x128xf32>
    %c15_i32_319 = arith.constant 15 : i32
    %575 = tpu.dynamic_rotate %566 by %c15_i32_319 dim 0 : vector<16x128xf32>, i32 -> vector<16x128xf32>
    %576 = arith.select %568, %575, %566 : vector<16x128xi1>, vector<16x128xf32>
    %c43_320 = arith.constant 43 : index
    %c0_321 = arith.constant 0 : index
    %c0_322 = arith.constant 0 : index
    %577 = vector.load %arg2[%c43_320, %c0_321, %c0_322] : memref<45x16x128xf32, #tpu.memory_space<vmem>>, vector<1x16x128xf32>
    %578 = vector.shape_cast %577 : vector<1x16x128xf32> to vector<16x128xf32>
    %579 = arith.mulf %576, %578 : vector<16x128xf32>
    %580 = arith.addf %550, %579 : vector<16x128xf32>
    %c57_i32_323 = arith.constant 57 : i32
    %581 = tpu.dynamic_rotate %335 by %c57_i32_323 dim 1 : vector<16x128xf32>, i32 -> vector<16x128xf32>
    %c57_i32_324 = arith.constant 57 : i32
    %582 = vector.broadcast %c57_i32_324 : i32 to vector<16x128xi32>
    %583 = arith.cmpi sge, %0, %582 : vector<16x128xi32>
    %c1_i32_325 = arith.constant 1 : i32
    %584 = tpu.dynamic_rotate %581 by %c1_i32_325 dim 0 : vector<16x128xf32>, i32 -> vector<16x128xf32>
    %585 = arith.select %583, %581, %584 : vector<16x128xi1>, vector<16x128xf32>
    %c14_326 = arith.constant 14 : index
    %c0_327 = arith.constant 0 : index
    %c0_328 = arith.constant 0 : index
    %586 = vector.load %arg2[%c14_326, %c0_327, %c0_328] : memref<45x16x128xf32, #tpu.memory_space<vmem>>, vector<1x16x128xf32>
    %587 = vector.shape_cast %586 : vector<1x16x128xf32> to vector<16x128xf32>
    %588 = arith.mulf %585, %587 : vector<16x128xf32>
    %589 = arith.addf %559, %588 : vector<16x128xf32>
    %c15_i32_329 = arith.constant 15 : i32
    %590 = tpu.dynamic_rotate %581 by %c15_i32_329 dim 0 : vector<16x128xf32>, i32 -> vector<16x128xf32>
    %591 = arith.select %583, %590, %581 : vector<16x128xi1>, vector<16x128xf32>
    %c44_330 = arith.constant 44 : index
    %c0_331 = arith.constant 0 : index
    %c0_332 = arith.constant 0 : index
    %592 = vector.load %arg2[%c44_330, %c0_331, %c0_332] : memref<45x16x128xf32, #tpu.memory_space<vmem>>, vector<1x16x128xf32>
    %593 = vector.shape_cast %592 : vector<1x16x128xf32> to vector<16x128xf32>
    %594 = arith.mulf %591, %593 : vector<16x128xf32>
    %595 = arith.addf %565, %594 : vector<16x128xf32>
    %c7_i32_333 = arith.constant 7 : i32
    %596 = tpu.dynamic_rotate %335 by %c7_i32_333 dim 1 : vector<16x128xf32>, i32 -> vector<16x128xf32>
    %c15_334 = arith.constant 15 : index
    %c0_335 = arith.constant 0 : index
    %c0_336 = arith.constant 0 : index
    %597 = vector.load %arg2[%c15_334, %c0_335, %c0_336] : memref<45x16x128xf32, #tpu.memory_space<vmem>>, vector<1x16x128xf32>
    %598 = vector.shape_cast %597 : vector<1x16x128xf32> to vector<16x128xf32>
    %599 = arith.mulf %596, %598 : vector<16x128xf32>
    %600 = arith.addf %574, %599 : vector<16x128xf32>
    %c6_i32_337 = arith.constant 6 : i32
    %601 = tpu.dynamic_rotate %335 by %c6_i32_337 dim 1 : vector<16x128xf32>, i32 -> vector<16x128xf32>
    %c16_338 = arith.constant 16 : index
    %c0_339 = arith.constant 0 : index
    %c0_340 = arith.constant 0 : index
    %602 = vector.load %arg2[%c16_338, %c0_339, %c0_340] : memref<45x16x128xf32, #tpu.memory_space<vmem>>, vector<1x16x128xf32>
    %603 = vector.shape_cast %602 : vector<1x16x128xf32> to vector<16x128xf32>
    %604 = arith.mulf %601, %603 : vector<16x128xf32>
    %605 = arith.addf %580, %604 : vector<16x128xf32>
    %c5_i32_341 = arith.constant 5 : i32
    %606 = tpu.dynamic_rotate %335 by %c5_i32_341 dim 1 : vector<16x128xf32>, i32 -> vector<16x128xf32>
    %c17_342 = arith.constant 17 : index
    %c0_343 = arith.constant 0 : index
    %c0_344 = arith.constant 0 : index
    %607 = vector.load %arg2[%c17_342, %c0_343, %c0_344] : memref<45x16x128xf32, #tpu.memory_space<vmem>>, vector<1x16x128xf32>
    %608 = vector.shape_cast %607 : vector<1x16x128xf32> to vector<16x128xf32>
    %609 = arith.mulf %606, %608 : vector<16x128xf32>
    %610 = arith.addf %589, %609 : vector<16x128xf32>
    %c4_i32_345 = arith.constant 4 : i32
    %611 = tpu.dynamic_rotate %335 by %c4_i32_345 dim 1 : vector<16x128xf32>, i32 -> vector<16x128xf32>
    %c18_346 = arith.constant 18 : index
    %c0_347 = arith.constant 0 : index
    %c0_348 = arith.constant 0 : index
    %612 = vector.load %arg2[%c18_346, %c0_347, %c0_348] : memref<45x16x128xf32, #tpu.memory_space<vmem>>, vector<1x16x128xf32>
    %613 = vector.shape_cast %612 : vector<1x16x128xf32> to vector<16x128xf32>
    %614 = arith.mulf %611, %613 : vector<16x128xf32>
    %615 = arith.addf %595, %614 : vector<16x128xf32>
    %c3_i32_349 = arith.constant 3 : i32
    %616 = tpu.dynamic_rotate %335 by %c3_i32_349 dim 1 : vector<16x128xf32>, i32 -> vector<16x128xf32>
    %c19_350 = arith.constant 19 : index
    %c0_351 = arith.constant 0 : index
    %c0_352 = arith.constant 0 : index
    %617 = vector.load %arg2[%c19_350, %c0_351, %c0_352] : memref<45x16x128xf32, #tpu.memory_space<vmem>>, vector<1x16x128xf32>
    %618 = vector.shape_cast %617 : vector<1x16x128xf32> to vector<16x128xf32>
    %619 = arith.mulf %616, %618 : vector<16x128xf32>
    %620 = arith.addf %600, %619 : vector<16x128xf32>
    %c2_i32_353 = arith.constant 2 : i32
    %621 = tpu.dynamic_rotate %335 by %c2_i32_353 dim 1 : vector<16x128xf32>, i32 -> vector<16x128xf32>
    %c20_354 = arith.constant 20 : index
    %c0_355 = arith.constant 0 : index
    %c0_356 = arith.constant 0 : index
    %622 = vector.load %arg2[%c20_354, %c0_355, %c0_356] : memref<45x16x128xf32, #tpu.memory_space<vmem>>, vector<1x16x128xf32>
    %623 = vector.shape_cast %622 : vector<1x16x128xf32> to vector<16x128xf32>
    %624 = arith.mulf %621, %623 : vector<16x128xf32>
    %625 = arith.addf %605, %624 : vector<16x128xf32>
    %c1_i32_357 = arith.constant 1 : i32
    %626 = tpu.dynamic_rotate %335 by %c1_i32_357 dim 1 : vector<16x128xf32>, i32 -> vector<16x128xf32>
    %c21_358 = arith.constant 21 : index
    %c0_359 = arith.constant 0 : index
    %c0_360 = arith.constant 0 : index
    %627 = vector.load %arg2[%c21_358, %c0_359, %c0_360] : memref<45x16x128xf32, #tpu.memory_space<vmem>>, vector<1x16x128xf32>
    %628 = vector.shape_cast %627 : vector<1x16x128xf32> to vector<16x128xf32>
    %629 = arith.mulf %626, %628 : vector<16x128xf32>
    %630 = arith.addf %610, %629 : vector<16x128xf32>
    %631 = arith.addf %630, %615 : vector<16x128xf32>
    %632 = arith.addf %620, %625 : vector<16x128xf32>
    %633 = arith.addf %631, %632 : vector<16x128xf32>
    %c0_361 = arith.constant 0 : index
    %c0_362 = arith.constant 0 : index
    %634 = vector.load %arg6[%c0_361, %c0_362] : memref<2x4xf32, #tpu.memory_space<vmem>>, vector<2x4xf32>
    %cst_363 = arith.constant dense<0.000000e+00> : vector<16x4xf32>
    %635 = tpu.matmul %633, %1, %cst_363 {dimension_numbers = #tpu.dot_dimension_numbers<[1], [0], [0], [1], [0, 0, 1, 1], [], []>} : vector<16x128xf32>, vector<128x4xf32>, vector<16x4xf32> -> vector<16x4xf32>
    %cst_364 = arith.constant dense<0.000000e+00> : vector<4xf32>
    %636 = vector.multi_reduction <add>, %635, %cst_364 [0] : vector<16x4xf32> to vector<4xf32>
    %637 = vector.shape_cast %636 : vector<4xf32> to vector<1x4xf32>
    %cst_365 = arith.constant 0.001953125 : f32
    %638 = vector.broadcast %cst_365 : f32 to vector<1x4xf32>
    %639 = arith.mulf %637, %638 : vector<1x4xf32>
    %cst_366 = arith.constant dense<0.000000e+00> : vector<1x128xf32>
    %640 = tpu.matmul %639, %2, %cst_366 {dimension_numbers = #tpu.dot_dimension_numbers<[1], [0], [0], [1], [0, 0, 1, 1], [], []>} : vector<1x4xf32>, vector<4x128xf32>, vector<1x128xf32> -> vector<1x128xf32>
    %641 = vector.broadcast %640 : vector<1x128xf32> to vector<16x128xf32>
    %642 = arith.subf %633, %641 : vector<16x128xf32>
    %643 = arith.mulf %642, %642 : vector<16x128xf32>
    %cst_367 = arith.constant dense<0.000000e+00> : vector<16x4xf32>
    %644 = tpu.matmul %643, %1, %cst_367 {dimension_numbers = #tpu.dot_dimension_numbers<[1], [0], [0], [1], [0, 0, 1, 1], [], []>} : vector<16x128xf32>, vector<128x4xf32>, vector<16x4xf32> -> vector<16x4xf32>
    %cst_368 = arith.constant dense<0.000000e+00> : vector<4xf32>
    %645 = vector.multi_reduction <add>, %644, %cst_368 [0] : vector<16x4xf32> to vector<4xf32>
    %646 = vector.shape_cast %645 : vector<4xf32> to vector<1x4xf32>
    %cst_369 = arith.constant 0.001953125 : f32
    %647 = vector.broadcast %cst_369 : f32 to vector<1x4xf32>
    %648 = arith.mulf %646, %647 : vector<1x4xf32>
    %649 = vector.extract_strided_slice %634 {offsets = [0, 0], sizes = [1, 4], strides = [1, 1]} : vector<2x4xf32> to vector<1x4xf32>
    %cst_370 = arith.constant 9.99999974E-6 : f32
    %650 = vector.broadcast %cst_370 : f32 to vector<1x4xf32>
    %651 = arith.addf %648, %650 : vector<1x4xf32>
    %652 = math.rsqrt %651 : vector<1x4xf32>
    %653 = arith.mulf %649, %652 : vector<1x4xf32>
    %654 = vector.extract_strided_slice %634 {offsets = [1, 0], sizes = [1, 4], strides = [1, 1]} : vector<2x4xf32> to vector<1x4xf32>
    %655 = tpu.concatenate %653, %654 in 0 : vector<1x4xf32>, vector<1x4xf32> -> vector<2x4xf32>
    %cst_371 = arith.constant dense<0.000000e+00> : vector<2x128xf32>
    %656 = tpu.matmul %655, %2, %cst_371 {dimension_numbers = #tpu.dot_dimension_numbers<[1], [0], [0], [1], [0, 0, 1, 1], [], []>} : vector<2x4xf32>, vector<4x128xf32>, vector<2x128xf32> -> vector<2x128xf32>
    %657 = vector.extract_strided_slice %656 {offsets = [0, 0], sizes = [1, 128], strides = [1, 1]} : vector<2x128xf32> to vector<1x128xf32>
    %658 = vector.broadcast %657 : vector<1x128xf32> to vector<16x128xf32>
    %659 = arith.mulf %642, %658 : vector<16x128xf32>
    %660 = vector.extract_strided_slice %656 {offsets = [1, 0], sizes = [1, 128], strides = [1, 1]} : vector<2x128xf32> to vector<1x128xf32>
    %661 = vector.broadcast %660 : vector<1x128xf32> to vector<16x128xf32>
    %662 = arith.addf %659, %661 : vector<16x128xf32>
    %cst_372 = arith.constant 0.000000e+00 : f32
    %663 = vector.broadcast %cst_372 : f32 to vector<16x128xf32>
    %664 = arith.cmpf ogt, %662, %663 : vector<16x128xf32>
    %cst_373 = arith.constant 0.00999999977 : f32
    %665 = vector.broadcast %cst_373 : f32 to vector<16x128xf32>
    %666 = arith.mulf %665, %662 : vector<16x128xf32>
    %667 = arith.select %664, %662, %666 : vector<16x128xi1>, vector<16x128xf32>
    %c0_374 = arith.constant 0 : index
    %c0_375 = arith.constant 0 : index
    %668 = vector.load %arg0[%c0_374, %c0_375] : memref<16x128xf32, #tpu.memory_space<vmem>>, vector<16x128xf32>
    %669 = arith.addf %667, %668 : vector<16x128xf32>
    %cst_376 = arith.constant 0.000000e+00 : f32
    %670 = vector.broadcast %cst_376 : f32 to vector<16x128xf32>
    %671 = arith.cmpf ogt, %669, %670 : vector<16x128xf32>
    %cst_377 = arith.constant 0.00999999977 : f32
    %672 = vector.broadcast %cst_377 : f32 to vector<16x128xf32>
    %673 = arith.mulf %672, %669 : vector<16x128xf32>
    %674 = arith.select %671, %669, %673 : vector<16x128xi1>, vector<16x128xf32>
    %c0_378 = arith.constant 0 : index
    %c0_379 = arith.constant 0 : index
    %675 = vector.load %arg7[%c0_378, %c0_379] : memref<16x128xf32, #tpu.memory_space<vmem>>, vector<16x128xf32>
    tpu.vector_store %arg7[%c0_378, %c0_379], %674 {strides = array<i32>} : memref<16x128xf32, #tpu.memory_space<vmem>>, vector<16x128xf32>,
    return
  }
}

</mosaic_0001>

<llo_original>
// kernel: tpu_custom_call.1
$region0: #{tpu_custom_call.1}
  #allocation0 [shape = 'u32[]', space=smem, size = 0x4, offset = 0x4, fixed_abs, tag = 'smem constant byte address 0x4 - core index']
  #allocation1 [shape = 'u32[72,128]{1,0:T(1,128)}', space=vmem, size = 0x9000, scoped, tag = 'internal scratch']
  %s0 = inlined_call_operand.vmem [shape: f32[16,128], index: 0, kind: input, shape index: {}]
  %s1 = inlined_call_operand.hbm [shape: f32[45,16,128], index: 1, kind: input, shape index: {}]
  %s2 = inlined_call_operand.hbm [shape: f32[45,16,128], index: 2, kind: input, shape index: {}]
  %s3 = inlined_call_operand.vmem [shape: f32[128,4], index: 3, kind: input, shape index: {}]
  %s4 = inlined_call_operand.vmem [shape: f32[4,128], index: 4, kind: input, shape index: {}]
  %s5 = inlined_call_operand.vmem [shape: f32[2,4], index: 5, kind: input, shape index: {}]
  %s6 = inlined_call_operand.vmem [shape: f32[2,4], index: 6, kind: input, shape index: {}]
  %s7 = inlined_call_operand.hbm [shape: f32[16,128], index: 7, kind: output, shape index: {}]
  %s8 = sld [smem:[#allocation0]]
  $region46: #{tpu_custom_call.1} parent=0
    _
  %s10 = ssub.s32 1, %s8
  %s11 = scalar_select 0, %s10, %s8
  $region1: #{tpu_custom_call.1} parent=0
    #allocation2 [shape = 'u8[368640]{0}', space=vmem, size = 0x5a000, scoped, tag = 'input window, operand 1, single buffered']
    #allocation3 [shape = 's32[1]{0}', space=sflag, size = 0x4, scoped, tag = 'scoped memory for tpu_custom_call.1']
    #allocation4 [shape = 's32[1]{0}', space=sflag, size = 0x4, scoped, tag = 'scoped memory for tpu_custom_call.1']
    #allocation5 [shape = 'u8[368640]{0}', space=vmem, size = 0x5a000, scoped, tag = 'input window, operand 2, single buffered']
    #allocation6 [shape = 's32[1]{0}', space=sflag, size = 0x4, scoped, tag = 'scoped memory for tpu_custom_call.1']
    #allocation7 [shape = 'u8[8192]{0}', space=vmem, size = 0x2000, scoped, tag = 'output window, operand 0, single buffered']
    %12 = vsyncpa [#allocation3], 0
    %13 = vsyncpa [#allocation6], 0
    %14 = vsyncpa [#allocation4], 0
    // Predicated region
    $region2: #{tpu_custom_call.1} parent=1 // pred_check
      _
    $region3: #{tpu_custom_call.1} parent=1 // pred_check_branch
      %16 = sbr.rel (0) target = $region5
    $region4: #{tpu_custom_call.1} parent=1 // pred_region
      _
    $region5: #{tpu_custom_call.1} parent=1 // pred_fallthru
      _
    // Predicated region
    $region6: #{tpu_custom_call.1} parent=1 // pred_check
      _
    $region7: #{tpu_custom_call.1} parent=1 // pred_check_branch
      %18 = sbr.rel (0) target = $region9
    $region8: #{tpu_custom_call.1} parent=1 // pred_region
      %20 = vsyncadd [#allocation3], 0
      %s21 = sshll.u32 %s1, 4
      %s22 = int_to_ptr.hbm [resolvable:$true] %s21
      %s23 = sshll.u32 [#allocation2], 4
      %s24 = int_to_ptr.vmem [resolvable:$true] %s23
      %29 = dma.hbm_to_vmem [thread:$0]  %s22, 11520, %s24, [#allocation3], 128, 128, 8
    $region9: #{tpu_custom_call.1} parent=1 // pred_fallthru
      _
    // Predicated region
    $region10: #{tpu_custom_call.1} parent=1 // pred_check
      _
    $region11: #{tpu_custom_call.1} parent=1 // pred_check_branch
      %31 = sbr.rel (0) target = $region13
    $region12: #{tpu_custom_call.1} parent=1 // pred_region
      %33 = vsyncadd [#allocation6], 0
      %s34 = sshll.u32 %s2, 4
      %s35 = int_to_ptr.hbm [resolvable:$true] %s34
      %s36 = sshll.u32 [#allocation5], 4
      %s37 = int_to_ptr.vmem [resolvable:$true] %s36
      %42 = dma.hbm_to_vmem [thread:$0]  %s35, 11520, %s37, [#allocation6], 128, 128, 8
    $region13: #{tpu_custom_call.1} parent=1 // pred_fallthru
      _
    // Predicated region
    $region14: #{tpu_custom_call.1} parent=1 // pred_check
      _
    $region15: #{tpu_custom_call.1} parent=1 // pred_check_branch
      %44 = sbr.rel (0) target = $region17
    $region16: #{tpu_custom_call.1} parent=1 // pred_region
      _
    $region17: #{tpu_custom_call.1} parent=1 // pred_fallthru
      _
    // Predicated region
    $region18: #{tpu_custom_call.1} parent=1 // pred_check
      _
    $region19: #{tpu_custom_call.1} parent=1 // pred_check_branch
      %46 = sbr.rel (0) target = $region21
    $region20: #{tpu_custom_call.1} parent=1 // pred_region
      _
    $region21: #{tpu_custom_call.1} parent=1 // pred_fallthru
      _
    // Predicated region
    $region22: #{tpu_custom_call.1} parent=1 // pred_check
      _
    $region23: #{tpu_custom_call.1} parent=1 // pred_check_branch
      %48 = sbr.rel (0) target = $region25
    $region24: #{tpu_custom_call.1} parent=1 // pred_region
      _
    $region25: #{tpu_custom_call.1} parent=1 // pred_fallthru
      _
    // Predicated region
    $region26: #{tpu_custom_call.1} parent=1 // pred_check
      _
    $region27: #{tpu_custom_call.1} parent=1 // pred_check_branch
      %50 = sbr.rel (0) target = $region29
    $region28: #{tpu_custom_call.1} parent=1 // pred_region
      _
    $region29: #{tpu_custom_call.1} parent=1 // pred_fallthru
      _
    // Predicated region
    $region30: #{tpu_custom_call.1} parent=1 // pred_check
      _
    $region31: #{tpu_custom_call.1} parent=1 // pred_check_branch
      %52 = sbr.rel (0) target = $region33
    $region32: #{tpu_custom_call.1} parent=1 // pred_region
      %54 = dma.done [#allocation3], 11520
    $region33: #{tpu_custom_call.1} parent=1 // pred_fallthru
      _
    // Predicated region
    $region34: #{tpu_custom_call.1} parent=1 // pred_check
      _
    $region35: #{tpu_custom_call.1} parent=1 // pred_check_branch
      %56 = sbr.rel (0) target = $region37
    $region36: #{tpu_custom_call.1} parent=1 // pred_region
      %58 = dma.done [#allocation6], 11520
    $region37: #{tpu_custom_call.1} parent=1 // pred_fallthru
      _
    %v59 = vlaneseq
    %v60 = vand.u32 %v59, 127
    %v61 = vld [vmem:[%s3] sm:$0xff]
    %v62 = vld [vmem:[%s3 + $0x8] sm:$0xff]
    %v63 = vld [vmem:[%s3 + $0x10] sm:$0xff]
    %v64 = vld [vmem:[%s3 + $0x18] sm:$0xff]
    %v65 = vld [vmem:[%s3 + $0x20] sm:$0xff]
    %v66 = vld [vmem:[%s3 + $0x28] sm:$0xff]
    %v67 = vld [vmem:[%s3 + $0x30] sm:$0xff]
    %v68 = vld [vmem:[%s3 + $0x38] sm:$0xff]
    %v69 = vld [vmem:[%s3 + $0x40] sm:$0xff]
    %v70 = vld [vmem:[%s3 + $0x48] sm:$0xff]
    %v71 = vld [vmem:[%s3 + $0x50] sm:$0xff]
    %v72 = vld [vmem:[%s3 + $0x58] sm:$0xff]
    %v73 = vld [vmem:[%s3 + $0x60] sm:$0xff]
    %v74 = vld [vmem:[%s3 + $0x68] sm:$0xff]
    %v75 = vld [vmem:[%s3 + $0x70] sm:$0xff]
    %v76 = vld [vmem:[%s3 + $0x78] sm:$0xff]
    %v77 = vld [vmem:[%s4] sm:$0xf]
    %v78 = vld [vmem:[%s0] sm:$0xff]
    %v79 = vld [vmem:[%s0 + $0x8] sm:$0xff]
    %s80 = scalar_lea.vmem [#allocation2], 352
    %v81 = vld [vmem:[%s80] sm:$0xff]
    %v82 = vld [vmem:[%s80 + $0x8] sm:$0xff]
    %v83 = vmul.f32 %v78, %v81
    %v84 = vmul.f32 %v79, %v82
    %85 = vrot.lane.b32.xlu0 %v78, 127
    %v86 = vpop.permute.xlu0 %85
    %87 = vrot.lane.b32.xlu0 %v79, 127
    %v88 = vpop.permute.xlu0 %87
    %s89 = scalar_lea.vmem [#allocation2], 368
    %v90 = vld [vmem:[%s89] sm:$0xff]
    %v91 = vld [vmem:[%s89 + $0x8] sm:$0xff]
    %v92 = vmul.f32 %v86, %v90
    %v93 = vmul.f32 %v88, %v91
    %94 = vrot.lane.b32.xlu0 %v78, 126
    %v95 = vpop.permute.xlu0 %94
    %96 = vrot.lane.b32.xlu0 %v79, 126
    %v97 = vpop.permute.xlu0 %96
    %s98 = scalar_lea.vmem [#allocation2], 384
    %v99 = vld [vmem:[%s98] sm:$0xff]
    %v100 = vld [vmem:[%s98 + $0x8] sm:$0xff]
    %v101 = vmul.f32 %v95, %v99
    %v102 = vmul.f32 %v97, %v100
    %103 = vrot.lane.b32.xlu0 %v78, 125
    %v104 = vpop.permute.xlu0 %103
    %105 = vrot.lane.b32.xlu0 %v79, 125
    %v106 = vpop.permute.xlu0 %105
    %s107 = scalar_lea.vmem [#allocation2], 400
    %v108 = vld [vmem:[%s107] sm:$0xff]
    %v109 = vld [vmem:[%s107 + $0x8] sm:$0xff]
    %v110 = vmul.f32 %v104, %v108
    %v111 = vmul.f32 %v106, %v109
    %112 = vrot.lane.b32.xlu0 %v78, 124
    %v113 = vpop.permute.xlu0 %112
    %114 = vrot.lane.b32.xlu0 %v79, 124
    %v115 = vpop.permute.xlu0 %114
    %s116 = scalar_lea.vmem [#allocation2], 416
    %v117 = vld [vmem:[%s116] sm:$0xff]
    %v118 = vld [vmem:[%s116 + $0x8] sm:$0xff]
    %v119 = vmul.f32 %v113, %v117
    %v120 = vmul.f32 %v115, %v118
    %v121 = vadd.f32 %v83, %v119
    %v122 = vadd.f32 %v84, %v120
    %123 = vrot.lane.b32.xlu0 %v78, 123
    %v124 = vpop.permute.xlu0 %123
    %125 = vrot.lane.b32.xlu0 %v79, 123
    %v126 = vpop.permute.xlu0 %125
    %s127 = scalar_lea.vmem [#allocation2], 432
    %v128 = vld [vmem:[%s127] sm:$0xff]
    %v129 = vld [vmem:[%s127 + $0x8] sm:$0xff]
    %v130 = vmul.f32 %v124, %v128
    %v131 = vmul.f32 %v126, %v129
    %v132 = vadd.f32 %v92, %v130
    %v133 = vadd.f32 %v93, %v131
    %134 = vrot.lane.b32.xlu0 %v78, 122
    %v135 = vpop.permute.xlu0 %134
    %136 = vrot.lane.b32.xlu0 %v79, 122
    %v137 = vpop.permute.xlu0 %136
    %s138 = scalar_lea.vmem [#allocation2], 448
    %v139 = vld [vmem:[%s138] sm:$0xff]
    %v140 = vld [vmem:[%s138 + $0x8] sm:$0xff]
    %v141 = vmul.f32 %v135, %v139
    %v142 = vmul.f32 %v137, %v140
    %v143 = vadd.f32 %v101, %v141
    %v144 = vadd.f32 %v102, %v142
    %145 = vrot.lane.b32.xlu0 %v78, 121
    %v146 = vpop.permute.xlu0 %145
    %147 = vrot.lane.b32.xlu0 %v79, 121
    %v148 = vpop.permute.xlu0 %147
    %s149 = scalar_lea.vmem [#allocation2], 464
    %v150 = vld [vmem:[%s149] sm:$0xff]
    %v151 = vld [vmem:[%s149 + $0x8] sm:$0xff]
    %v152 = vmul.f32 %v146, %v150
    %v153 = vmul.f32 %v148, %v151
    %v154 = vadd.f32 %v110, %v152
    %v155 = vadd.f32 %v111, %v153
    %156 = vrot.lane.b32.xlu0 %v78, 71
    %v157 = vpop.permute.xlu0 %156
    %158 = vrot.lane.b32.xlu0 %v79, 71
    %v159 = vpop.permute.xlu0 %158
    %vm160 = vcmp.ge.s32.totalorder %v60, 71
    %v161 = vrot.slane %v157, 7
    %v162 = vrot.slane %v159, 7
    %v163 = vlaneseq
    %v164 = vshrl.u32 %v163, 7
    %vm165 = vcmp.lt.s32.totalorder %v164, 1
    %v166 = vsel %vm165, %v161, %v162
    %v167 = vsel %vm165, %v162, %v161
    %v168 = vsel %vm160, %v157, %v167
    %v169 = vsel %vm160, %v159, %v166
    %v170 = vld [vmem:[#allocation2] sm:$0xff]
    %v171 = vld [vmem:[#allocation2 + $0x8] sm:$0xff]
    %v172 = vmul.f32 %v168, %v170
    %v173 = vmul.f32 %v169, %v171
    %v174 = vadd.f32 %v121, %v172
    %v175 = vadd.f32 %v122, %v173
    %v176 = vrot.slane %v157, 1
    %v177 = vrot.slane %v159, 1
    %vm178 = vcmp.lt.s32.totalorder %v164, 7
    %v179 = vsel %vm178, %v176, %v177
    %v180 = vsel %vm178, %v177, %v176
    %v181 = vsel %vm160, %v179, %v157
    %v182 = vsel %vm160, %v180, %v159
    %s183 = scalar_lea.vmem [#allocation2], 480
    %v184 = vld [vmem:[%s183] sm:$0xff]
    %v185 = vld [vmem:[%s183 + $0x8] sm:$0xff]
    %v186 = vmul.f32 %v181, %v184
    %v187 = vmul.f32 %v182, %v185
    %v188 = vadd.f32 %v132, %v186
    %v189 = vadd.f32 %v133, %v187
    %190 = vrot.lane.b32.xlu0 %v78, 70
    %v191 = vpop.permute.xlu0 %190
    %192 = vrot.lane.b32.xlu0 %v79, 70
    %v193 = vpop.permute.xlu0 %192
    %vm194 = vcmp.ge.s32.totalorder %v60, 70
    %v195 = vrot.slane %v191, 7
    %v196 = vrot.slane %v193, 7
    %v197 = vsel %vm165, %v195, %v196
    %v198 = vsel %vm165, %v196, %v195
    %v199 = vsel %vm194, %v191, %v198
    %v200 = vsel %vm194, %v193, %v197
    %s201 = scalar_lea.vmem [#allocation2], 16
    %v202 = vld [vmem:[%s201] sm:$0xff]
    %v203 = vld [vmem:[%s201 + $0x8] sm:$0xff]
    %v204 = vmul.f32 %v199, %v202
    %v205 = vmul.f32 %v200, %v203
    %v206 = vadd.f32 %v143, %v204
    %v207 = vadd.f32 %v144, %v205
    %v208 = vrot.slane %v191, 1
    %v209 = vrot.slane %v193, 1
    %v210 = vsel %vm178, %v208, %v209
    %v211 = vsel %vm178, %v209, %v208
    %v212 = vsel %vm194, %v210, %v191
    %v213 = vsel %vm194, %v211, %v193
    %s214 = scalar_lea.vmem [#allocation2], 496
    %v215 = vld [vmem:[%s214] sm:$0xff]
    %v216 = vld [vmem:[%s214 + $0x8] sm:$0xff]
    %v217 = vmul.f32 %v212, %v215
    %v218 = vmul.f32 %v213, %v216
    %v219 = vadd.f32 %v154, %v217
    %v220 = vadd.f32 %v155, %v218
    %221 = vrot.lane.b32.xlu0 %v78, 69
    %v222 = vpop.permute.xlu0 %221
    %223 = vrot.lane.b32.xlu0 %v79, 69
    %v224 = vpop.permute.xlu0 %223
    %vm225 = vcmp.ge.s32.totalorder %v60, 69
    %v226 = vrot.slane %v222, 7
    %v227 = vrot.slane %v224, 7
    %v228 = vsel %vm165, %v226, %v227
    %v229 = vsel %vm165, %v227, %v226
    %v230 = vsel %vm225, %v222, %v229
    %v231 = vsel %vm225, %v224, %v228
    %s232 = scalar_lea.vmem [#allocation2], 32
    %v233 = vld [vmem:[%s232] sm:$0xff]
    %v234 = vld [vmem:[%s232 + $0x8] sm:$0xff]
    %v235 = vmul.f32 %v230, %v233
    %v236 = vmul.f32 %v231, %v234
    %v237 = vadd.f32 %v174, %v235
    %v238 = vadd.f32 %v175, %v236
    %v239 = vrot.slane %v222, 1
    %v240 = vrot.slane %v224, 1
    %v241 = vsel %vm178, %v239, %v240
    %v242 = vsel %vm178, %v240, %v239
    %v243 = vsel %vm225, %v241, %v222
    %v244 = vsel %vm225, %v242, %v224
    %s245 = scalar_lea.vmem [#allocation2], 512
    %v246 = vld [vmem:[%s245] sm:$0xff]
    %v247 = vld [vmem:[%s245 + $0x8] sm:$0xff]
    %v248 = vmul.f32 %v243, %v246
    %v249 = vmul.f32 %v244, %v247
    %v250 = vadd.f32 %v188, %v248
    %v251 = vadd.f32 %v189, %v249
    %252 = vrot.lane.b32.xlu0 %v78, 68
    %v253 = vpop.permute.xlu0 %252
    %254 = vrot.lane.b32.xlu0 %v79, 68
    %v255 = vpop.permute.xlu0 %254
    %vm256 = vcmp.ge.s32.totalorder %v60, 68
    %v257 = vrot.slane %v253, 7
    %v258 = vrot.slane %v255, 7
    %v259 = vsel %vm165, %v257, %v258
    %v260 = vsel %vm165, %v258, %v257
    %v261 = vsel %vm256, %v253, %v260
    %v262 = vsel %vm256, %v255, %v259
    %s263 = scalar_lea.vmem [#allocation2], 48
    %v264 = vld [vmem:[%s263] sm:$0xff]
    %v265 = vld [vmem:[%s263 + $0x8] sm:$0xff]
    %v266 = vmul.f32 %v261, %v264
    %v267 = vmul.f32 %v262, %v265
    %v268 = vadd.f32 %v206, %v266
    %v269 = vadd.f32 %v207, %v267
    %v270 = vrot.slane %v253, 1
    %v271 = vrot.slane %v255, 1
    %v272 = vsel %vm178, %v270, %v271
    %v273 = vsel %vm178, %v271, %v270
    %v274 = vsel %vm256, %v272, %v253
    %v275 = vsel %vm256, %v273, %v255
    %s276 = scalar_lea.vmem [#allocation2], 528
    %v277 = vld [vmem:[%s276] sm:$0xff]
    %v278 = vld [vmem:[%s276 + $0x8] sm:$0xff]
    %v279 = vmul.f32 %v274, %v277
    %v280 = vmul.f32 %v275, %v278
    %v281 = vadd.f32 %v219, %v279
    %v282 = vadd.f32 %v220, %v280
    %283 = vrot.lane.b32.xlu0 %v78, 67
    %v284 = vpop.permute.xlu0 %283
    %285 = vrot.lane.b32.xlu0 %v79, 67
    %v286 = vpop.permute.xlu0 %285
    %vm287 = vcmp.ge.s32.totalorder %v60, 67
    %v288 = vrot.slane %v284, 7
    %v289 = vrot.slane %v286, 7
    %v290 = vsel %vm165, %v288, %v289
    %v291 = vsel %vm165, %v289, %v288
    %v292 = vsel %vm287, %v284, %v291
    %v293 = vsel %vm287, %v286, %v290
    %s294 = scalar_lea.vmem [#allocation2], 64
    %v295 = vld [vmem:[%s294] sm:$0xff]
    %v296 = vld [vmem:[%s294 + $0x8] sm:$0xff]
    %v297 = vmul.f32 %v292, %v295
    %v298 = vmul.f32 %v293, %v296
    %v299 = vadd.f32 %v237, %v297
    %v300 = vadd.f32 %v238, %v298
    %v301 = vrot.slane %v284, 1
    %v302 = vrot.slane %v286, 1
    %v303 = vsel %vm178, %v301, %v302
    %v304 = vsel %vm178, %v302, %v301
    %v305 = vsel %vm287, %v303, %v284
    %v306 = vsel %vm287, %v304, %v286
    %s307 = scalar_lea.vmem [#allocation2], 544
    %v308 = vld [vmem:[%s307] sm:$0xff]
    %v309 = vld [vmem:[%s307 + $0x8] sm:$0xff]
    %v310 = vmul.f32 %v305, %v308
    %v311 = vmul.f32 %v306, %v309
    %v312 = vadd.f32 %v250, %v310
    %v313 = vadd.f32 %v251, %v311
    %314 = vrot.lane.b32.xlu0 %v78, 66
    %v315 = vpop.permute.xlu0 %314
    %316 = vrot.lane.b32.xlu0 %v79, 66
    %v317 = vpop.permute.xlu0 %316
    %vm318 = vcmp.ge.s32.totalorder %v60, 66
    %v319 = vrot.slane %v315, 7
    %v320 = vrot.slane %v317, 7
    %v321 = vsel %vm165, %v319, %v320
    %v322 = vsel %vm165, %v320, %v319
    %v323 = vsel %vm318, %v315, %v322
    %v324 = vsel %vm318, %v317, %v321
    %s325 = scalar_lea.vmem [#allocation2], 80
    %v326 = vld [vmem:[%s325] sm:$0xff]
    %v327 = vld [vmem:[%s325 + $0x8] sm:$0xff]
    %v328 = vmul.f32 %v323, %v326
    %v329 = vmul.f32 %v324, %v327
    %v330 = vadd.f32 %v268, %v328
    %v331 = vadd.f32 %v269, %v329
    %v332 = vrot.slane %v315, 1
    %v333 = vrot.slane %v317, 1
    %v334 = vsel %vm178, %v332, %v333
    %v335 = vsel %vm178, %v333, %v332
    %v336 = vsel %vm318, %v334, %v315
    %v337 = vsel %vm318, %v335, %v317
    %s338 = scalar_lea.vmem [#allocation2], 560
    %v339 = vld [vmem:[%s338] sm:$0xff]
    %v340 = vld [vmem:[%s338 + $0x8] sm:$0xff]
    %v341 = vmul.f32 %v336, %v339
    %v342 = vmul.f32 %v337, %v340
    %v343 = vadd.f32 %v281, %v341
    %v344 = vadd.f32 %v282, %v342
    %345 = vrot.lane.b32.xlu0 %v78, 65
    %v346 = vpop.permute.xlu0 %345
    %347 = vrot.lane.b32.xlu0 %v79, 65
    %v348 = vpop.permute.xlu0 %347
    %vm349 = vcmp.ge.s32.totalorder %v60, 65
    %v350 = vrot.slane %v346, 7
    %v351 = vrot.slane %v348, 7
    %v352 = vsel %vm165, %v350, %v351
    %v353 = vsel %vm165, %v351, %v350
    %v354 = vsel %vm349, %v346, %v353
    %v355 = vsel %vm349, %v348, %v352
    %s356 = scalar_lea.vmem [#allocation2], 96
    %v357 = vld [vmem:[%s356] sm:$0xff]
    %v358 = vld [vmem:[%s356 + $0x8] sm:$0xff]
    %v359 = vmul.f32 %v354, %v357
    %v360 = vmul.f32 %v355, %v358
    %v361 = vadd.f32 %v299, %v359
    %v362 = vadd.f32 %v300, %v360
    %v363 = vrot.slane %v346, 1
    %v364 = vrot.slane %v348, 1
    %v365 = vsel %vm178, %v363, %v364
    %v366 = vsel %vm178, %v364, %v363
    %v367 = vsel %vm349, %v365, %v346
    %v368 = vsel %vm349, %v366, %v348
    %s369 = scalar_lea.vmem [#allocation2], 576
    %v370 = vld [vmem:[%s369] sm:$0xff]
    %v371 = vld [vmem:[%s369 + $0x8] sm:$0xff]
    %v372 = vmul.f32 %v367, %v370
    %v373 = vmul.f32 %v368, %v371
    %v374 = vadd.f32 %v312, %v372
    %v375 = vadd.f32 %v313, %v373
    %376 = vrot.lane.b32.xlu0 %v78, 64
    %v377 = vpop.permute.xlu0 %376
    %378 = vrot.lane.b32.xlu0 %v79, 64
    %v379 = vpop.permute.xlu0 %378
    %vm380 = vcmp.ge.s32.totalorder %v60, 64
    %v381 = vrot.slane %v377, 7
    %v382 = vrot.slane %v379, 7
    %v383 = vsel %vm165, %v381, %v382
    %v384 = vsel %vm165, %v382, %v381
    %v385 = vsel %vm380, %v377, %v384
    %v386 = vsel %vm380, %v379, %v383
    %s387 = scalar_lea.vmem [#allocation2], 112
    %v388 = vld [vmem:[%s387] sm:$0xff]
    %v389 = vld [vmem:[%s387 + $0x8] sm:$0xff]
    %v390 = vmul.f32 %v385, %v388
    %v391 = vmul.f32 %v386, %v389
    %v392 = vadd.f32 %v330, %v390
    %v393 = vadd.f32 %v331, %v391
    %v394 = vrot.slane %v377, 1
    %v395 = vrot.slane %v379, 1
    %v396 = vsel %vm178, %v394, %v395
    %v397 = vsel %vm178, %v395, %v394
    %v398 = vsel %vm380, %v396, %v377
    %v399 = vsel %vm380, %v397, %v379
    %s400 = scalar_lea.vmem [#allocation2], 592
    %v401 = vld [vmem:[%s400] sm:$0xff]
    %v402 = vld [vmem:[%s400 + $0x8] sm:$0xff]
    %v403 = vmul.f32 %v398, %v401
    %v404 = vmul.f32 %v399, %v402
    %v405 = vadd.f32 %v343, %v403
    %v406 = vadd.f32 %v344, %v404
    %407 = vrot.lane.b32.xlu0 %v78, 63
    %v408 = vpop.permute.xlu0 %407
    %409 = vrot.lane.b32.xlu0 %v79, 63
    %v410 = vpop.permute.xlu0 %409
    %vm411 = vcmp.ge.s32.totalorder %v60, 63
    %v412 = vrot.slane %v408, 7
    %v413 = vrot.slane %v410, 7
    %v414 = vsel %vm165, %v412, %v413
    %v415 = vsel %vm165, %v413, %v412
    %v416 = vsel %vm411, %v408, %v415
    %v417 = vsel %vm411, %v410, %v414
    %s418 = scalar_lea.vmem [#allocation2], 128
    %v419 = vld [vmem:[%s418] sm:$0xff]
    %v420 = vld [vmem:[%s418 + $0x8] sm:$0xff]
    %v421 = vmul.f32 %v416, %v419
    %v422 = vmul.f32 %v417, %v420
    %v423 = vadd.f32 %v361, %v421
    %v424 = vadd.f32 %v362, %v422
    %v425 = vrot.slane %v408, 1
    %v426 = vrot.slane %v410, 1
    %v427 = vsel %vm178, %v425, %v426
    %v428 = vsel %vm178, %v426, %v425
    %v429 = vsel %vm411, %v427, %v408
    %v430 = vsel %vm411, %v428, %v410
    %s431 = scalar_lea.vmem [#allocation2], 608
    %v432 = vld [vmem:[%s431] sm:$0xff]
    %v433 = vld [vmem:[%s431 + $0x8] sm:$0xff]
    %v434 = vmul.f32 %v429, %v432
    %v435 = vmul.f32 %v430, %v433
    %v436 = vadd.f32 %v374, %v434
    %v437 = vadd.f32 %v375, %v435
    %438 = vrot.lane.b32.xlu0 %v78, 62
    %v439 = vpop.permute.xlu0 %438
    %440 = vrot.lane.b32.xlu0 %v79, 62
    %v441 = vpop.permute.xlu0 %440
    %vm442 = vcmp.ge.s32.totalorder %v60, 62
    %v443 = vrot.slane %v439, 7
    %v444 = vrot.slane %v441, 7
    %v445 = vsel %vm165, %v443, %v444
    %v446 = vsel %vm165, %v444, %v443
    %v447 = vsel %vm442, %v439, %v446
    %v448 = vsel %vm442, %v441, %v445
    %s449 = scalar_lea.vmem [#allocation2], 144
    %v450 = vld [vmem:[%s449] sm:$0xff]
    %v451 = vld [vmem:[%s449 + $0x8] sm:$0xff]
    %v452 = vmul.f32 %v447, %v450
    %v453 = vmul.f32 %v448, %v451
    %v454 = vadd.f32 %v392, %v452
    %v455 = vadd.f32 %v393, %v453
    %v456 = vrot.slane %v439, 1
    %v457 = vrot.slane %v441, 1
    %v458 = vsel %vm178, %v456, %v457
    %v459 = vsel %vm178, %v457, %v456
    %v460 = vsel %vm442, %v458, %v439
    %v461 = vsel %vm442, %v459, %v441
    %s462 = scalar_lea.vmem [#allocation2], 624
    %v463 = vld [vmem:[%s462] sm:$0xff]
    %v464 = vld [vmem:[%s462 + $0x8] sm:$0xff]
    %v465 = vmul.f32 %v460, %v463
    %v466 = vmul.f32 %v461, %v464
    %v467 = vadd.f32 %v405, %v465
    %v468 = vadd.f32 %v406, %v466
    %469 = vrot.lane.b32.xlu0 %v78, 61
    %v470 = vpop.permute.xlu0 %469
    %471 = vrot.lane.b32.xlu0 %v79, 61
    %v472 = vpop.permute.xlu0 %471
    %vm473 = vcmp.ge.s32.totalorder %v60, 61
    %v474 = vrot.slane %v470, 7
    %v475 = vrot.slane %v472, 7
    %v476 = vsel %vm165, %v474, %v475
    %v477 = vsel %vm165, %v475, %v474
    %v478 = vsel %vm473, %v470, %v477
    %v479 = vsel %vm473, %v472, %v476
    %s480 = scalar_lea.vmem [#allocation2], 160
    %v481 = vld [vmem:[%s480] sm:$0xff]
    %v482 = vld [vmem:[%s480 + $0x8] sm:$0xff]
    %v483 = vmul.f32 %v478, %v481
    %v484 = vmul.f32 %v479, %v482
    %v485 = vadd.f32 %v423, %v483
    %v486 = vadd.f32 %v424, %v484
    %v487 = vrot.slane %v470, 1
    %v488 = vrot.slane %v472, 1
    %v489 = vsel %vm178, %v487, %v488
    %v490 = vsel %vm178, %v488, %v487
    %v491 = vsel %vm473, %v489, %v470
    %v492 = vsel %vm473, %v490, %v472
    %s493 = scalar_lea.vmem [#allocation2], 640
    %v494 = vld [vmem:[%s493] sm:$0xff]
    %v495 = vld [vmem:[%s493 + $0x8] sm:$0xff]
    %v496 = vmul.f32 %v491, %v494
    %v497 = vmul.f32 %v492, %v495
    %v498 = vadd.f32 %v436, %v496
    %v499 = vadd.f32 %v437, %v497
    %500 = vrot.lane.b32.xlu0 %v78, 60
    %v501 = vpop.permute.xlu0 %500
    %502 = vrot.lane.b32.xlu0 %v79, 60
    %v503 = vpop.permute.xlu0 %502
    %vm504 = vcmp.ge.s32.totalorder %v60, 60
    %v505 = vrot.slane %v501, 7
    %v506 = vrot.slane %v503, 7
    %v507 = vsel %vm165, %v505, %v506
    %v508 = vsel %vm165, %v506, %v505
    %v509 = vsel %vm504, %v501, %v508
    %v510 = vsel %vm504, %v503, %v507
    %s511 = scalar_lea.vmem [#allocation2], 176
    %v512 = vld [vmem:[%s511] sm:$0xff]
    %v513 = vld [vmem:[%s511 + $0x8] sm:$0xff]
    %v514 = vmul.f32 %v509, %v512
    %v515 = vmul.f32 %v510, %v513
    %v516 = vadd.f32 %v454, %v514
    %v517 = vadd.f32 %v455, %v515
    %v518 = vrot.slane %v501, 1
    %v519 = vrot.slane %v503, 1
    %v520 = vsel %vm178, %v518, %v519
    %v521 = vsel %vm178, %v519, %v518
    %v522 = vsel %vm504, %v520, %v501
    %v523 = vsel %vm504, %v521, %v503
    %s524 = scalar_lea.vmem [#allocation2], 656
    %v525 = vld [vmem:[%s524] sm:$0xff]
    %v526 = vld [vmem:[%s524 + $0x8] sm:$0xff]
    %v527 = vmul.f32 %v522, %v525
    %v528 = vmul.f32 %v523, %v526
    %v529 = vadd.f32 %v467, %v527
    %v530 = vadd.f32 %v468, %v528
    %531 = vrot.lane.b32.xlu0 %v78, 59
    %v532 = vpop.permute.xlu0 %531
    %533 = vrot.lane.b32.xlu0 %v79, 59
    %v534 = vpop.permute.xlu0 %533
    %vm535 = vcmp.ge.s32.totalorder %v60, 59
    %v536 = vrot.slane %v532, 7
    %v537 = vrot.slane %v534, 7
    %v538 = vsel %vm165, %v536, %v537
    %v539 = vsel %vm165, %v537, %v536
    %v540 = vsel %vm535, %v532, %v539
    %v541 = vsel %vm535, %v534, %v538
    %s542 = scalar_lea.vmem [#allocation2], 192
    %v543 = vld [vmem:[%s542] sm:$0xff]
    %v544 = vld [vmem:[%s542 + $0x8] sm:$0xff]
    %v545 = vmul.f32 %v540, %v543
    %v546 = vmul.f32 %v541, %v544
    %v547 = vadd.f32 %v485, %v545
    %v548 = vadd.f32 %v486, %v546
    %v549 = vrot.slane %v532, 1
    %v550 = vrot.slane %v534, 1
    %v551 = vsel %vm178, %v549, %v550
    %v552 = vsel %vm178, %v550, %v549
    %v553 = vsel %vm535, %v551, %v532
    %v554 = vsel %vm535, %v552, %v534
    %s555 = scalar_lea.vmem [#allocation2], 672
    %v556 = vld [vmem:[%s555] sm:$0xff]
    %v557 = vld [vmem:[%s555 + $0x8] sm:$0xff]
    %v558 = vmul.f32 %v553, %v556
    %v559 = vmul.f32 %v554, %v557
    %v560 = vadd.f32 %v498, %v558
    %v561 = vadd.f32 %v499, %v559
    %562 = vrot.lane.b32.xlu0 %v78, 58
    %v563 = vpop.permute.xlu0 %562
    %564 = vrot.lane.b32.xlu0 %v79, 58
    %v565 = vpop.permute.xlu0 %564
    %vm566 = vcmp.ge.s32.totalorder %v60, 58
    %v567 = vrot.slane %v563, 7
    %v568 = vrot.slane %v565, 7
    %v569 = vsel %vm165, %v567, %v568
    %v570 = vsel %vm165, %v568, %v567
    %v571 = vsel %vm566, %v563, %v570
    %v572 = vsel %vm566, %v565, %v569
    %s573 = scalar_lea.vmem [#allocation2], 208
    %v574 = vld [vmem:[%s573] sm:$0xff]
    %v575 = vld [vmem:[%s573 + $0x8] sm:$0xff]
    %v576 = vmul.f32 %v571, %v574
    %v577 = vmul.f32 %v572, %v575
    %v578 = vadd.f32 %v516, %v576
    %v579 = vadd.f32 %v517, %v577
    %v580 = vrot.slane %v563, 1
    %v581 = vrot.slane %v565, 1
    %v582 = vsel %vm178, %v580, %v581
    %v583 = vsel %vm178, %v581, %v580
    %v584 = vsel %vm566, %v582, %v563
    %v585 = vsel %vm566, %v583, %v565
    %s586 = scalar_lea.vmem [#allocation2], 688
    %v587 = vld [vmem:[%s586] sm:$0xff]
    %v588 = vld [vmem:[%s586 + $0x8] sm:$0xff]
    %v589 = vmul.f32 %v584, %v587
    %v590 = vmul.f32 %v585, %v588
    %v591 = vadd.f32 %v529, %v589
    %v592 = vadd.f32 %v530, %v590
    %593 = vrot.lane.b32.xlu0 %v78, 57
    %v594 = vpop.permute.xlu0 %593
    %595 = vrot.lane.b32.xlu0 %v79, 57
    %v596 = vpop.permute.xlu0 %595
    %vm597 = vcmp.ge.s32.totalorder %v60, 57
    %v598 = vrot.slane %v594, 7
    %v599 = vrot.slane %v596, 7
    %v600 = vsel %vm165, %v598, %v599
    %v601 = vsel %vm165, %v599, %v598
    %v602 = vsel %vm597, %v594, %v601
    %v603 = vsel %vm597, %v596, %v600
    %s604 = scalar_lea.vmem [#allocation2], 224
    %v605 = vld [vmem:[%s604] sm:$0xff]
    %v606 = vld [vmem:[%s604 + $0x8] sm:$0xff]
    %v607 = vmul.f32 %v602, %v605
    %v608 = vmul.f32 %v603, %v606
    %v609 = vadd.f32 %v547, %v607
    %v610 = vadd.f32 %v548, %v608
    %v611 = vrot.slane %v594, 1
    %v612 = vrot.slane %v596, 1
    %v613 = vsel %vm178, %v611, %v612
    %v614 = vsel %vm178, %v612, %v611
    %v615 = vsel %vm597, %v613, %v594
    %v616 = vsel %vm597, %v614, %v596
    %s617 = scalar_lea.vmem [#allocation2], 704
    %v618 = vld [vmem:[%s617] sm:$0xff]
    %v619 = vld [vmem:[%s617 + $0x8] sm:$0xff]
    %v620 = vmul.f32 %v615, %v618
    %v621 = vmul.f32 %v616, %v619
    %v622 = vadd.f32 %v560, %v620
    %v623 = vadd.f32 %v561, %v621
    %624 = vrot.lane.b32.xlu0 %v78, 7
    %v625 = vpop.permute.xlu0 %624
    %626 = vrot.lane.b32.xlu0 %v79, 7
    %v627 = vpop.permute.xlu0 %626
    %s628 = scalar_lea.vmem [#allocation2], 240
    %v629 = vld [vmem:[%s628] sm:$0xff]
    %v630 = vld [vmem:[%s628 + $0x8] sm:$0xff]
    %v631 = vmul.f32 %v625, %v629
    %v632 = vmul.f32 %v627, %v630
    %v633 = vadd.f32 %v578, %v631
    %v634 = vadd.f32 %v579, %v632
    %635 = vrot.lane.b32.xlu0 %v78, 6
    %v636 = vpop.permute.xlu0 %635
    %637 = vrot.lane.b32.xlu0 %v79, 6
    %v638 = vpop.permute.xlu0 %637
    %s639 = scalar_lea.vmem [#allocation2], 256
    %v640 = vld [vmem:[%s639] sm:$0xff]
    %v641 = vld [vmem:[%s639 + $0x8] sm:$0xff]
    %v642 = vmul.f32 %v636, %v640
    %v643 = vmul.f32 %v638, %v641
    %v644 = vadd.f32 %v591, %v642
    %v645 = vadd.f32 %v592, %v643
    %646 = vrot.lane.b32.xlu0 %v78, 5
    %v647 = vpop.permute.xlu0 %646
    %648 = vrot.lane.b32.xlu0 %v79, 5
    %v649 = vpop.permute.xlu0 %648
    %s650 = scalar_lea.vmem [#allocation2], 272
    %v651 = vld [vmem:[%s650] sm:$0xff]
    %v652 = vld [vmem:[%s650 + $0x8] sm:$0xff]
    %v653 = vmul.f32 %v647, %v651
    %v654 = vmul.f32 %v649, %v652
    %v655 = vadd.f32 %v609, %v653
    %v656 = vadd.f32 %v610, %v654
    %657 = vrot.lane.b32.xlu0 %v78, 4
    %v658 = vpop.permute.xlu0 %657
    %659 = vrot.lane.b32.xlu0 %v79, 4
    %v660 = vpop.permute.xlu0 %659
    %s661 = scalar_lea.vmem [#allocation2], 288
    %v662 = vld [vmem:[%s661] sm:$0xff]
    %v663 = vld [vmem:[%s661 + $0x8] sm:$0xff]
    %v664 = vmul.f32 %v658, %v662
    %v665 = vmul.f32 %v660, %v663
    %v666 = vadd.f32 %v622, %v664
    %v667 = vadd.f32 %v623, %v665
    %668 = vrot.lane.b32.xlu0 %v78, 3
    %v669 = vpop.permute.xlu0 %668
    %670 = vrot.lane.b32.xlu0 %v79, 3
    %v671 = vpop.permute.xlu0 %670
    %s672 = scalar_lea.vmem [#allocation2], 304
    %v673 = vld [vmem:[%s672] sm:$0xff]
    %v674 = vld [vmem:[%s672 + $0x8] sm:$0xff]
    %v675 = vmul.f32 %v669, %v673
    %v676 = vmul.f32 %v671, %v674
    %v677 = vadd.f32 %v633, %v675
    %v678 = vadd.f32 %v634, %v676
    %679 = vrot.lane.b32.xlu0 %v78, 2
    %v680 = vpop.permute.xlu0 %679
    %681 = vrot.lane.b32.xlu0 %v79, 2
    %v682 = vpop.permute.xlu0 %681
    %s683 = scalar_lea.vmem [#allocation2], 320
    %v684 = vld [vmem:[%s683] sm:$0xff]
    %v685 = vld [vmem:[%s683 + $0x8] sm:$0xff]
    %v686 = vmul.f32 %v680, %v684
    %v687 = vmul.f32 %v682, %v685
    %v688 = vadd.f32 %v644, %v686
    %v689 = vadd.f32 %v645, %v687
    %690 = vrot.lane.b32.xlu0 %v78, 1
    %v691 = vpop.permute.xlu0 %690
    %692 = vrot.lane.b32.xlu0 %v79, 1
    %v693 = vpop.permute.xlu0 %692
    %s694 = scalar_lea.vmem [#allocation2], 336
    %v695 = vld [vmem:[%s694] sm:$0xff]
    %v696 = vld [vmem:[%s694 + $0x8] sm:$0xff]
    %v697 = vmul.f32 %v691, %v695
    %v698 = vmul.f32 %v693, %v696
    %v699 = vadd.f32 %v655, %v697
    %v700 = vadd.f32 %v656, %v698
    %v701 = vadd.f32 %v699, %v666
    %v702 = vadd.f32 %v700, %v667
    %v703 = vadd.f32 %v677, %v688
    %v704 = vadd.f32 %v678, %v689
    %v705 = vadd.f32 %v701, %v703
    %v706 = vadd.f32 %v702, %v704
    %v707 = vld [vmem:[%s5] sm:$0x3]
    %708 = vmatpush.msra.mxu0 %v76
    %709 = vmatpush.msra.mxu0 %v75
    %710 = vmatpush.msra.mxu0 %v74
    %711 = vmatpush.msra.mxu0 %v73
    %712 = vmatpush.msra.mxu0 %v72
    %713 = vmatpush.msra.mxu0 %v71
    %714 = vmatpush.msra.mxu0 %v70
    %715 = vmatpush.msra.mxu0 %v69
    %716 = vmatpush.msra.mxu0 %v68
    %717 = vmatpush.msra.mxu0 %v67
    %718 = vmatpush.msra.mxu0 %v66
    %719 = vmatpush.msra.mxu0 %v65
    %720 = vmatpush.msra.mxu0 %v64
    %721 = vmatpush.msra.mxu0 %v63
    %722 = vmatpush.msra.mxu0 %v62
    %723 = vmatpush.msra.mxu0 %v61
    %724 = vmatmul.f32.gmra.mxu0 %v705
    %v725 = vpop.f32.mrf.mxu0
    %v726 = vadd.f32 0.0, %v725
    %727 = vmatmul.f32.gmra.mxu0 %v706
    %v728 = vpop.f32.mrf.mxu0
    %v729 = vadd.f32 0.0, %v728
    %730 = vdwg.mxu0
    %vm731 = vcmask 31744
    %v732 = vsel %vm731, %v726, 0.0
    %v733 = vsel %vm731, %v729, 0.0
    %v734 = vadd.f32 %v732, %v733
    %v735 = vrot.slane %v734, 4
    %v736 = vadd.f32 %v734, %v735
    %v737 = vrot.slane %v736, 2
    %v738 = vadd.f32 %v736, %v737
    %v739 = vrot.slane %v738, 1
    %v740 = vadd.f32 %v738, %v739
    %v741 = vmul.f32 %v740, 0.001953125
    %v743 = vsel %vm731, %v741, 0
    %vm745 = vcmask 1043456
    %v747 = vsel %vm745, %v77, 0
    %749 = vmatpush.msra.mxu0 0.0
    %750 = vmatpush.msra.mxu0 0.0
    %751 = vmatpush.msra.mxu0 0.0
    %752 = vmatpush.msra.mxu0 0.0
    %753 = vmatpush.msra.mxu0 0.0
    %754 = vmatpush.msra.mxu0 0.0
    %755 = vmatpush.msra.mxu0 0.0
    %756 = vmatpush.msra.mxu0 0.0
    %757 = vmatpush.msra.mxu0 0.0
    %758 = vmatpush.msra.mxu0 0.0
    %759 = vmatpush.msra.mxu0 0.0
    %760 = vmatpush.msra.mxu0 0.0
    %761 = vmatpush.msra.mxu0 0.0
    %762 = vmatpush.msra.mxu0 0.0
    %763 = vmatpush.msra.mxu0 0.0
    %764 = vmatpush.msra.mxu0 %v747
    %765 = vmatmul.f32.gmra.mxu0 %v743
    %v766 = vpop.f32.mrf.mxu0
    %v767 = vadd.f32 0.0, %v766
    %768 = vdwg.mxu0
    %v769 = vperm.slane %v767, 0
    %v770 = vsub.f32 %v705, %v769
    %v771 = vsub.f32 %v706, %v769
    %v772 = vmul.f32 %v770, %v770
    %v773 = vmul.f32 %v771, %v771
    %774 = vmatpush.msra.mxu0 %v76
    %775 = vmatpush.msra.mxu0 %v75
    %776 = vmatpush.msra.mxu0 %v74
    %777 = vmatpush.msra.mxu0 %v73
    %778 = vmatpush.msra.mxu0 %v72
    %779 = vmatpush.msra.mxu0 %v71
    %780 = vmatpush.msra.mxu0 %v70
    %781 = vmatpush.msra.mxu0 %v69
    %782 = vmatpush.msra.mxu0 %v68
    %783 = vmatpush.msra.mxu0 %v67
    %784 = vmatpush.msra.mxu0 %v66
    %785 = vmatpush.msra.mxu0 %v65
    %786 = vmatpush.msra.mxu0 %v64
    %787 = vmatpush.msra.mxu0 %v63
    %788 = vmatpush.msra.mxu0 %v62
    %789 = vmatpush.msra.mxu0 %v61
    %790 = vmatmul.f32.gmra.mxu0 %v772
    %v791 = vpop.f32.mrf.mxu0
    %v792 = vadd.f32 0.0, %v791
    %793 = vmatmul.f32.gmra.mxu0 %v773
    %v794 = vpop.f32.mrf.mxu0
    %v795 = vadd.f32 0.0, %v794
    %796 = vdwg.mxu0
    %v797 = vsel %vm731, %v792, 0.0
    %v798 = vsel %vm731, %v795, 0.0
    %v799 = vadd.f32 %v797, %v798
    %v800 = vrot.slane %v799, 4
    %v801 = vadd.f32 %v799, %v800
    %v802 = vrot.slane %v801, 2
    %v803 = vadd.f32 %v801, %v802
    %v804 = vrot.slane %v803, 1
    %v805 = vadd.f32 %v803, %v804
    %v806 = vmul.f32 %v805, 0.001953125
    %v807 = vadd.f32 %v806, 1e-05
    %v808 = vrsqrt.pop %v807
    %v809 = vmul.f32 %v808, %v807
    %v810 = vmul.f32 %v809, %v808
    %v811 = vmul.f32 0.5, %v810
    %v812 = vsub.f32 1.5, %v811
    %v813 = vmul.f32 %v808, %v812
    %vm814 = vweird.f32 %v807
    %vm815 = vweird.f32 %v808
    %vm816 = vmor %vm814, %vm815
    %v817 = vsel %vm816, %v808, %v813
    %v818 = vmul.f32 %v707, %v817
    %vm819 = vcmask 1040384
    %v820 = vsel %vm819, %v818, %v707
    %v822 = vsel %vm731, %v820, 0
    %824 = vmatpush.msra.mxu0 0.0
    %825 = vmatpush.msra.mxu0 0.0
    %826 = vmatpush.msra.mxu0 0.0
    %827 = vmatpush.msra.mxu0 0.0
    %828 = vmatpush.msra.mxu0 0.0
    %829 = vmatpush.msra.mxu0 0.0
    %830 = vmatpush.msra.mxu0 0.0
    %831 = vmatpush.msra.mxu0 0.0
    %832 = vmatpush.msra.mxu0 0.0
    %833 = vmatpush.msra.mxu0 0.0
    %834 = vmatpush.msra.mxu0 0.0
    %835 = vmatpush.msra.mxu0 0.0
    %836 = vmatpush.msra.mxu0 0.0
    %837 = vmatpush.msra.mxu0 0.0
    %838 = vmatpush.msra.mxu0 0.0
    %839 = vmatpush.msra.mxu0 %v747
    %840 = vmatmul.f32.gmra.mxu0 %v822
    %v841 = vpop.f32.mrf.mxu0
    %v842 = vadd.f32 0.0, %v841
    %843 = vdwg.mxu0
    %v844 = vperm.slane %v842, 0
    %v845 = vmul.f32 %v770, %v844
    %v846 = vmul.f32 %v771, %v844
    %v847 = vperm.slane %v842, 1
    %v848 = vadd.f32 %v845, %v847
    %v849 = vadd.f32 %v846, %v847
    %vm850 = vcmp.gt.f32.partialorder %v848, 0.0
    %vm851 = vcmp.gt.f32.partialorder %v849, 0.0
    %v852 = vmul.f32 %v848, 0.01
    %v853 = vmul.f32 %v849, 0.01
    %v854 = vsel %vm850, %v848, %v852
    %v855 = vsel %vm851, %v849, %v853
    %s856 = scalar_lea.vmem [#allocation5], 352
    %v857 = vld [vmem:[%s856] sm:$0xff]
    %v858 = vld [vmem:[%s856 + $0x8] sm:$0xff]
    %v859 = vmul.f32 %v854, %v857
    %v860 = vmul.f32 %v855, %v858
    %861 = vrot.lane.b32.xlu0 %v854, 127
    %v862 = vpop.permute.xlu0 %861
    %863 = vrot.lane.b32.xlu0 %v855, 127
    %v864 = vpop.permute.xlu0 %863
    %s865 = scalar_lea.vmem [#allocation5], 368
    %v866 = vld [vmem:[%s865] sm:$0xff]
    %v867 = vld [vmem:[%s865 + $0x8] sm:$0xff]
    %v868 = vmul.f32 %v862, %v866
    %v869 = vmul.f32 %v864, %v867
    %870 = vrot.lane.b32.xlu0 %v854, 126
    %v871 = vpop.permute.xlu0 %870
    %872 = vrot.lane.b32.xlu0 %v855, 126
    %v873 = vpop.permute.xlu0 %872
    %s874 = scalar_lea.vmem [#allocation5], 384
    %v875 = vld [vmem:[%s874] sm:$0xff]
    %v876 = vld [vmem:[%s874 + $0x8] sm:$0xff]
    %v877 = vmul.f32 %v871, %v875
    %v878 = vmul.f32 %v873, %v876
    %879 = vrot.lane.b32.xlu0 %v854, 125
    %v880 = vpop.permute.xlu0 %879
    %881 = vrot.lane.b32.xlu0 %v855, 125
    %v882 = vpop.permute.xlu0 %881
    %s883 = scalar_lea.vmem [#allocation5], 400
    %v884 = vld [vmem:[%s883] sm:$0xff]
    %v885 = vld [vmem:[%s883 + $0x8] sm:$0xff]
    %v886 = vmul.f32 %v880, %v884
    %v887 = vmul.f32 %v882, %v885
    %888 = vrot.lane.b32.xlu0 %v854, 124
    %v889 = vpop.permute.xlu0 %888
    %890 = vrot.lane.b32.xlu0 %v855, 124
    %v891 = vpop.permute.xlu0 %890
    %s892 = scalar_lea.vmem [#allocation5], 416
    %v893 = vld [vmem:[%s892] sm:$0xff]
    %v894 = vld [vmem:[%s892 + $0x8] sm:$0xff]
    %v895 = vmul.f32 %v889, %v893
    %v896 = vmul.f32 %v891, %v894
    %v897 = vadd.f32 %v859, %v895
    %v898 = vadd.f32 %v860, %v896
    %899 = vrot.lane.b32.xlu0 %v854, 123
    %v900 = vpop.permute.xlu0 %899
    %901 = vrot.lane.b32.xlu0 %v855, 123
    %v902 = vpop.permute.xlu0 %901
    %s903 = scalar_lea.vmem [#allocation5], 432
    %v904 = vld [vmem:[%s903] sm:$0xff]
    %v905 = vld [vmem:[%s903 + $0x8] sm:$0xff]
    %v906 = vmul.f32 %v900, %v904
    %v907 = vmul.f32 %v902, %v905
    %v908 = vadd.f32 %v868, %v906
    %v909 = vadd.f32 %v869, %v907
    %910 = vrot.lane.b32.xlu0 %v854, 122
    %v911 = vpop.permute.xlu0 %910
    %912 = vrot.lane.b32.xlu0 %v855, 122
    %v913 = vpop.permute.xlu0 %912
    %s914 = scalar_lea.vmem [#allocation5], 448
    %v915 = vld [vmem:[%s914] sm:$0xff]
    %v916 = vld [vmem:[%s914 + $0x8] sm:$0xff]
    %v917 = vmul.f32 %v911, %v915
    %v918 = vmul.f32 %v913, %v916
    %v919 = vadd.f32 %v877, %v917
    %v920 = vadd.f32 %v878, %v918
    %921 = vrot.lane.b32.xlu0 %v854, 121
    %v922 = vpop.permute.xlu0 %921
    %923 = vrot.lane.b32.xlu0 %v855, 121
    %v924 = vpop.permute.xlu0 %923
    %s925 = scalar_lea.vmem [#allocation5], 464
    %v926 = vld [vmem:[%s925] sm:$0xff]
    %v927 = vld [vmem:[%s925 + $0x8] sm:$0xff]
    %v928 = vmul.f32 %v922, %v926
    %v929 = vmul.f32 %v924, %v927
    %v930 = vadd.f32 %v886, %v928
    %v931 = vadd.f32 %v887, %v929
    %932 = vrot.lane.b32.xlu0 %v854, 71
    %v933 = vpop.permute.xlu0 %932
    %934 = vrot.lane.b32.xlu0 %v855, 71
    %v935 = vpop.permute.xlu0 %934
    %v936 = vrot.slane %v933, 7
    %v937 = vrot.slane %v935, 7
    %v938 = vsel %vm165, %v936, %v937
    %v939 = vsel %vm165, %v937, %v936
    %v940 = vsel %vm160, %v933, %v939
    %v941 = vsel %vm160, %v935, %v938
    %v942 = vld [vmem:[#allocation5] sm:$0xff]
    %v943 = vld [vmem:[#allocation5 + $0x8] sm:$0xff]
    %v944 = vmul.f32 %v940, %v942
    %v945 = vmul.f32 %v941, %v943
    %v946 = vadd.f32 %v897, %v944
    %v947 = vadd.f32 %v898, %v945
    %v948 = vrot.slane %v933, 1
    %v949 = vrot.slane %v935, 1
    %v950 = vsel %vm178, %v948, %v949
    %v951 = vsel %vm178, %v949, %v948
    %v952 = vsel %vm160, %v950, %v933
    %v953 = vsel %vm160, %v951, %v935
    %s954 = scalar_lea.vmem [#allocation5], 480
    %v955 = vld [vmem:[%s954] sm:$0xff]
    %v956 = vld [vmem:[%s954 + $0x8] sm:$0xff]
    %v957 = vmul.f32 %v952, %v955
    %v958 = vmul.f32 %v953, %v956
    %v959 = vadd.f32 %v908, %v957
    %v960 = vadd.f32 %v909, %v958
    %961 = vrot.lane.b32.xlu0 %v854, 70
    %v962 = vpop.permute.xlu0 %961
    %963 = vrot.lane.b32.xlu0 %v855, 70
    %v964 = vpop.permute.xlu0 %963
    %v965 = vrot.slane %v962, 7
    %v966 = vrot.slane %v964, 7
    %v967 = vsel %vm165, %v965, %v966
    %v968 = vsel %vm165, %v966, %v965
    %v969 = vsel %vm194, %v962, %v968
    %v970 = vsel %vm194, %v964, %v967
    %s971 = scalar_lea.vmem [#allocation5], 16
    %v972 = vld [vmem:[%s971] sm:$0xff]
    %v973 = vld [vmem:[%s971 + $0x8] sm:$0xff]
    %v974 = vmul.f32 %v969, %v972
    %v975 = vmul.f32 %v970, %v973
    %v976 = vadd.f32 %v919, %v974
    %v977 = vadd.f32 %v920, %v975
    %v978 = vrot.slane %v962, 1
    %v979 = vrot.slane %v964, 1
    %v980 = vsel %vm178, %v978, %v979
    %v981 = vsel %vm178, %v979, %v978
    %v982 = vsel %vm194, %v980, %v962
    %v983 = vsel %vm194, %v981, %v964
    %s984 = scalar_lea.vmem [#allocation5], 496
    %v985 = vld [vmem:[%s984] sm:$0xff]
    %v986 = vld [vmem:[%s984 + $0x8] sm:$0xff]
    %v987 = vmul.f32 %v982, %v985
    %v988 = vmul.f32 %v983, %v986
    %v989 = vadd.f32 %v930, %v987
    %v990 = vadd.f32 %v931, %v988
    %991 = vrot.lane.b32.xlu0 %v854, 69
    %v992 = vpop.permute.xlu0 %991
    %993 = vrot.lane.b32.xlu0 %v855, 69
    %v994 = vpop.permute.xlu0 %993
    %v995 = vrot.slane %v992, 7
    %v996 = vrot.slane %v994, 7
    %v997 = vsel %vm165, %v995, %v996
    %v998 = vsel %vm165, %v996, %v995
    %v999 = vsel %vm225, %v992, %v998
    %v1000 = vsel %vm225, %v994, %v997
    %s1001 = scalar_lea.vmem [#allocation5], 32
    %v1002 = vld [vmem:[%s1001] sm:$0xff]
    %v1003 = vld [vmem:[%s1001 + $0x8] sm:$0xff]
    %v1004 = vmul.f32 %v999, %v1002
    %v1005 = vmul.f32 %v1000, %v1003
    %v1006 = vadd.f32 %v946, %v1004
    %v1007 = vadd.f32 %v947, %v1005
    %v1008 = vrot.slane %v992, 1
    %v1009 = vrot.slane %v994, 1
    %v1010 = vsel %vm178, %v1008, %v1009
    %v1011 = vsel %vm178, %v1009, %v1008
    %v1012 = vsel %vm225, %v1010, %v992
    %v1013 = vsel %vm225, %v1011, %v994
    %s1014 = scalar_lea.vmem [#allocation5], 512
    %v1015 = vld [vmem:[%s1014] sm:$0xff]
    %v1016 = vld [vmem:[%s1014 + $0x8] sm:$0xff]
    %v1017 = vmul.f32 %v1012, %v1015
    %v1018 = vmul.f32 %v1013, %v1016
    %v1019 = vadd.f32 %v959, %v1017
    %v1020 = vadd.f32 %v960, %v1018
    %1021 = vrot.lane.b32.xlu0 %v854, 68
    %v1022 = vpop.permute.xlu0 %1021
    %1023 = vrot.lane.b32.xlu0 %v855, 68
    %v1024 = vpop.permute.xlu0 %1023
    %v1025 = vrot.slane %v1022, 7
    %v1026 = vrot.slane %v1024, 7
    %v1027 = vsel %vm165, %v1025, %v1026
    %v1028 = vsel %vm165, %v1026, %v1025
    %v1029 = vsel %vm256, %v1022, %v1028
    %v1030 = vsel %vm256, %v1024, %v1027
    %s1031 = scalar_lea.vmem [#allocation5], 48
    %v1032 = vld [vmem:[%s1031] sm:$0xff]
    %v1033 = vld [vmem:[%s1031 + $0x8] sm:$0xff]
    %v1034 = vmul.f32 %v1029, %v1032
    %v1035 = vmul.f32 %v1030, %v1033
    %v1036 = vadd.f32 %v976, %v1034
    %v1037 = vadd.f32 %v977, %v1035
    %v1038 = vrot.slane %v1022, 1
    %v1039 = vrot.slane %v1024, 1
    %v1040 = vsel %vm178, %v1038, %v1039
    %v1041 = vsel %vm178, %v1039, %v1038
    %v1042 = vsel %vm256, %v1040, %v1022
    %v1043 = vsel %vm256, %v1041, %v1024
    %s1044 = scalar_lea.vmem [#allocation5], 528
    %v1045 = vld [vmem:[%s1044] sm:$0xff]
    %v1046 = vld [vmem:[%s1044 + $0x8] sm:$0xff]
    %v1047 = vmul.f32 %v1042, %v1045
    %v1048 = vmul.f32 %v1043, %v1046
    %v1049 = vadd.f32 %v989, %v1047
    %v1050 = vadd.f32 %v990, %v1048
    %1051 = vrot.lane.b32.xlu0 %v854, 67
    %v1052 = vpop.permute.xlu0 %1051
    %1053 = vrot.lane.b32.xlu0 %v855, 67
    %v1054 = vpop.permute.xlu0 %1053
    %v1055 = vrot.slane %v1052, 7
    %v1056 = vrot.slane %v1054, 7
    %v1057 = vsel %vm165, %v1055, %v1056
    %v1058 = vsel %vm165, %v1056, %v1055
    %v1059 = vsel %vm287, %v1052, %v1058
    %v1060 = vsel %vm287, %v1054, %v1057
    %s1061 = scalar_lea.vmem [#allocation5], 64
    %v1062 = vld [vmem:[%s1061] sm:$0xff]
    %v1063 = vld [vmem:[%s1061 + $0x8] sm:$0xff]
    %v1064 = vmul.f32 %v1059, %v1062
    %v1065 = vmul.f32 %v1060, %v1063
    %v1066 = vadd.f32 %v1006, %v1064
    %v1067 = vadd.f32 %v1007, %v1065
    %v1068 = vrot.slane %v1052, 1
    %v1069 = vrot.slane %v1054, 1
    %v1070 = vsel %vm178, %v1068, %v1069
    %v1071 = vsel %vm178, %v1069, %v1068
    %v1072 = vsel %vm287, %v1070, %v1052
    %v1073 = vsel %vm287, %v1071, %v1054
    %s1074 = scalar_lea.vmem [#allocation5], 544
    %v1075 = vld [vmem:[%s1074] sm:$0xff]
    %v1076 = vld [vmem:[%s1074 + $0x8] sm:$0xff]
    %v1077 = vmul.f32 %v1072, %v1075
    %v1078 = vmul.f32 %v1073, %v1076
    %v1079 = vadd.f32 %v1019, %v1077
    %v1080 = vadd.f32 %v1020, %v1078
    %1081 = vrot.lane.b32.xlu0 %v854, 66
    %v1082 = vpop.permute.xlu0 %1081
    %1083 = vrot.lane.b32.xlu0 %v855, 66
    %v1084 = vpop.permute.xlu0 %1083
    %v1085 = vrot.slane %v1082, 7
    %v1086 = vrot.slane %v1084, 7
    %v1087 = vsel %vm165, %v1085, %v1086
    %v1088 = vsel %vm165, %v1086, %v1085
    %v1089 = vsel %vm318, %v1082, %v1088
    %v1090 = vsel %vm318, %v1084, %v1087
    %s1091 = scalar_lea.vmem [#allocation5], 80
    %v1092 = vld [vmem:[%s1091] sm:$0xff]
    %v1093 = vld [vmem:[%s1091 + $0x8] sm:$0xff]
    %v1094 = vmul.f32 %v1089, %v1092
    %v1095 = vmul.f32 %v1090, %v1093
    %v1096 = vadd.f32 %v1036, %v1094
    %v1097 = vadd.f32 %v1037, %v1095
    %v1098 = vrot.slane %v1082, 1
    %v1099 = vrot.slane %v1084, 1
    %v1100 = vsel %vm178, %v1098, %v1099
    %v1101 = vsel %vm178, %v1099, %v1098
    %v1102 = vsel %vm318, %v1100, %v1082
    %v1103 = vsel %vm318, %v1101, %v1084
    %s1104 = scalar_lea.vmem [#allocation5], 560
    %v1105 = vld [vmem:[%s1104] sm:$0xff]
    %v1106 = vld [vmem:[%s1104 + $0x8] sm:$0xff]
    %v1107 = vmul.f32 %v1102, %v1105
    %v1108 = vmul.f32 %v1103, %v1106
    %v1109 = vadd.f32 %v1049, %v1107
    %v1110 = vadd.f32 %v1050, %v1108
    %1111 = vrot.lane.b32.xlu0 %v854, 65
    %v1112 = vpop.permute.xlu0 %1111
    %1113 = vrot.lane.b32.xlu0 %v855, 65
    %v1114 = vpop.permute.xlu0 %1113
    %v1115 = vrot.slane %v1112, 7
    %v1116 = vrot.slane %v1114, 7
    %v1117 = vsel %vm165, %v1115, %v1116
    %v1118 = vsel %vm165, %v1116, %v1115
    %v1119 = vsel %vm349, %v1112, %v1118
    %v1120 = vsel %vm349, %v1114, %v1117
    %s1121 = scalar_lea.vmem [#allocation5], 96
    %v1122 = vld [vmem:[%s1121] sm:$0xff]
    %v1123 = vld [vmem:[%s1121 + $0x8] sm:$0xff]
    %v1124 = vmul.f32 %v1119, %v1122
    %v1125 = vmul.f32 %v1120, %v1123
    %v1126 = vadd.f32 %v1066, %v1124
    %v1127 = vadd.f32 %v1067, %v1125
    %v1128 = vrot.slane %v1112, 1
    %v1129 = vrot.slane %v1114, 1
    %v1130 = vsel %vm178, %v1128, %v1129
    %v1131 = vsel %vm178, %v1129, %v1128
    %v1132 = vsel %vm349, %v1130, %v1112
    %v1133 = vsel %vm349, %v1131, %v1114
    %s1134 = scalar_lea.vmem [#allocation5], 576
    %v1135 = vld [vmem:[%s1134] sm:$0xff]
    %v1136 = vld [vmem:[%s1134 + $0x8] sm:$0xff]
    %v1137 = vmul.f32 %v1132, %v1135
    %v1138 = vmul.f32 %v1133, %v1136
    %v1139 = vadd.f32 %v1079, %v1137
    %v1140 = vadd.f32 %v1080, %v1138
    %1141 = vrot.lane.b32.xlu0 %v854, 64
    %v1142 = vpop.permute.xlu0 %1141
    %1143 = vrot.lane.b32.xlu0 %v855, 64
    %v1144 = vpop.permute.xlu0 %1143
    %v1145 = vrot.slane %v1142, 7
    %v1146 = vrot.slane %v1144, 7
    %v1147 = vsel %vm165, %v1145, %v1146
    %v1148 = vsel %vm165, %v1146, %v1145
    %v1149 = vsel %vm380, %v1142, %v1148
    %v1150 = vsel %vm380, %v1144, %v1147
    %s1151 = scalar_lea.vmem [#allocation5], 112
    %v1152 = vld [vmem:[%s1151] sm:$0xff]
    %v1153 = vld [vmem:[%s1151 + $0x8] sm:$0xff]
    %v1154 = vmul.f32 %v1149, %v1152
    %v1155 = vmul.f32 %v1150, %v1153
    %v1156 = vadd.f32 %v1096, %v1154
    %v1157 = vadd.f32 %v1097, %v1155
    %v1158 = vrot.slane %v1142, 1
    %v1159 = vrot.slane %v1144, 1
    %v1160 = vsel %vm178, %v1158, %v1159
    %v1161 = vsel %vm178, %v1159, %v1158
    %v1162 = vsel %vm380, %v1160, %v1142
    %v1163 = vsel %vm380, %v1161, %v1144
    %s1164 = scalar_lea.vmem [#allocation5], 592
    %v1165 = vld [vmem:[%s1164] sm:$0xff]
    %v1166 = vld [vmem:[%s1164 + $0x8] sm:$0xff]
    %v1167 = vmul.f32 %v1162, %v1165
    %v1168 = vmul.f32 %v1163, %v1166
    %v1169 = vadd.f32 %v1109, %v1167
    %v1170 = vadd.f32 %v1110, %v1168
    %1171 = vrot.lane.b32.xlu0 %v854, 63
    %v1172 = vpop.permute.xlu0 %1171
    %1173 = vrot.lane.b32.xlu0 %v855, 63
    %v1174 = vpop.permute.xlu0 %1173
    %v1175 = vrot.slane %v1172, 7
    %v1176 = vrot.slane %v1174, 7
    %v1177 = vsel %vm165, %v1175, %v1176
    %v1178 = vsel %vm165, %v1176, %v1175
    %v1179 = vsel %vm411, %v1172, %v1178
    %v1180 = vsel %vm411, %v1174, %v1177
    %s1181 = scalar_lea.vmem [#allocation5], 128
    %v1182 = vld [vmem:[%s1181] sm:$0xff]
    %v1183 = vld [vmem:[%s1181 + $0x8] sm:$0xff]
    %v1184 = vmul.f32 %v1179, %v1182
    %v1185 = vmul.f32 %v1180, %v1183
    %v1186 = vadd.f32 %v1126, %v1184
    %v1187 = vadd.f32 %v1127, %v1185
    %v1188 = vrot.slane %v1172, 1
    %v1189 = vrot.slane %v1174, 1
    %v1190 = vsel %vm178, %v1188, %v1189
    %v1191 = vsel %vm178, %v1189, %v1188
    %v1192 = vsel %vm411, %v1190, %v1172
    %v1193 = vsel %vm411, %v1191, %v1174
    %s1194 = scalar_lea.vmem [#allocation5], 608
    %v1195 = vld [vmem:[%s1194] sm:$0xff]
    %v1196 = vld [vmem:[%s1194 + $0x8] sm:$0xff]
    %v1197 = vmul.f32 %v1192, %v1195
    %v1198 = vmul.f32 %v1193, %v1196
    %v1199 = vadd.f32 %v1139, %v1197
    %v1200 = vadd.f32 %v1140, %v1198
    %1201 = vrot.lane.b32.xlu0 %v854, 62
    %v1202 = vpop.permute.xlu0 %1201
    %1203 = vrot.lane.b32.xlu0 %v855, 62
    %v1204 = vpop.permute.xlu0 %1203
    %v1205 = vrot.slane %v1202, 7
    %v1206 = vrot.slane %v1204, 7
    %v1207 = vsel %vm165, %v1205, %v1206
    %v1208 = vsel %vm165, %v1206, %v1205
    %v1209 = vsel %vm442, %v1202, %v1208
    %v1210 = vsel %vm442, %v1204, %v1207
    %s1211 = scalar_lea.vmem [#allocation5], 144
    %v1212 = vld [vmem:[%s1211] sm:$0xff]
    %v1213 = vld [vmem:[%s1211 + $0x8] sm:$0xff]
    %v1214 = vmul.f32 %v1209, %v1212
    %v1215 = vmul.f32 %v1210, %v1213
    %v1216 = vadd.f32 %v1156, %v1214
    %v1217 = vadd.f32 %v1157, %v1215
    %v1218 = vrot.slane %v1202, 1
    %v1219 = vrot.slane %v1204, 1
    %v1220 = vsel %vm178, %v1218, %v1219
    %v1221 = vsel %vm178, %v1219, %v1218
    %v1222 = vsel %vm442, %v1220, %v1202
    %v1223 = vsel %vm442, %v1221, %v1204
    %s1224 = scalar_lea.vmem [#allocation5], 624
    %v1225 = vld [vmem:[%s1224] sm:$0xff]
    %v1226 = vld [vmem:[%s1224 + $0x8] sm:$0xff]
    %v1227 = vmul.f32 %v1222, %v1225
    %v1228 = vmul.f32 %v1223, %v1226
    %v1229 = vadd.f32 %v1169, %v1227
    %v1230 = vadd.f32 %v1170, %v1228
    %1231 = vrot.lane.b32.xlu0 %v854, 61
    %v1232 = vpop.permute.xlu0 %1231
    %1233 = vrot.lane.b32.xlu0 %v855, 61
    %v1234 = vpop.permute.xlu0 %1233
    %v1235 = vrot.slane %v1232, 7
    %v1236 = vrot.slane %v1234, 7
    %v1237 = vsel %vm165, %v1235, %v1236
    %v1238 = vsel %vm165, %v1236, %v1235
    %v1239 = vsel %vm473, %v1232, %v1238
    %v1240 = vsel %vm473, %v1234, %v1237
    %s1241 = scalar_lea.vmem [#allocation5], 160
    %v1242 = vld [vmem:[%s1241] sm:$0xff]
    %v1243 = vld [vmem:[%s1241 + $0x8] sm:$0xff]
    %v1244 = vmul.f32 %v1239, %v1242
    %v1245 = vmul.f32 %v1240, %v1243
    %v1246 = vadd.f32 %v1186, %v1244
    %v1247 = vadd.f32 %v1187, %v1245
    %v1248 = vrot.slane %v1232, 1
    %v1249 = vrot.slane %v1234, 1
    %v1250 = vsel %vm178, %v1248, %v1249
    %v1251 = vsel %vm178, %v1249, %v1248
    %v1252 = vsel %vm473, %v1250, %v1232
    %v1253 = vsel %vm473, %v1251, %v1234
    %s1254 = scalar_lea.vmem [#allocation5], 640
    %v1255 = vld [vmem:[%s1254] sm:$0xff]
    %v1256 = vld [vmem:[%s1254 + $0x8] sm:$0xff]
    %v1257 = vmul.f32 %v1252, %v1255
    %v1258 = vmul.f32 %v1253, %v1256
    %v1259 = vadd.f32 %v1199, %v1257
    %v1260 = vadd.f32 %v1200, %v1258
    %1261 = vrot.lane.b32.xlu0 %v854, 60
    %v1262 = vpop.permute.xlu0 %1261
    %1263 = vrot.lane.b32.xlu0 %v855, 60
    %v1264 = vpop.permute.xlu0 %1263
    %v1265 = vrot.slane %v1262, 7
    %v1266 = vrot.slane %v1264, 7
    %v1267 = vsel %vm165, %v1265, %v1266
    %v1268 = vsel %vm165, %v1266, %v1265
    %v1269 = vsel %vm504, %v1262, %v1268
    %v1270 = vsel %vm504, %v1264, %v1267
    %s1271 = scalar_lea.vmem [#allocation5], 176
    %v1272 = vld [vmem:[%s1271] sm:$0xff]
    %v1273 = vld [vmem:[%s1271 + $0x8] sm:$0xff]
    %v1274 = vmul.f32 %v1269, %v1272
    %v1275 = vmul.f32 %v1270, %v1273
    %v1276 = vadd.f32 %v1216, %v1274
    %v1277 = vadd.f32 %v1217, %v1275
    %v1278 = vrot.slane %v1262, 1
    %v1279 = vrot.slane %v1264, 1
    %v1280 = vsel %vm178, %v1278, %v1279
    %v1281 = vsel %vm178, %v1279, %v1278
    %v1282 = vsel %vm504, %v1280, %v1262
    %v1283 = vsel %vm504, %v1281, %v1264
    %s1284 = scalar_lea.vmem [#allocation5], 656
    %v1285 = vld [vmem:[%s1284] sm:$0xff]
    %v1286 = vld [vmem:[%s1284 + $0x8] sm:$0xff]
    %v1287 = vmul.f32 %v1282, %v1285
    %v1288 = vmul.f32 %v1283, %v1286
    %v1289 = vadd.f32 %v1229, %v1287
    %v1290 = vadd.f32 %v1230, %v1288
    %1291 = vrot.lane.b32.xlu0 %v854, 59
    %v1292 = vpop.permute.xlu0 %1291
    %1293 = vrot.lane.b32.xlu0 %v855, 59
    %v1294 = vpop.permute.xlu0 %1293
    %v1295 = vrot.slane %v1292, 7
    %v1296 = vrot.slane %v1294, 7
    %v1297 = vsel %vm165, %v1295, %v1296
    %v1298 = vsel %vm165, %v1296, %v1295
    %v1299 = vsel %vm535, %v1292, %v1298
    %v1300 = vsel %vm535, %v1294, %v1297
    %s1301 = scalar_lea.vmem [#allocation5], 192
    %v1302 = vld [vmem:[%s1301] sm:$0xff]
    %v1303 = vld [vmem:[%s1301 + $0x8] sm:$0xff]
    %v1304 = vmul.f32 %v1299, %v1302
    %v1305 = vmul.f32 %v1300, %v1303
    %v1306 = vadd.f32 %v1246, %v1304
    %v1307 = vadd.f32 %v1247, %v1305
    %v1308 = vrot.slane %v1292, 1
    %v1309 = vrot.slane %v1294, 1
    %v1310 = vsel %vm178, %v1308, %v1309
    %v1311 = vsel %vm178, %v1309, %v1308
    %v1312 = vsel %vm535, %v1310, %v1292
    %v1313 = vsel %vm535, %v1311, %v1294
    %s1314 = scalar_lea.vmem [#allocation5], 672
    %v1315 = vld [vmem:[%s1314] sm:$0xff]
    %v1316 = vld [vmem:[%s1314 + $0x8] sm:$0xff]
    %v1317 = vmul.f32 %v1312, %v1315
    %v1318 = vmul.f32 %v1313, %v1316
    %v1319 = vadd.f32 %v1259, %v1317
    %v1320 = vadd.f32 %v1260, %v1318
    %1321 = vrot.lane.b32.xlu0 %v854, 58
    %v1322 = vpop.permute.xlu0 %1321
    %1323 = vrot.lane.b32.xlu0 %v855, 58
    %v1324 = vpop.permute.xlu0 %1323
    %v1325 = vrot.slane %v1322, 7
    %v1326 = vrot.slane %v1324, 7
    %v1327 = vsel %vm165, %v1325, %v1326
    %v1328 = vsel %vm165, %v1326, %v1325
    %v1329 = vsel %vm566, %v1322, %v1328
    %v1330 = vsel %vm566, %v1324, %v1327
    %s1331 = scalar_lea.vmem [#allocation5], 208
    %v1332 = vld [vmem:[%s1331] sm:$0xff]
    %v1333 = vld [vmem:[%s1331 + $0x8] sm:$0xff]
    %v1334 = vmul.f32 %v1329, %v1332
    %v1335 = vmul.f32 %v1330, %v1333
    %v1336 = vadd.f32 %v1276, %v1334
    %v1337 = vadd.f32 %v1277, %v1335
    %v1338 = vrot.slane %v1322, 1
    %v1339 = vrot.slane %v1324, 1
    %v1340 = vsel %vm178, %v1338, %v1339
    %v1341 = vsel %vm178, %v1339, %v1338
    %v1342 = vsel %vm566, %v1340, %v1322
    %v1343 = vsel %vm566, %v1341, %v1324
    %s1344 = scalar_lea.vmem [#allocation5], 688
    %v1345 = vld [vmem:[%s1344] sm:$0xff]
    %v1346 = vld [vmem:[%s1344 + $0x8] sm:$0xff]
    %v1347 = vmul.f32 %v1342, %v1345
    %v1348 = vmul.f32 %v1343, %v1346
    %v1349 = vadd.f32 %v1289, %v1347
    %v1350 = vadd.f32 %v1290, %v1348
    %1351 = vrot.lane.b32.xlu0 %v854, 57
    %v1352 = vpop.permute.xlu0 %1351
    %1353 = vrot.lane.b32.xlu0 %v855, 57
    %v1354 = vpop.permute.xlu0 %1353
    %v1355 = vrot.slane %v1352, 7
    %v1356 = vrot.slane %v1354, 7
    %v1357 = vsel %vm165, %v1355, %v1356
    %v1358 = vsel %vm165, %v1356, %v1355
    %v1359 = vsel %vm597, %v1352, %v1358
    %v1360 = vsel %vm597, %v1354, %v1357
    %s1361 = scalar_lea.vmem [#allocation5], 224
    %v1362 = vld [vmem:[%s1361] sm:$0xff]
    %v1363 = vld [vmem:[%s1361 + $0x8] sm:$0xff]
    %v1364 = vmul.f32 %v1359, %v1362
    %v1365 = vmul.f32 %v1360, %v1363
    %v1366 = vadd.f32 %v1306, %v1364
    %v1367 = vadd.f32 %v1307, %v1365
    %v1368 = vrot.slane %v1352, 1
    %v1369 = vrot.slane %v1354, 1
    %v1370 = vsel %vm178, %v1368, %v1369
    %v1371 = vsel %vm178, %v1369, %v1368
    %v1372 = vsel %vm597, %v1370, %v1352
    %v1373 = vsel %vm597, %v1371, %v1354
    %s1374 = scalar_lea.vmem [#allocation5], 704
    %v1375 = vld [vmem:[%s1374] sm:$0xff]
    %v1376 = vld [vmem:[%s1374 + $0x8] sm:$0xff]
    %v1377 = vmul.f32 %v1372, %v1375
    %v1378 = vmul.f32 %v1373, %v1376
    %v1379 = vadd.f32 %v1319, %v1377
    %v1380 = vadd.f32 %v1320, %v1378
    %1381 = vrot.lane.b32.xlu0 %v854, 7
    %v1382 = vpop.permute.xlu0 %1381
    %1383 = vrot.lane.b32.xlu0 %v855, 7
    %v1384 = vpop.permute.xlu0 %1383
    %s1385 = scalar_lea.vmem [#allocation5], 240
    %v1386 = vld [vmem:[%s1385] sm:$0xff]
    %v1387 = vld [vmem:[%s1385 + $0x8] sm:$0xff]
    %v1388 = vmul.f32 %v1382, %v1386
    %v1389 = vmul.f32 %v1384, %v1387
    %v1390 = vadd.f32 %v1336, %v1388
    %v1391 = vadd.f32 %v1337, %v1389
    %1392 = vrot.lane.b32.xlu0 %v854, 6
    %v1393 = vpop.permute.xlu0 %1392
    %1394 = vrot.lane.b32.xlu0 %v855, 6
    %v1395 = vpop.permute.xlu0 %1394
    %s1396 = scalar_lea.vmem [#allocation5], 256
    %v1397 = vld [vmem:[%s1396] sm:$0xff]
    %v1398 = vld [vmem:[%s1396 + $0x8] sm:$0xff]
    %v1399 = vmul.f32 %v1393, %v1397
    %v1400 = vmul.f32 %v1395, %v1398
    %v1401 = vadd.f32 %v1349, %v1399
    %v1402 = vadd.f32 %v1350, %v1400
    %1403 = vrot.lane.b32.xlu0 %v854, 5
    %v1404 = vpop.permute.xlu0 %1403
    %1405 = vrot.lane.b32.xlu0 %v855, 5
    %v1406 = vpop.permute.xlu0 %1405
    %s1407 = scalar_lea.vmem [#allocation5], 272
    %v1408 = vld [vmem:[%s1407] sm:$0xff]
    %v1409 = vld [vmem:[%s1407 + $0x8] sm:$0xff]
    %v1410 = vmul.f32 %v1404, %v1408
    %v1411 = vmul.f32 %v1406, %v1409
    %v1412 = vadd.f32 %v1366, %v1410
    %v1413 = vadd.f32 %v1367, %v1411
    %1414 = vrot.lane.b32.xlu0 %v854, 4
    %v1415 = vpop.permute.xlu0 %1414
    %1416 = vrot.lane.b32.xlu0 %v855, 4
    %v1417 = vpop.permute.xlu0 %1416
    %s1418 = scalar_lea.vmem [#allocation5], 288
    %v1419 = vld [vmem:[%s1418] sm:$0xff]
    %v1420 = vld [vmem:[%s1418 + $0x8] sm:$0xff]
    %v1421 = vmul.f32 %v1415, %v1419
    %v1422 = vmul.f32 %v1417, %v1420
    %v1423 = vadd.f32 %v1379, %v1421
    %v1424 = vadd.f32 %v1380, %v1422
    %1425 = vrot.lane.b32.xlu0 %v854, 3
    %v1426 = vpop.permute.xlu0 %1425
    %1427 = vrot.lane.b32.xlu0 %v855, 3
    %v1428 = vpop.permute.xlu0 %1427
    %s1429 = scalar_lea.vmem [#allocation5], 304
    %v1430 = vld [vmem:[%s1429] sm:$0xff]
    %v1431 = vld [vmem:[%s1429 + $0x8] sm:$0xff]
    %v1432 = vmul.f32 %v1426, %v1430
    %v1433 = vmul.f32 %v1428, %v1431
    %v1434 = vadd.f32 %v1390, %v1432
    %v1435 = vadd.f32 %v1391, %v1433
    %1436 = vrot.lane.b32.xlu0 %v854, 2
    %v1437 = vpop.permute.xlu0 %1436
    %1438 = vrot.lane.b32.xlu0 %v855, 2
    %v1439 = vpop.permute.xlu0 %1438
    %s1440 = scalar_lea.vmem [#allocation5], 320
    %v1441 = vld [vmem:[%s1440] sm:$0xff]
    %v1442 = vld [vmem:[%s1440 + $0x8] sm:$0xff]
    %v1443 = vmul.f32 %v1437, %v1441
    %v1444 = vmul.f32 %v1439, %v1442
    %v1445 = vadd.f32 %v1401, %v1443
    %v1446 = vadd.f32 %v1402, %v1444
    %1447 = vrot.lane.b32.xlu0 %v854, 1
    %v1448 = vpop.permute.xlu0 %1447
    %1449 = vrot.lane.b32.xlu0 %v855, 1
    %v1450 = vpop.permute.xlu0 %1449
    %s1451 = scalar_lea.vmem [#allocation5], 336
    %v1452 = vld [vmem:[%s1451] sm:$0xff]
    %v1453 = vld [vmem:[%s1451 + $0x8] sm:$0xff]
    %v1454 = vmul.f32 %v1448, %v1452
    %v1455 = vmul.f32 %v1450, %v1453
    %v1456 = vadd.f32 %v1412, %v1454
    %v1457 = vadd.f32 %v1413, %v1455
    %v1458 = vadd.f32 %v1456, %v1423
    %v1459 = vadd.f32 %v1457, %v1424
    %v1460 = vadd.f32 %v1434, %v1445
    %v1461 = vadd.f32 %v1435, %v1446
    %v1462 = vadd.f32 %v1458, %v1460
    %v1463 = vadd.f32 %v1459, %v1461
    %v1464 = vld [vmem:[%s6] sm:$0x3]
    %1465 = vmatpush.msra.mxu0 %v76
    %1466 = vmatpush.msra.mxu0 %v75
    %1467 = vmatpush.msra.mxu0 %v74
    %1468 = vmatpush.msra.mxu0 %v73
    %1469 = vmatpush.msra.mxu0 %v72
    %1470 = vmatpush.msra.mxu0 %v71
    %1471 = vmatpush.msra.mxu0 %v70
    %1472 = vmatpush.msra.mxu0 %v69
    %1473 = vmatpush.msra.mxu0 %v68
    %1474 = vmatpush.msra.mxu0 %v67
    %1475 = vmatpush.msra.mxu0 %v66
    %1476 = vmatpush.msra.mxu0 %v65
    %1477 = vmatpush.msra.mxu0 %v64
    %1478 = vmatpush.msra.mxu0 %v63
    %1479 = vmatpush.msra.mxu0 %v62
    %1480 = vmatpush.msra.mxu0 %v61
    %1481 = vmatmul.f32.gmra.mxu0 %v1462
    %v1482 = vpop.f32.mrf.mxu0
    %v1483 = vadd.f32 0.0, %v1482
    %1484 = vmatmul.f32.gmra.mxu0 %v1463
    %v1485 = vpop.f32.mrf.mxu0
    %v1486 = vadd.f32 0.0, %v1485
    %1487 = vdwg.mxu0
    %v1488 = vsel %vm731, %v1483, 0.0
    %v1489 = vsel %vm731, %v1486, 0.0
    %v1490 = vadd.f32 %v1488, %v1489
    %v1491 = vrot.slane %v1490, 4
    %v1492 = vadd.f32 %v1490, %v1491
    %v1493 = vrot.slane %v1492, 2
    %v1494 = vadd.f32 %v1492, %v1493
    %v1495 = vrot.slane %v1494, 1
    %v1496 = vadd.f32 %v1494, %v1495
    %v1497 = vmul.f32 %v1496, 0.001953125
    %v1499 = vsel %vm731, %v1497, 0
    %1501 = vmatpush.msra.mxu0 0.0
    %1502 = vmatpush.msra.mxu0 0.0
    %1503 = vmatpush.msra.mxu0 0.0
    %1504 = vmatpush.msra.mxu0 0.0
    %1505 = vmatpush.msra.mxu0 0.0
    %1506 = vmatpush.msra.mxu0 0.0
    %1507 = vmatpush.msra.mxu0 0.0
    %1508 = vmatpush.msra.mxu0 0.0
    %1509 = vmatpush.msra.mxu0 0.0
    %1510 = vmatpush.msra.mxu0 0.0
    %1511 = vmatpush.msra.mxu0 0.0
    %1512 = vmatpush.msra.mxu0 0.0
    %1513 = vmatpush.msra.mxu0 0.0
    %1514 = vmatpush.msra.mxu0 0.0
    %1515 = vmatpush.msra.mxu0 0.0
    %1516 = vmatpush.msra.mxu0 %v747
    %1517 = vmatmul.f32.gmra.mxu0 %v1499
    %v1518 = vpop.f32.mrf.mxu0
    %v1519 = vadd.f32 0.0, %v1518
    %1520 = vdwg.mxu0
    %v1521 = vperm.slane %v1519, 0
    %v1522 = vsub.f32 %v1462, %v1521
    %v1523 = vsub.f32 %v1463, %v1521
    %v1524 = vmul.f32 %v1522, %v1522
    %v1525 = vmul.f32 %v1523, %v1523
    %1526 = vmatpush.msra.mxu0 %v76
    %1527 = vmatpush.msra.mxu0 %v75
    %1528 = vmatpush.msra.mxu0 %v74
    %1529 = vmatpush.msra.mxu0 %v73
    %1530 = vmatpush.msra.mxu0 %v72
    %1531 = vmatpush.msra.mxu0 %v71
    %1532 = vmatpush.msra.mxu0 %v70
    %1533 = vmatpush.msra.mxu0 %v69
    %1534 = vmatpush.msra.mxu0 %v68
    %1535 = vmatpush.msra.mxu0 %v67
    %1536 = vmatpush.msra.mxu0 %v66
    %1537 = vmatpush.msra.mxu0 %v65
    %1538 = vmatpush.msra.mxu0 %v64
    %1539 = vmatpush.msra.mxu0 %v63
    %1540 = vmatpush.msra.mxu0 %v62
    %1541 = vmatpush.msra.mxu0 %v61
    %1542 = vmatmul.f32.gmra.mxu0 %v1524
    %v1543 = vpop.f32.mrf.mxu0
    %v1544 = vadd.f32 0.0, %v1543
    %1545 = vmatmul.f32.gmra.mxu0 %v1525
    %v1546 = vpop.f32.mrf.mxu0
    %v1547 = vadd.f32 0.0, %v1546
    %1548 = vdwg.mxu0
    %v1549 = vsel %vm731, %v1544, 0.0
    %v1550 = vsel %vm731, %v1547, 0.0
    %v1551 = vadd.f32 %v1549, %v1550
    %v1552 = vrot.slane %v1551, 4
    %v1553 = vadd.f32 %v1551, %v1552
    %v1554 = vrot.slane %v1553, 2
    %v1555 = vadd.f32 %v1553, %v1554
    %v1556 = vrot.slane %v1555, 1
    %v1557 = vadd.f32 %v1555, %v1556
    %v1558 = vmul.f32 %v1557, 0.001953125
    %v1559 = vadd.f32 %v1558, 1e-05
    %v1560 = vrsqrt.pop %v1559
    %v1561 = vmul.f32 %v1560, %v1559
    %v1562 = vmul.f32 %v1561, %v1560
    %v1563 = vmul.f32 0.5, %v1562
    %v1564 = vsub.f32 1.5, %v1563
    %v1565 = vmul.f32 %v1560, %v1564
    %vm1566 = vweird.f32 %v1559
    %vm1567 = vweird.f32 %v1560
    %vm1568 = vmor %vm1566, %vm1567
    %v1569 = vsel %vm1568, %v1560, %v1565
    %v1570 = vmul.f32 %v1464, %v1569
    %v1571 = vsel %vm819, %v1570, %v1464
    %v1573 = vsel %vm731, %v1571, 0
    %1575 = vmatpush.msra.mxu0 0.0
    %1576 = vmatpush.msra.mxu0 0.0
    %1577 = vmatpush.msra.mxu0 0.0
    %1578 = vmatpush.msra.mxu0 0.0
    %1579 = vmatpush.msra.mxu0 0.0
    %1580 = vmatpush.msra.mxu0 0.0
    %1581 = vmatpush.msra.mxu0 0.0
    %1582 = vmatpush.msra.mxu0 0.0
    %1583 = vmatpush.msra.mxu0 0.0
    %1584 = vmatpush.msra.mxu0 0.0
    %1585 = vmatpush.msra.mxu0 0.0
    %1586 = vmatpush.msra.mxu0 0.0
    %1587 = vmatpush.msra.mxu0 0.0
    %1588 = vmatpush.msra.mxu0 0.0
    %1589 = vmatpush.msra.mxu0 0.0
    %1590 = vmatpush.msra.mxu0 %v747
    %1591 = vmatmul.f32.gmra.mxu0 %v1573
    %v1592 = vpop.f32.mrf.mxu0
    %v1593 = vadd.f32 0.0, %v1592
    %1594 = vdwg.mxu0
    %v1595 = vperm.slane %v1593, 0
    %v1596 = vmul.f32 %v1522, %v1595
    %v1597 = vmul.f32 %v1523, %v1595
    %v1598 = vperm.slane %v1593, 1
    %v1599 = vadd.f32 %v1596, %v1598
    %v1600 = vadd.f32 %v1597, %v1598
    %vm1601 = vcmp.gt.f32.partialorder %v1599, 0.0
    %vm1602 = vcmp.gt.f32.partialorder %v1600, 0.0
    %v1603 = vmul.f32 %v1599, 0.01
    %v1604 = vmul.f32 %v1600, 0.01
    %v1605 = vsel %vm1601, %v1599, %v1603
    %v1606 = vsel %vm1602, %v1600, %v1604
    %v1607 = vadd.f32 %v1605, %v78
    %v1608 = vadd.f32 %v1606, %v79
    %vm1609 = vcmp.gt.f32.partialorder %v1607, 0.0
    %vm1610 = vcmp.gt.f32.partialorder %v1608, 0.0
    %v1611 = vmul.f32 %v1607, 0.01
    %v1612 = vmul.f32 %v1608, 0.01
    %v1613 = vsel %vm1609, %v1607, %v1611
    %v1614 = vsel %vm1610, %v1608, %v1612
    %1615 = vst [vmem:[#allocation7] sm:$0xff] %v1613
    %1616 = vst [vmem:[#allocation7 + $0x8] sm:$0xff] %v1614
    // Predicated region
    $region38: #{tpu_custom_call.1} parent=1 // pred_check
      _
    $region39: #{tpu_custom_call.1} parent=1 // pred_check_branch
      %1618 = sbr.rel (0) target = $region41
    $region40: #{tpu_custom_call.1} parent=1 // pred_region
      %1620 = vsyncadd [#allocation4], 0
      %s1621 = sshll.u32 [#allocation7], 4
      %s1622 = int_to_ptr.vmem [resolvable:$true] %s1621
      %s1623 = sshll.u32 %s7, 4
      %s1624 = int_to_ptr.hbm [resolvable:$true] %s1623
      %1629 = dma.vmem_to_hbm [thread:$0]  %s1622, 256, %s1624, [#allocation4], 128, 128, 8
    $region41: #{tpu_custom_call.1} parent=1 // pred_fallthru
      _
    // Predicated region
    $region42: #{tpu_custom_call.1} parent=1 // pred_check
      _
    $region43: #{tpu_custom_call.1} parent=1 // pred_check_branch
      %1631 = sbr.rel (0) target = $region45
    $region44: #{tpu_custom_call.1} parent=1 // pred_region
      %1633 = dma.done [#allocation4], 256
    $region45: #{tpu_custom_call.1} parent=1 // pred_fallthru
      _
    %1634 = vsyncpa [#allocation3], 1
    %1635 = vsyncpa [#allocation6], 1
    %1636 = vsyncpa [#allocation4], 1

</llo_original>
